<compile_context>
chip_gen: v5e
topology: v5e:2x2
jax: 0.10.0
libtpu: 0.0.40
codegen_flags: <defaults>
</compile_context>

<pallas_src>
import jax
import jax.numpy as jnp
from jax.experimental import pallas as pl
from jax.experimental.pallas import tpu as pltpu

_VMEM_LIMIT = 64 * 1024 * 1024     # <= physical VMEM on v5e/v6e (128 MiB) and v7x (64 MiB)


# ----------------------------------------------------------------------------- #
# Kernels
# ----------------------------------------------------------------------------- #
def _proj_kernel(x_ref, w_ref, b_ref, o_ref, acc_ref):
    """One (tm,tn) tile of  X @ W + b  with K-tiled f32 accumulation on the MXU."""
    k = pl.program_id(2)

    @pl.when(k == 0)
    def _():
        acc_ref[...] = jnp.zeros_like(acc_ref)

    # Cast the tile to the (bf16) weight dtype on-chip; input stays f32 in HBM.
    acc_ref[...] += jnp.dot(x_ref[...].astype(w_ref.dtype), w_ref[...],
                            preferred_element_type=jnp.float32)

    @pl.when(k == pl.num_programs(2) - 1)
    def _():
        o_ref[...] = (acc_ref[...] + b_ref[...]).astype(o_ref.dtype)


def _lstm_recurrence_kernel(xg_ref, whh0_ref, wih1_ref, whh1_ref, b1_ref,
                            h2_ref, h1_s, c1_s, h2_s, c2_s):
    """Ts timesteps of the 2-layer LSTM recurrence (one grid step).

    grid = (batch_shards, S // Ts).  h/c state persists across grid steps in the
    VMEM scratch refs and is re-initialized whenever the time index wraps to 0.

    xg_ref  : (Ts, Bs, 4H) f32   precomputed  x_t @ Wih0 + b0
    whh0_ref: (H,  4H) bf16      layer-0 recurrent weights (transposed)
    wih1_ref: (H,  4H) bf16      layer-1 input     weights (transposed)
    whh1_ref: (H,  4H) bf16      layer-1 recurrent weights (transposed)
    b1_ref  : (1,  4H) f32       layer-1 bias (b_ih + b_hh)
    h2_ref  : (Ts, Bs, H) bf16   layer-1 hidden state per timestep (output)
    """
    Ts, Bs, G = xg_ref.shape
    H = G // 4

    @pl.when(pl.program_id(1) == 0)          # first time-chunk of this batch shard
    def _():
        h1_s[...] = jnp.zeros_like(h1_s)
        c1_s[...] = jnp.zeros_like(c1_s)
        h2_s[...] = jnp.zeros_like(h2_s)
        c2_s[...] = jnp.zeros_like(c2_s)

    # Hoisted weight/bias loads (constant across the unrolled time loop).
    whh0 = whh0_ref[...]
    wih1 = wih1_ref[...]
    whh1 = whh1_ref[...]
    b1 = b1_ref[...]                         # (1, 4H); broadcasts in the add
    mm_dtype = whh0.dtype

    def cell(gates, c):
        # Per-gate slices (lane-aligned when H % 128 == 0): 3x sigmoid + 1x tanh
        # over H lanes each instead of full-width sigmoid+tanh+select.
        i = jax.nn.sigmoid(gates[:, 0 * H:1 * H])
        f = jax.nn.sigmoid(gates[:, 1 * H:2 * H])
        g = jnp.tanh(gates[:, 2 * H:3 * H])
        o = jax.nn.sigmoid(gates[:, 3 * H:4 * H])
        c_new = f * c + i * g
        h_new = o * jnp.tanh(c_new)
        return h_new, c_new

    # Ts is a small static tile -> fully unrolled straight-line code (LLO-visible;
    # layer-0 of step t+1 only depends on h1(t) so it overlaps layer-1 of step t).
    for t in range(Ts):
        # Layer 0: input matmul hoisted into the projection; only h1 @ Whh0 remains
        # on the sequential critical path.
        g0 = xg_ref[t] + jnp.dot(h1_s[...].astype(mm_dtype), whh0,
                                 preferred_element_type=jnp.float32)
        h1, c1 = cell(g0, c1_s[...])
        h1_s[...] = h1
        c1_s[...] = c1

        # Layer 1: two accumulating dots against resident weights (no per-step concat).
        g1 = (jnp.dot(h1.astype(mm_dtype), wih1, preferred_element_type=jnp.float32)
              + jnp.dot(h2_s[...].astype(mm_dtype), whh1,
                        preferred_element_type=jnp.float32)
              + b1)
        h2, c2 = cell(g1, c2_s[...])
        h2_s[...] = h2
        c2_s[...] = c2
        h2_ref[t] = h2.astype(h2_ref.dtype)


# ----------------------------------------------------------------------------- #
# Wrappers
# ----------------------------------------------------------------------------- #
def _choose_tile(dim, target, align):
    """Largest tile <= target that divides `dim` and is a multiple of `align`
    (or the full dim if dim <= target)."""
    if dim <= target:
        return dim
    t = (target // align) * align
    while t >= align:
        if dim % t == 0:
            return t
        t -= align
    # TODO(synk): no aligned divisor <= target -> falls back to the full dim; pad the
    # array instead if this ever triggers at production shapes.
    return dim


def _choose_time_tile(S, target=16):
    for ts in range(min(S, target), 0, -1):
        if S % ts == 0:
            return ts
    return S


def _projection(x2d, w, b):
    """Tiled  x2d @ w + b  with bf16 MXU operands (cast in-kernel) and f32 accumulation."""
    M, K = x2d.shape
    _, N = w.shape
    tm = _choose_tile(M, 512, 8)
    tn = _choose_tile(N, 512, 128)
    tk = _choose_tile(K, 512, 128)
    return pl.pallas_call(
        _proj_kernel,
        out_shape=jax.ShapeDtypeStruct((M, N), jnp.float32),
        grid_spec=pltpu.PrefetchScalarGridSpec(
            num_scalar_prefetch=0,
            grid=(M // tm, N // tn, K // tk),
            in_specs=[
                pl.BlockSpec((tm, tk), lambda i, j, k: (i, k)),
                pl.BlockSpec((tk, tn), lambda i, j, k: (k, j)),
                pl.BlockSpec((1, tn), lambda i, j, k: (0, j)),
            ],
            out_specs=pl.BlockSpec((tm, tn), lambda i, j, k: (i, j)),
            scratch_shapes=[pltpu.VMEM((tm, tn), jnp.float32)],
        ),
        compiler_params=pltpu.CompilerParams(
            dimension_semantics=("parallel", "parallel", "arbitrary"),
            vmem_limit_bytes=_VMEM_LIMIT),
    )(x2d, w, b)


def _lstm_recurrence(xg, whh0_t, wih1_t, whh1_t, b1):
    """Time-streamed 2-layer LSTM recurrence.  xg: (S, B, 4H) f32 -> (S, B, H) bf16."""
    S, B, G = xg.shape
    H = G // 4
    Ts = _choose_time_tile(S)
    # Shard batch across the two TensorCores (v7x megacore) only when each half still
    # gives dense bf16 (16-sublane) output tiles; otherwise keep a single shard.
    nb = 2 if (B % 32 == 0) else 1
    Bs = B // nb
    return pl.pallas_call(
        _lstm_recurrence_kernel,
        out_shape=jax.ShapeDtypeStruct((S, B, H), jnp.bfloat16),
        grid_spec=pltpu.PrefetchScalarGridSpec(
            num_scalar_prefetch=0,
            grid=(nb, S // Ts),
            in_specs=[
                pl.BlockSpec((Ts, Bs, G), lambda b, t: (t, b, 0)),
                pl.BlockSpec((H, G), lambda b, t: (0, 0)),      # resident weights
                pl.BlockSpec((H, G), lambda b, t: (0, 0)),
                pl.BlockSpec((H, G), lambda b, t: (0, 0)),
                pl.BlockSpec((1, G), lambda b, t: (0, 0)),
            ],
            out_specs=pl.BlockSpec((Ts, Bs, H), lambda b, t: (t, b, 0)),
            scratch_shapes=[pltpu.VMEM((Bs, H), jnp.float32) for _ in range(4)],
        ),
        compiler_params=pltpu.CompilerParams(
            dimension_semantics=("parallel", "arbitrary"),
            vmem_limit_bytes=_VMEM_LIMIT),
    )(xg, whh0_t, wih1_t, whh1_t, b1)


@jax.jit
def text_generation_forward(x, params):
    """x: (S, B, V) float32 -> (S, B, V) float32 logits (seq-first, like nn.LSTM)."""
    S, B, V = x.shape
    G = params["whh0_t"].shape[1]          # 4H
    H = G // 4
    SB = S * B

    # 1) Hoisted layer-0 input projection over all timesteps (tiled MXU matmul).
    xg = _projection(x.reshape(SB, V), params["wih0_t"], params["b0"])       # (SB,4H) f32

    # 2) Sequential recurrence, streamed over time chunks.
    h2 = _lstm_recurrence(xg.reshape(S, B, G), params["whh0_t"],
                          params["wih1_t"], params["whh1_t"], params["b1"])  # (S,B,H) bf16

    # 3) Hoisted output projection over all timesteps.
    out = _projection(h2.reshape(SB, H), params["wlin_t"], params["blin"])   # (SB,V) f32
    return out.reshape(S, B, V)


# ----------------------------------------------------------------------------- #
# Parameter construction & pure-JAX reference
# ----------------------------------------------------------------------------- #
def init_torch_params(key, vocab, hidden):
    """Synthetic f32 parameters laid out like nn.LSTM(vocab, hidden, 2) + nn.Linear."""
    ks = jax.random.split(key, 10)
    s = 0.1
    return {
        "wih0": s * jax.random.normal(ks[0], (4 * hidden, vocab), jnp.float32),
        "whh0": s * jax.random.normal(ks[1], (4 * hidden, hidden), jnp.float32),
        "bih0": s * jax.random.normal(ks[2], (4 * hidden,), jnp.float32),
        "bhh0": s * jax.random.normal(ks[3], (4 * hidden,), jnp.float32),
        "wih1": s * jax.random.normal(ks[4], (4 * hidden, hidden), jnp.float32),
        "whh1": s * jax.random.normal(ks[5], (4 * hidden, hidden), jnp.float32),
        "bih1": s * jax.random.normal(ks[6], (4 * hidden,), jnp.float32),
        "bhh1": s * jax.random.normal(ks[7], (4 * hidden,), jnp.float32),
        "wlin": s * jax.random.normal(ks[8], (vocab, hidden), jnp.float32),
        "blin": s * jax.random.normal(ks[9], (vocab,), jnp.float32),
    }


def prepare_kernel_params(p):
    """Pre-transpose weights, cast matmul operands to bf16 (MXU-native); biases and
    all in-kernel accumulation / cell state stay f32."""
    return {
        "wih0_t": p["wih0"].T.astype(jnp.bfloat16),                       # (V, 4H)
        "whh0_t": p["whh0"].T.astype(jnp.bfloat16),                       # (H, 4H)
        "b0": (p["bih0"] + p["bhh0"])[None, :].astype(jnp.float32),       # (1, 4H)
        "wih1_t": p["wih1"].T.astype(jnp.bfloat16),                       # (H, 4H)
        "whh1_t": p["whh1"].T.astype(jnp.bfloat16),                       # (H, 4H)
        "b1": (p["bih1"] + p["bhh1"])[None, :].astype(jnp.float32),       # (1, 4H)
        "wlin_t": p["wlin"].T.astype(jnp.bfloat16),                       # (H, V)
        "blin": p["blin"][None, :].astype(jnp.float32),                   # (1, V)
    }


def reference_forward(x, p):
    """Pure-JAX f32 reference matching PyTorch nn.LSTM (gate order i, f, g, o)."""
    S, B, V = x.shape
    H = p["whh0"].shape[1]

    def cell(h, c, x_in, wih, whh, bih, bhh):
        gates = x_in @ wih.T + h @ whh.T + bih + bhh
        i = jax.nn.sigmoid(gates[:, 0 * H:1 * H])
        f = jax.nn.sigmoid(gates[:, 1 * H:2 * H])
        g = jnp.tanh(gates[:, 2 * H:3 * H])
        o = jax.nn.sigmoid(gates[:, 3 * H:4 * H])
        c = f * c + i * g
        h = o * jnp.tanh(c)
        return h, c

    def step(carry, x_t):
        h1, c1, h2, c2 = carry
        h1, c1 = cell(h1, c1, x_t, p["wih0"], p["whh0"], p["bih0"], p["bhh0"])
        h2, c2 = cell(h2, c2, h1, p["wih1"], p["whh1"], p["bih1"], p["bhh1"])
        out = h2 @ p["wlin"].T + p["blin"]
        return (h1, c1, h2, c2), out

    z = jnp.zeros((B, H), jnp.float32)
    _, outs = jax.lax.scan(step, (z, z, z, z), x)
    return outs


if __name__ == "__main__":
    # Small shapes: seq=8, batch=2, vocab=16, hidden=32, 2 LSTM layers.
    S, B, V, H = 8, 2, 16, 32
    key = jax.random.PRNGKey(0)
    kx, kp = jax.random.split(key)
    x = jax.random.normal(kx, (S, B, V), jnp.float32)
    torch_params = init_torch_params(kp, V, H)
    params = prepare_kernel_params(torch_params)

    out = text_generation_forward(x, params)
    out = jax.block_until_ready(out)

    ref = reference_forward(x, torch_params)
    assert out.shape == (S, B, V)
    # bf16 matmul operands / bf16 h2 storage vs a pure-f32 reference -> loose tolerance.
    assert jnp.allclose(out, ref, atol=5e-2, rtol=5e-2), "mismatch vs pure-JAX reference"

    print("KERNEL_OK")
</pallas_src>

<mosaic_0001>
module attributes {stable_mosaic.version = 11 : i64} {
  func.func @_proj_kernel(%arg0: i32, %arg1: i32, %arg2: i32, %arg3: memref<16x16xf32, #tpu.memory_space<vmem>>, %arg4: memref<16x128xbf16, #tpu.memory_space<vmem>>, %arg5: memref<1x128xf32, #tpu.memory_space<vmem>>, %arg6: memref<16x128xf32, #tpu.memory_space<vmem>>, %arg7: memref<16x128xf32, #tpu.memory_space<vmem>>) attributes {dimension_semantics = [#tpu.dimension_semantics<parallel>, #tpu.dimension_semantics<parallel>, #tpu.dimension_semantics<arbitrary>], iteration_bounds = array<i64: 1, 1, 1>, scalar_prefetch = 0 : i64, scratch_operands = 1 : i64, tpu.core_type = #tpu.core_type<tc>, window_params = [{transform_indices = @transform_0, window_bounds = array<i64: 16, 16>}, {transform_indices = @transform_1, window_bounds = array<i64: 16, 128>}, {transform_indices = @transform_2, window_bounds = array<i64: 1, 128>}, {transform_indices = @transform_3, window_bounds = array<i64: 16, 128>}]} {
    %c0_i32 = arith.constant 0 : i32
    %0 = arith.cmpi eq, %arg2, %c0_i32 : i32
    %1 = arith.extui %0 : i1 to i32
    %c0_i32_0 = arith.constant 0 : i32
    %2 = arith.cmpi ne, %1, %c0_i32_0 : i32
    scf.if %2 {
      %cst_10 = arith.constant 0.000000e+00 : f32
      %13 = vector.broadcast %cst_10 : f32 to vector<16x128xf32>
      %c0_11 = arith.constant 0 : index
      %c0_12 = arith.constant 0 : index
      %14 = vector.load %arg7[%c0_11, %c0_12] : memref<16x128xf32, #tpu.memory_space<vmem>>, vector<16x128xf32>
      tpu.vector_store %arg7[%c0_11, %c0_12], %13 {strides = array<i32>} : memref<16x128xf32, #tpu.memory_space<vmem>>, vector<16x128xf32>,
    } else {
    }
    %c0 = arith.constant 0 : index
    %c0_1 = arith.constant 0 : index
    %3 = vector.load %arg7[%c0, %c0_1] : memref<16x128xf32, #tpu.memory_space<vmem>>, vector<16x128xf32>
    %c0_2 = arith.constant 0 : index
    %c0_3 = arith.constant 0 : index
    %4 = vector.load %arg3[%c0_2, %c0_3] : memref<16x16xf32, #tpu.memory_space<vmem>>, vector<16x16xf32>
    %5 = arith.truncf %4 : vector<16x16xf32> to vector<16x16xbf16>
    %c0_4 = arith.constant 0 : index
    %c0_5 = arith.constant 0 : index
    %6 = vector.load %arg4[%c0_4, %c0_5] : memref<16x128xbf16, #tpu.memory_space<vmem>>, vector<16x128xbf16>
    %cst = arith.constant dense<0.000000e+00> : vector<16x128xf32>
    %7 = tpu.matmul %5, %6, %cst {dimension_numbers = #tpu.dot_dimension_numbers<[1], [0], [0], [1], [0, 0, 1, 1], [], []>} : vector<16x16xbf16>, vector<16x128xbf16>, vector<16x128xf32> -> vector<16x128xf32>
    %8 = arith.addf %3, %7 : vector<16x128xf32>
    %c0_6 = arith.constant 0 : index
    %c0_7 = arith.constant 0 : index
    %9 = vector.load %arg7[%c0_6, %c0_7] : memref<16x128xf32, #tpu.memory_space<vmem>>, vector<16x128xf32>
    tpu.vector_store %arg7[%c0_6, %c0_7], %8 {strides = array<i32>} : memref<16x128xf32, #tpu.memory_space<vmem>>, vector<16x128xf32>,
    %c0_i32_8 = arith.constant 0 : i32
    %10 = arith.cmpi eq, %arg2, %c0_i32_8 : i32
    %11 = arith.extui %10 : i1 to i32
    %c0_i32_9 = arith.constant 0 : i32
    %12 = arith.cmpi ne, %11, %c0_i32_9 : i32
    scf.if %12 {
      %c0_10 = arith.constant 0 : index
      %c0_11 = arith.constant 0 : index
      %13 = vector.load %arg7[%c0_10, %c0_11] : memref<16x128xf32, #tpu.memory_space<vmem>>, vector<16x128xf32>
      %c0_12 = arith.constant 0 : index
      %c0_13 = arith.constant 0 : index
      %14 = vector.load %arg5[%c0_12, %c0_13] : memref<1x128xf32, #tpu.memory_space<vmem>>, vector<1x128xf32>
      %15 = vector.broadcast %14 : vector<1x128xf32> to vector<16x128xf32>
      %16 = arith.addf %13, %15 : vector<16x128xf32>
      %c0_14 = arith.constant 0 : index
      %c0_15 = arith.constant 0 : index
      %17 = vector.load %arg6[%c0_14, %c0_15] : memref<16x128xf32, #tpu.memory_space<vmem>>, vector<16x128xf32>
      tpu.vector_store %arg6[%c0_14, %c0_15], %16 {strides = array<i32>} : memref<16x128xf32, #tpu.memory_space<vmem>>, vector<16x128xf32>,
    } else {
    }
    return
  }
  func.func @transform_0(%arg0: i32, %arg1: i32, %arg2: i32) -> (i32, i32) {
    %c0_i32 = arith.constant 0 : i32
    return %arg0, %arg2 : i32, i32
  }
  func.func @transform_1(%arg0: i32, %arg1: i32, %arg2: i32) -> (i32, i32) {
    %c0_i32 = arith.constant 0 : i32
    return %arg2, %arg1 : i32, i32
  }
  func.func @transform_2(%arg0: i32, %arg1: i32, %arg2: i32) -> (i32, i32) {
    %c0_i32 = arith.constant 0 : i32
    %c0_i32_0 = arith.constant 0 : i32
    return %c0_i32, %arg1 : i32, i32
  }
  func.func @transform_3(%arg0: i32, %arg1: i32, %arg2: i32) -> (i32, i32) {
    %c0_i32 = arith.constant 0 : i32
    return %arg0, %arg1 : i32, i32
  }
}

module attributes {stable_mosaic.version = 11 : i64} {
  func.func @_proj_kernel(%arg0: i32, %arg1: i32, %arg2: i32, %arg3: memref<16x32xbf16, #tpu.memory_space<vmem>>, %arg4: memref<32x16xbf16, #tpu.memory_space<vmem>>, %arg5: memref<1x16xf32, #tpu.memory_space<vmem>>, %arg6: memref<16x16xf32, #tpu.memory_space<vmem>>, %arg7: memref<16x16xf32, #tpu.memory_space<vmem>>) attributes {dimension_semantics = [#tpu.dimension_semantics<parallel>, #tpu.dimension_semantics<parallel>, #tpu.dimension_semantics<arbitrary>], iteration_bounds = array<i64: 1, 1, 1>, scalar_prefetch = 0 : i64, scratch_operands = 1 : i64, tpu.core_type = #tpu.core_type<tc>, window_params = [{transform_indices = @transform_0, window_bounds = array<i64: 16, 32>}, {transform_indices = @transform_1, window_bounds = array<i64: 32, 16>}, {transform_indices = @transform_2, window_bounds = array<i64: 1, 16>}, {transform_indices = @transform_3, window_bounds = array<i64: 16, 16>}]} {
    %c0_i32 = arith.constant 0 : i32
    %0 = arith.cmpi eq, %arg2, %c0_i32 : i32
    %1 = arith.extui %0 : i1 to i32
    %c0_i32_0 = arith.constant 0 : i32
    %2 = arith.cmpi ne, %1, %c0_i32_0 : i32
    scf.if %2 {
      %cst_10 = arith.constant 0.000000e+00 : f32
      %12 = vector.broadcast %cst_10 : f32 to vector<16x16xf32>
      %c0_11 = arith.constant 0 : index
      %c0_12 = arith.constant 0 : index
      %13 = vector.load %arg7[%c0_11, %c0_12] : memref<16x16xf32, #tpu.memory_space<vmem>>, vector<16x16xf32>
      tpu.vector_store %arg7[%c0_11, %c0_12], %12 {strides = array<i32>} : memref<16x16xf32, #tpu.memory_space<vmem>>, vector<16x16xf32>,
    } else {
    }
    %c0 = arith.constant 0 : index
    %c0_1 = arith.constant 0 : index
    %3 = vector.load %arg7[%c0, %c0_1] : memref<16x16xf32, #tpu.memory_space<vmem>>, vector<16x16xf32>
    %c0_2 = arith.constant 0 : index
    %c0_3 = arith.constant 0 : index
    %4 = vector.load %arg3[%c0_2, %c0_3] : memref<16x32xbf16, #tpu.memory_space<vmem>>, vector<16x32xbf16>
    %c0_4 = arith.constant 0 : index
    %c0_5 = arith.constant 0 : index
    %5 = vector.load %arg4[%c0_4, %c0_5] : memref<32x16xbf16, #tpu.memory_space<vmem>>, vector<32x16xbf16>
    %cst = arith.constant dense<0.000000e+00> : vector<16x16xf32>
    %6 = tpu.matmul %4, %5, %cst {dimension_numbers = #tpu.dot_dimension_numbers<[1], [0], [0], [1], [0, 0, 1, 1], [], []>} : vector<16x32xbf16>, vector<32x16xbf16>, vector<16x16xf32> -> vector<16x16xf32>
    %7 = arith.addf %3, %6 : vector<16x16xf32>
    %c0_6 = arith.constant 0 : index
    %c0_7 = arith.constant 0 : index
    %8 = vector.load %arg7[%c0_6, %c0_7] : memref<16x16xf32, #tpu.memory_space<vmem>>, vector<16x16xf32>
    tpu.vector_store %arg7[%c0_6, %c0_7], %7 {strides = array<i32>} : memref<16x16xf32, #tpu.memory_space<vmem>>, vector<16x16xf32>,
    %c0_i32_8 = arith.constant 0 : i32
    %9 = arith.cmpi eq, %arg2, %c0_i32_8 : i32
    %10 = arith.extui %9 : i1 to i32
    %c0_i32_9 = arith.constant 0 : i32
    %11 = arith.cmpi ne, %10, %c0_i32_9 : i32
    scf.if %11 {
      %c0_10 = arith.constant 0 : index
      %c0_11 = arith.constant 0 : index
      %12 = vector.load %arg7[%c0_10, %c0_11] : memref<16x16xf32, #tpu.memory_space<vmem>>, vector<16x16xf32>
      %c0_12 = arith.constant 0 : index
      %c0_13 = arith.constant 0 : index
      %13 = vector.load %arg5[%c0_12, %c0_13] : memref<1x16xf32, #tpu.memory_space<vmem>>, vector<1x16xf32>
      %14 = vector.broadcast %13 : vector<1x16xf32> to vector<16x16xf32>
      %15 = arith.addf %12, %14 : vector<16x16xf32>
      %c0_14 = arith.constant 0 : index
      %c0_15 = arith.constant 0 : index
      %16 = vector.load %arg6[%c0_14, %c0_15] : memref<16x16xf32, #tpu.memory_space<vmem>>, vector<16x16xf32>
      tpu.vector_store %arg6[%c0_14, %c0_15], %15 {strides = array<i32>} : memref<16x16xf32, #tpu.memory_space<vmem>>, vector<16x16xf32>,
    } else {
    }
    return
  }
  func.func @transform_0(%arg0: i32, %arg1: i32, %arg2: i32) -> (i32, i32) {
    %c0_i32 = arith.constant 0 : i32
    return %arg0, %arg2 : i32, i32
  }
  func.func @transform_1(%arg0: i32, %arg1: i32, %arg2: i32) -> (i32, i32) {
    %c0_i32 = arith.constant 0 : i32
    return %arg2, %arg1 : i32, i32
  }
  func.func @transform_2(%arg0: i32, %arg1: i32, %arg2: i32) -> (i32, i32) {
    %c0_i32 = arith.constant 0 : i32
    %c0_i32_0 = arith.constant 0 : i32
    return %c0_i32, %arg1 : i32, i32
  }
  func.func @transform_3(%arg0: i32, %arg1: i32, %arg2: i32) -> (i32, i32) {
    %c0_i32 = arith.constant 0 : i32
    return %arg0, %arg1 : i32, i32
  }
}

module attributes {stable_mosaic.version = 11 : i64} {
  func.func @_lstm_recurrence_kernel(%arg0: i32, %arg1: i32, %arg2: memref<8x2x128xf32, #tpu.memory_space<vmem>>, %arg3: memref<32x128xbf16, #tpu.memory_space<vmem>>, %arg4: memref<32x128xbf16, #tpu.memory_space<vmem>>, %arg5: memref<32x128xbf16, #tpu.memory_space<vmem>>, %arg6: memref<1x128xf32, #tpu.memory_space<vmem>>, %arg7: memref<8x2x32xbf16, #tpu.memory_space<vmem>>, %arg8: memref<2x32xf32, #tpu.memory_space<vmem>>, %arg9: memref<2x32xf32, #tpu.memory_space<vmem>>, %arg10: memref<2x32xf32, #tpu.memory_space<vmem>>, %arg11: memref<2x32xf32, #tpu.memory_space<vmem>>) attributes {dimension_semantics = [#tpu.dimension_semantics<parallel>, #tpu.dimension_semantics<arbitrary>], iteration_bounds = array<i64: 1, 1>, scalar_prefetch = 0 : i64, scratch_operands = 4 : i64, tpu.core_type = #tpu.core_type<tc>, window_params = [{transform_indices = @transform_0, window_bounds = array<i64: 8, 2, 128>}, {pipeline_mode = #tpu.pipeline_mode<synchronous>, transform_indices = @transform_1, window_bounds = array<i64: 32, 128>}, {pipeline_mode = #tpu.pipeline_mode<synchronous>, transform_indices = @transform_2, window_bounds = array<i64: 32, 128>}, {pipeline_mode = #tpu.pipeline_mode<synchronous>, transform_indices = @transform_3, window_bounds = array<i64: 32, 128>}, {pipeline_mode = #tpu.pipeline_mode<synchronous>, transform_indices = @transform_4, window_bounds = array<i64: 1, 128>}, {transform_indices = @transform_5, window_bounds = array<i64: 8, 2, 32>}]} {
    %c0_i32 = arith.constant 0 : i32
    %0 = arith.cmpi eq, %arg1, %c0_i32 : i32
    %1 = arith.extui %0 : i1 to i32
    %c0_i32_0 = arith.constant 0 : i32
    %2 = arith.cmpi ne, %1, %c0_i32_0 : i32
    scf.if %2 {
      %cst_248 = arith.constant 0.000000e+00 : f32
      %599 = vector.broadcast %cst_248 : f32 to vector<2x32xf32>
      %c0_249 = arith.constant 0 : index
      %c0_250 = arith.constant 0 : index
      %600 = vector.load %arg8[%c0_249, %c0_250] : memref<2x32xf32, #tpu.memory_space<vmem>>, vector<2x32xf32>
      tpu.vector_store %arg8[%c0_249, %c0_250], %599 {strides = array<i32>} : memref<2x32xf32, #tpu.memory_space<vmem>>, vector<2x32xf32>,
      %cst_251 = arith.constant 0.000000e+00 : f32
      %601 = vector.broadcast %cst_251 : f32 to vector<2x32xf32>
      %c0_252 = arith.constant 0 : index
      %c0_253 = arith.constant 0 : index
      %602 = vector.load %arg9[%c0_252, %c0_253] : memref<2x32xf32, #tpu.memory_space<vmem>>, vector<2x32xf32>
      tpu.vector_store %arg9[%c0_252, %c0_253], %601 {strides = array<i32>} : memref<2x32xf32, #tpu.memory_space<vmem>>, vector<2x32xf32>,
      %cst_254 = arith.constant 0.000000e+00 : f32
      %603 = vector.broadcast %cst_254 : f32 to vector<2x32xf32>
      %c0_255 = arith.constant 0 : index
      %c0_256 = arith.constant 0 : index
      %604 = vector.load %arg10[%c0_255, %c0_256] : memref<2x32xf32, #tpu.memory_space<vmem>>, vector<2x32xf32>
      tpu.vector_store %arg10[%c0_255, %c0_256], %603 {strides = array<i32>} : memref<2x32xf32, #tpu.memory_space<vmem>>, vector<2x32xf32>,
      %cst_257 = arith.constant 0.000000e+00 : f32
      %605 = vector.broadcast %cst_257 : f32 to vector<2x32xf32>
      %c0_258 = arith.constant 0 : index
      %c0_259 = arith.constant 0 : index
      %606 = vector.load %arg11[%c0_258, %c0_259] : memref<2x32xf32, #tpu.memory_space<vmem>>, vector<2x32xf32>
      tpu.vector_store %arg11[%c0_258, %c0_259], %605 {strides = array<i32>} : memref<2x32xf32, #tpu.memory_space<vmem>>, vector<2x32xf32>,
    } else {
    }
    %c0 = arith.constant 0 : index
    %c0_1 = arith.constant 0 : index
    %3 = vector.load %arg3[%c0, %c0_1] : memref<32x128xbf16, #tpu.memory_space<vmem>>, vector<32x128xbf16>
    %c0_2 = arith.constant 0 : index
    %c0_3 = arith.constant 0 : index
    %4 = vector.load %arg4[%c0_2, %c0_3] : memref<32x128xbf16, #tpu.memory_space<vmem>>, vector<32x128xbf16>
    %c0_4 = arith.constant 0 : index
    %c0_5 = arith.constant 0 : index
    %5 = vector.load %arg5[%c0_4, %c0_5] : memref<32x128xbf16, #tpu.memory_space<vmem>>, vector<32x128xbf16>
    %c0_6 = arith.constant 0 : index
    %c0_7 = arith.constant 0 : index
    %6 = vector.load %arg6[%c0_6, %c0_7] : memref<1x128xf32, #tpu.memory_space<vmem>>, vector<1x128xf32>
    %c0_8 = arith.constant 0 : index
    %c0_9 = arith.constant 0 : index
    %c0_10 = arith.constant 0 : index
    %7 = vector.load %arg2[%c0_8, %c0_9, %c0_10] : memref<8x2x128xf32, #tpu.memory_space<vmem>>, vector<1x2x128xf32>
    %8 = vector.shape_cast %7 : vector<1x2x128xf32> to vector<2x128xf32>
    %c0_11 = arith.constant 0 : index
    %c0_12 = arith.constant 0 : index
    %9 = vector.load %arg8[%c0_11, %c0_12] : memref<2x32xf32, #tpu.memory_space<vmem>>, vector<2x32xf32>
    %10 = arith.truncf %9 : vector<2x32xf32> to vector<2x32xbf16>
    %cst = arith.constant dense<0.000000e+00> : vector<2x128xf32>
    %11 = tpu.matmul %10, %3, %cst {dimension_numbers = #tpu.dot_dimension_numbers<[1], [0], [0], [1], [0, 0, 1, 1], [], []>} : vector<2x32xbf16>, vector<32x128xbf16>, vector<2x128xf32> -> vector<2x128xf32>
    %12 = arith.addf %8, %11 : vector<2x128xf32>
    %c0_13 = arith.constant 0 : index
    %c0_14 = arith.constant 0 : index
    %13 = vector.load %arg9[%c0_13, %c0_14] : memref<2x32xf32, #tpu.memory_space<vmem>>, vector<2x32xf32>
    %14 = vector.extract_strided_slice %12 {offsets = [0, 0], sizes = [2, 32], strides = [1, 1]} : vector<2x128xf32> to vector<2x32xf32>
    %15 = arith.negf %14 : vector<2x32xf32>
    %16 = math.exp %15 : vector<2x32xf32>
    %cst_15 = arith.constant 1.000000e+00 : f32
    %17 = vector.broadcast %cst_15 : f32 to vector<2x32xf32>
    %18 = arith.addf %17, %16 : vector<2x32xf32>
    %19 = arith.divf %17, %18 : vector<2x32xf32>
    %20 = vector.extract_strided_slice %12 {offsets = [0, 32], sizes = [2, 32], strides = [1, 1]} : vector<2x128xf32> to vector<2x32xf32>
    %21 = arith.negf %20 : vector<2x32xf32>
    %22 = math.exp %21 : vector<2x32xf32>
    %cst_16 = arith.constant 1.000000e+00 : f32
    %23 = vector.broadcast %cst_16 : f32 to vector<2x32xf32>
    %24 = arith.addf %23, %22 : vector<2x32xf32>
    %25 = arith.divf %23, %24 : vector<2x32xf32>
    %26 = vector.extract_strided_slice %12 {offsets = [0, 64], sizes = [2, 32], strides = [1, 1]} : vector<2x128xf32> to vector<2x32xf32>
    %27 = math.tanh %26 : vector<2x32xf32>
    %28 = vector.extract_strided_slice %12 {offsets = [0, 96], sizes = [2, 32], strides = [1, 1]} : vector<2x128xf32> to vector<2x32xf32>
    %29 = arith.negf %28 : vector<2x32xf32>
    %30 = math.exp %29 : vector<2x32xf32>
    %cst_17 = arith.constant 1.000000e+00 : f32
    %31 = vector.broadcast %cst_17 : f32 to vector<2x32xf32>
    %32 = arith.addf %31, %30 : vector<2x32xf32>
    %33 = arith.divf %31, %32 : vector<2x32xf32>
    %34 = arith.mulf %25, %13 : vector<2x32xf32>
    %35 = arith.mulf %19, %27 : vector<2x32xf32>
    %36 = arith.addf %34, %35 : vector<2x32xf32>
    %37 = math.tanh %36 : vector<2x32xf32>
    %38 = arith.mulf %33, %37 : vector<2x32xf32>
    %c0_18 = arith.constant 0 : index
    %c0_19 = arith.constant 0 : index
    %39 = vector.load %arg8[%c0_18, %c0_19] : memref<2x32xf32, #tpu.memory_space<vmem>>, vector<2x32xf32>
    tpu.vector_store %arg8[%c0_18, %c0_19], %38 {strides = array<i32>} : memref<2x32xf32, #tpu.memory_space<vmem>>, vector<2x32xf32>,
    %c0_20 = arith.constant 0 : index
    %c0_21 = arith.constant 0 : index
    %40 = vector.load %arg9[%c0_20, %c0_21] : memref<2x32xf32, #tpu.memory_space<vmem>>, vector<2x32xf32>
    tpu.vector_store %arg9[%c0_20, %c0_21], %36 {strides = array<i32>} : memref<2x32xf32, #tpu.memory_space<vmem>>, vector<2x32xf32>,
    %41 = arith.truncf %38 : vector<2x32xf32> to vector<2x32xbf16>
    %cst_22 = arith.constant dense<0.000000e+00> : vector<2x128xf32>
    %42 = tpu.matmul %41, %4, %cst_22 {dimension_numbers = #tpu.dot_dimension_numbers<[1], [0], [0], [1], [0, 0, 1, 1], [], []>} : vector<2x32xbf16>, vector<32x128xbf16>, vector<2x128xf32> -> vector<2x128xf32>
    %c0_23 = arith.constant 0 : index
    %c0_24 = arith.constant 0 : index
    %43 = vector.load %arg10[%c0_23, %c0_24] : memref<2x32xf32, #tpu.memory_space<vmem>>, vector<2x32xf32>
    %44 = arith.truncf %43 : vector<2x32xf32> to vector<2x32xbf16>
    %cst_25 = arith.constant dense<0.000000e+00> : vector<2x128xf32>
    %45 = tpu.matmul %44, %5, %cst_25 {dimension_numbers = #tpu.dot_dimension_numbers<[1], [0], [0], [1], [0, 0, 1, 1], [], []>} : vector<2x32xbf16>, vector<32x128xbf16>, vector<2x128xf32> -> vector<2x128xf32>
    %46 = arith.addf %42, %45 : vector<2x128xf32>
    %47 = vector.broadcast %6 : vector<1x128xf32> to vector<2x128xf32>
    %48 = arith.addf %46, %47 : vector<2x128xf32>
    %c0_26 = arith.constant 0 : index
    %c0_27 = arith.constant 0 : index
    %49 = vector.load %arg11[%c0_26, %c0_27] : memref<2x32xf32, #tpu.memory_space<vmem>>, vector<2x32xf32>
    %50 = vector.extract_strided_slice %48 {offsets = [0, 0], sizes = [2, 32], strides = [1, 1]} : vector<2x128xf32> to vector<2x32xf32>
    %51 = arith.negf %50 : vector<2x32xf32>
    %52 = math.exp %51 : vector<2x32xf32>
    %cst_28 = arith.constant 1.000000e+00 : f32
    %53 = vector.broadcast %cst_28 : f32 to vector<2x32xf32>
    %54 = arith.addf %53, %52 : vector<2x32xf32>
    %55 = arith.divf %53, %54 : vector<2x32xf32>
    %56 = vector.extract_strided_slice %48 {offsets = [0, 32], sizes = [2, 32], strides = [1, 1]} : vector<2x128xf32> to vector<2x32xf32>
    %57 = arith.negf %56 : vector<2x32xf32>
    %58 = math.exp %57 : vector<2x32xf32>
    %cst_29 = arith.constant 1.000000e+00 : f32
    %59 = vector.broadcast %cst_29 : f32 to vector<2x32xf32>
    %60 = arith.addf %59, %58 : vector<2x32xf32>
    %61 = arith.divf %59, %60 : vector<2x32xf32>
    %62 = vector.extract_strided_slice %48 {offsets = [0, 64], sizes = [2, 32], strides = [1, 1]} : vector<2x128xf32> to vector<2x32xf32>
    %63 = math.tanh %62 : vector<2x32xf32>
    %64 = vector.extract_strided_slice %48 {offsets = [0, 96], sizes = [2, 32], strides = [1, 1]} : vector<2x128xf32> to vector<2x32xf32>
    %65 = arith.negf %64 : vector<2x32xf32>
    %66 = math.exp %65 : vector<2x32xf32>
    %cst_30 = arith.constant 1.000000e+00 : f32
    %67 = vector.broadcast %cst_30 : f32 to vector<2x32xf32>
    %68 = arith.addf %67, %66 : vector<2x32xf32>
    %69 = arith.divf %67, %68 : vector<2x32xf32>
    %70 = arith.mulf %61, %49 : vector<2x32xf32>
    %71 = arith.mulf %55, %63 : vector<2x32xf32>
    %72 = arith.addf %70, %71 : vector<2x32xf32>
    %73 = math.tanh %72 : vector<2x32xf32>
    %74 = arith.mulf %69, %73 : vector<2x32xf32>
    %c0_31 = arith.constant 0 : index
    %c0_32 = arith.constant 0 : index
    %75 = vector.load %arg10[%c0_31, %c0_32] : memref<2x32xf32, #tpu.memory_space<vmem>>, vector<2x32xf32>
    tpu.vector_store %arg10[%c0_31, %c0_32], %74 {strides = array<i32>} : memref<2x32xf32, #tpu.memory_space<vmem>>, vector<2x32xf32>,
    %c0_33 = arith.constant 0 : index
    %c0_34 = arith.constant 0 : index
    %76 = vector.load %arg11[%c0_33, %c0_34] : memref<2x32xf32, #tpu.memory_space<vmem>>, vector<2x32xf32>
    tpu.vector_store %arg11[%c0_33, %c0_34], %72 {strides = array<i32>} : memref<2x32xf32, #tpu.memory_space<vmem>>, vector<2x32xf32>,
    %77 = arith.truncf %74 : vector<2x32xf32> to vector<2x32xbf16>
    %c0_35 = arith.constant 0 : index
    %c0_36 = arith.constant 0 : index
    %c0_37 = arith.constant 0 : index
    %78 = vector.load %arg7[%c0_35, %c0_36, %c0_37] : memref<8x2x32xbf16, #tpu.memory_space<vmem>>, vector<1x2x32xbf16>
    %79 = vector.shape_cast %78 : vector<1x2x32xbf16> to vector<2x32xbf16>
    %80 = vector.shape_cast %77 : vector<2x32xbf16> to vector<1x2x32xbf16>
    tpu.vector_store %arg7[%c0_35, %c0_36, %c0_37], %80 {strides = array<i32>} : memref<8x2x32xbf16, #tpu.memory_space<vmem>>, vector<1x2x32xbf16>,
    %c1 = arith.constant 1 : index
    %c0_38 = arith.constant 0 : index
    %c0_39 = arith.constant 0 : index
    %81 = vector.load %arg2[%c1, %c0_38, %c0_39] : memref<8x2x128xf32, #tpu.memory_space<vmem>>, vector<1x2x128xf32>
    %82 = vector.shape_cast %81 : vector<1x2x128xf32> to vector<2x128xf32>
    %c0_40 = arith.constant 0 : index
    %c0_41 = arith.constant 0 : index
    %83 = vector.load %arg8[%c0_40, %c0_41] : memref<2x32xf32, #tpu.memory_space<vmem>>, vector<2x32xf32>
    %84 = arith.truncf %83 : vector<2x32xf32> to vector<2x32xbf16>
    %cst_42 = arith.constant dense<0.000000e+00> : vector<2x128xf32>
    %85 = tpu.matmul %84, %3, %cst_42 {dimension_numbers = #tpu.dot_dimension_numbers<[1], [0], [0], [1], [0, 0, 1, 1], [], []>} : vector<2x32xbf16>, vector<32x128xbf16>, vector<2x128xf32> -> vector<2x128xf32>
    %86 = arith.addf %82, %85 : vector<2x128xf32>
    %c0_43 = arith.constant 0 : index
    %c0_44 = arith.constant 0 : index
    %87 = vector.load %arg9[%c0_43, %c0_44] : memref<2x32xf32, #tpu.memory_space<vmem>>, vector<2x32xf32>
    %88 = vector.extract_strided_slice %86 {offsets = [0, 0], sizes = [2, 32], strides = [1, 1]} : vector<2x128xf32> to vector<2x32xf32>
    %89 = arith.negf %88 : vector<2x32xf32>
    %90 = math.exp %89 : vector<2x32xf32>
    %cst_45 = arith.constant 1.000000e+00 : f32
    %91 = vector.broadcast %cst_45 : f32 to vector<2x32xf32>
    %92 = arith.addf %91, %90 : vector<2x32xf32>
    %93 = arith.divf %91, %92 : vector<2x32xf32>
    %94 = vector.extract_strided_slice %86 {offsets = [0, 32], sizes = [2, 32], strides = [1, 1]} : vector<2x128xf32> to vector<2x32xf32>
    %95 = arith.negf %94 : vector<2x32xf32>
    %96 = math.exp %95 : vector<2x32xf32>
    %cst_46 = arith.constant 1.000000e+00 : f32
    %97 = vector.broadcast %cst_46 : f32 to vector<2x32xf32>
    %98 = arith.addf %97, %96 : vector<2x32xf32>
    %99 = arith.divf %97, %98 : vector<2x32xf32>
    %100 = vector.extract_strided_slice %86 {offsets = [0, 64], sizes = [2, 32], strides = [1, 1]} : vector<2x128xf32> to vector<2x32xf32>
    %101 = math.tanh %100 : vector<2x32xf32>
    %102 = vector.extract_strided_slice %86 {offsets = [0, 96], sizes = [2, 32], strides = [1, 1]} : vector<2x128xf32> to vector<2x32xf32>
    %103 = arith.negf %102 : vector<2x32xf32>
    %104 = math.exp %103 : vector<2x32xf32>
    %cst_47 = arith.constant 1.000000e+00 : f32
    %105 = vector.broadcast %cst_47 : f32 to vector<2x32xf32>
    %106 = arith.addf %105, %104 : vector<2x32xf32>
    %107 = arith.divf %105, %106 : vector<2x32xf32>
    %108 = arith.mulf %99, %87 : vector<2x32xf32>
    %109 = arith.mulf %93, %101 : vector<2x32xf32>
    %110 = arith.addf %108, %109 : vector<2x32xf32>
    %111 = math.tanh %110 : vector<2x32xf32>
    %112 = arith.mulf %107, %111 : vector<2x32xf32>
    %c0_48 = arith.constant 0 : index
    %c0_49 = arith.constant 0 : index
    %113 = vector.load %arg8[%c0_48, %c0_49] : memref<2x32xf32, #tpu.memory_space<vmem>>, vector<2x32xf32>
    tpu.vector_store %arg8[%c0_48, %c0_49], %112 {strides = array<i32>} : memref<2x32xf32, #tpu.memory_space<vmem>>, vector<2x32xf32>,
    %c0_50 = arith.constant 0 : index
    %c0_51 = arith.constant 0 : index
    %114 = vector.load %arg9[%c0_50, %c0_51] : memref<2x32xf32, #tpu.memory_space<vmem>>, vector<2x32xf32>
    tpu.vector_store %arg9[%c0_50, %c0_51], %110 {strides = array<i32>} : memref<2x32xf32, #tpu.memory_space<vmem>>, vector<2x32xf32>,
    %115 = arith.truncf %112 : vector<2x32xf32> to vector<2x32xbf16>
    %cst_52 = arith.constant dense<0.000000e+00> : vector<2x128xf32>
    %116 = tpu.matmul %115, %4, %cst_52 {dimension_numbers = #tpu.dot_dimension_numbers<[1], [0], [0], [1], [0, 0, 1, 1], [], []>} : vector<2x32xbf16>, vector<32x128xbf16>, vector<2x128xf32> -> vector<2x128xf32>
    %c0_53 = arith.constant 0 : index
    %c0_54 = arith.constant 0 : index
    %117 = vector.load %arg10[%c0_53, %c0_54] : memref<2x32xf32, #tpu.memory_space<vmem>>, vector<2x32xf32>
    %118 = arith.truncf %117 : vector<2x32xf32> to vector<2x32xbf16>
    %cst_55 = arith.constant dense<0.000000e+00> : vector<2x128xf32>
    %119 = tpu.matmul %118, %5, %cst_55 {dimension_numbers = #tpu.dot_dimension_numbers<[1], [0], [0], [1], [0, 0, 1, 1], [], []>} : vector<2x32xbf16>, vector<32x128xbf16>, vector<2x128xf32> -> vector<2x128xf32>
    %120 = arith.addf %116, %119 : vector<2x128xf32>
    %121 = vector.broadcast %6 : vector<1x128xf32> to vector<2x128xf32>
    %122 = arith.addf %120, %121 : vector<2x128xf32>
    %c0_56 = arith.constant 0 : index
    %c0_57 = arith.constant 0 : index
    %123 = vector.load %arg11[%c0_56, %c0_57] : memref<2x32xf32, #tpu.memory_space<vmem>>, vector<2x32xf32>
    %124 = vector.extract_strided_slice %122 {offsets = [0, 0], sizes = [2, 32], strides = [1, 1]} : vector<2x128xf32> to vector<2x32xf32>
    %125 = arith.negf %124 : vector<2x32xf32>
    %126 = math.exp %125 : vector<2x32xf32>
    %cst_58 = arith.constant 1.000000e+00 : f32
    %127 = vector.broadcast %cst_58 : f32 to vector<2x32xf32>
    %128 = arith.addf %127, %126 : vector<2x32xf32>
    %129 = arith.divf %127, %128 : vector<2x32xf32>
    %130 = vector.extract_strided_slice %122 {offsets = [0, 32], sizes = [2, 32], strides = [1, 1]} : vector<2x128xf32> to vector<2x32xf32>
    %131 = arith.negf %130 : vector<2x32xf32>
    %132 = math.exp %131 : vector<2x32xf32>
    %cst_59 = arith.constant 1.000000e+00 : f32
    %133 = vector.broadcast %cst_59 : f32 to vector<2x32xf32>
    %134 = arith.addf %133, %132 : vector<2x32xf32>
    %135 = arith.divf %133, %134 : vector<2x32xf32>
    %136 = vector.extract_strided_slice %122 {offsets = [0, 64], sizes = [2, 32], strides = [1, 1]} : vector<2x128xf32> to vector<2x32xf32>
    %137 = math.tanh %136 : vector<2x32xf32>
    %138 = vector.extract_strided_slice %122 {offsets = [0, 96], sizes = [2, 32], strides = [1, 1]} : vector<2x128xf32> to vector<2x32xf32>
    %139 = arith.negf %138 : vector<2x32xf32>
    %140 = math.exp %139 : vector<2x32xf32>
    %cst_60 = arith.constant 1.000000e+00 : f32
    %141 = vector.broadcast %cst_60 : f32 to vector<2x32xf32>
    %142 = arith.addf %141, %140 : vector<2x32xf32>
    %143 = arith.divf %141, %142 : vector<2x32xf32>
    %144 = arith.mulf %135, %123 : vector<2x32xf32>
    %145 = arith.mulf %129, %137 : vector<2x32xf32>
    %146 = arith.addf %144, %145 : vector<2x32xf32>
    %147 = math.tanh %146 : vector<2x32xf32>
    %148 = arith.mulf %143, %147 : vector<2x32xf32>
    %c0_61 = arith.constant 0 : index
    %c0_62 = arith.constant 0 : index
    %149 = vector.load %arg10[%c0_61, %c0_62] : memref<2x32xf32, #tpu.memory_space<vmem>>, vector<2x32xf32>
    tpu.vector_store %arg10[%c0_61, %c0_62], %148 {strides = array<i32>} : memref<2x32xf32, #tpu.memory_space<vmem>>, vector<2x32xf32>,
    %c0_63 = arith.constant 0 : index
    %c0_64 = arith.constant 0 : index
    %150 = vector.load %arg11[%c0_63, %c0_64] : memref<2x32xf32, #tpu.memory_space<vmem>>, vector<2x32xf32>
    tpu.vector_store %arg11[%c0_63, %c0_64], %146 {strides = array<i32>} : memref<2x32xf32, #tpu.memory_space<vmem>>, vector<2x32xf32>,
    %151 = arith.truncf %148 : vector<2x32xf32> to vector<2x32xbf16>
    %c1_65 = arith.constant 1 : index
    %c0_66 = arith.constant 0 : index
    %c0_67 = arith.constant 0 : index
    %152 = vector.load %arg7[%c1_65, %c0_66, %c0_67] : memref<8x2x32xbf16, #tpu.memory_space<vmem>>, vector<1x2x32xbf16>
    %153 = vector.shape_cast %152 : vector<1x2x32xbf16> to vector<2x32xbf16>
    %154 = vector.shape_cast %151 : vector<2x32xbf16> to vector<1x2x32xbf16>
    tpu.vector_store %arg7[%c1_65, %c0_66, %c0_67], %154 {strides = array<i32>} : memref<8x2x32xbf16, #tpu.memory_space<vmem>>, vector<1x2x32xbf16>,
    %c2 = arith.constant 2 : index
    %c0_68 = arith.constant 0 : index
    %c0_69 = arith.constant 0 : index
    %155 = vector.load %arg2[%c2, %c0_68, %c0_69] : memref<8x2x128xf32, #tpu.memory_space<vmem>>, vector<1x2x128xf32>
    %156 = vector.shape_cast %155 : vector<1x2x128xf32> to vector<2x128xf32>
    %c0_70 = arith.constant 0 : index
    %c0_71 = arith.constant 0 : index
    %157 = vector.load %arg8[%c0_70, %c0_71] : memref<2x32xf32, #tpu.memory_space<vmem>>, vector<2x32xf32>
    %158 = arith.truncf %157 : vector<2x32xf32> to vector<2x32xbf16>
    %cst_72 = arith.constant dense<0.000000e+00> : vector<2x128xf32>
    %159 = tpu.matmul %158, %3, %cst_72 {dimension_numbers = #tpu.dot_dimension_numbers<[1], [0], [0], [1], [0, 0, 1, 1], [], []>} : vector<2x32xbf16>, vector<32x128xbf16>, vector<2x128xf32> -> vector<2x128xf32>
    %160 = arith.addf %156, %159 : vector<2x128xf32>
    %c0_73 = arith.constant 0 : index
    %c0_74 = arith.constant 0 : index
    %161 = vector.load %arg9[%c0_73, %c0_74] : memref<2x32xf32, #tpu.memory_space<vmem>>, vector<2x32xf32>
    %162 = vector.extract_strided_slice %160 {offsets = [0, 0], sizes = [2, 32], strides = [1, 1]} : vector<2x128xf32> to vector<2x32xf32>
    %163 = arith.negf %162 : vector<2x32xf32>
    %164 = math.exp %163 : vector<2x32xf32>
    %cst_75 = arith.constant 1.000000e+00 : f32
    %165 = vector.broadcast %cst_75 : f32 to vector<2x32xf32>
    %166 = arith.addf %165, %164 : vector<2x32xf32>
    %167 = arith.divf %165, %166 : vector<2x32xf32>
    %168 = vector.extract_strided_slice %160 {offsets = [0, 32], sizes = [2, 32], strides = [1, 1]} : vector<2x128xf32> to vector<2x32xf32>
    %169 = arith.negf %168 : vector<2x32xf32>
    %170 = math.exp %169 : vector<2x32xf32>
    %cst_76 = arith.constant 1.000000e+00 : f32
    %171 = vector.broadcast %cst_76 : f32 to vector<2x32xf32>
    %172 = arith.addf %171, %170 : vector<2x32xf32>
    %173 = arith.divf %171, %172 : vector<2x32xf32>
    %174 = vector.extract_strided_slice %160 {offsets = [0, 64], sizes = [2, 32], strides = [1, 1]} : vector<2x128xf32> to vector<2x32xf32>
    %175 = math.tanh %174 : vector<2x32xf32>
    %176 = vector.extract_strided_slice %160 {offsets = [0, 96], sizes = [2, 32], strides = [1, 1]} : vector<2x128xf32> to vector<2x32xf32>
    %177 = arith.negf %176 : vector<2x32xf32>
    %178 = math.exp %177 : vector<2x32xf32>
    %cst_77 = arith.constant 1.000000e+00 : f32
    %179 = vector.broadcast %cst_77 : f32 to vector<2x32xf32>
    %180 = arith.addf %179, %178 : vector<2x32xf32>
    %181 = arith.divf %179, %180 : vector<2x32xf32>
    %182 = arith.mulf %173, %161 : vector<2x32xf32>
    %183 = arith.mulf %167, %175 : vector<2x32xf32>
    %184 = arith.addf %182, %183 : vector<2x32xf32>
    %185 = math.tanh %184 : vector<2x32xf32>
    %186 = arith.mulf %181, %185 : vector<2x32xf32>
    %c0_78 = arith.constant 0 : index
    %c0_79 = arith.constant 0 : index
    %187 = vector.load %arg8[%c0_78, %c0_79] : memref<2x32xf32, #tpu.memory_space<vmem>>, vector<2x32xf32>
    tpu.vector_store %arg8[%c0_78, %c0_79], %186 {strides = array<i32>} : memref<2x32xf32, #tpu.memory_space<vmem>>, vector<2x32xf32>,
    %c0_80 = arith.constant 0 : index
    %c0_81 = arith.constant 0 : index
    %188 = vector.load %arg9[%c0_80, %c0_81] : memref<2x32xf32, #tpu.memory_space<vmem>>, vector<2x32xf32>
    tpu.vector_store %arg9[%c0_80, %c0_81], %184 {strides = array<i32>} : memref<2x32xf32, #tpu.memory_space<vmem>>, vector<2x32xf32>,
    %189 = arith.truncf %186 : vector<2x32xf32> to vector<2x32xbf16>
    %cst_82 = arith.constant dense<0.000000e+00> : vector<2x128xf32>
    %190 = tpu.matmul %189, %4, %cst_82 {dimension_numbers = #tpu.dot_dimension_numbers<[1], [0], [0], [1], [0, 0, 1, 1], [], []>} : vector<2x32xbf16>, vector<32x128xbf16>, vector<2x128xf32> -> vector<2x128xf32>
    %c0_83 = arith.constant 0 : index
    %c0_84 = arith.constant 0 : index
    %191 = vector.load %arg10[%c0_83, %c0_84] : memref<2x32xf32, #tpu.memory_space<vmem>>, vector<2x32xf32>
    %192 = arith.truncf %191 : vector<2x32xf32> to vector<2x32xbf16>
    %cst_85 = arith.constant dense<0.000000e+00> : vector<2x128xf32>
    %193 = tpu.matmul %192, %5, %cst_85 {dimension_numbers = #tpu.dot_dimension_numbers<[1], [0], [0], [1], [0, 0, 1, 1], [], []>} : vector<2x32xbf16>, vector<32x128xbf16>, vector<2x128xf32> -> vector<2x128xf32>
    %194 = arith.addf %190, %193 : vector<2x128xf32>
    %195 = vector.broadcast %6 : vector<1x128xf32> to vector<2x128xf32>
    %196 = arith.addf %194, %195 : vector<2x128xf32>
    %c0_86 = arith.constant 0 : index
    %c0_87 = arith.constant 0 : index
    %197 = vector.load %arg11[%c0_86, %c0_87] : memref<2x32xf32, #tpu.memory_space<vmem>>, vector<2x32xf32>
    %198 = vector.extract_strided_slice %196 {offsets = [0, 0], sizes = [2, 32], strides = [1, 1]} : vector<2x128xf32> to vector<2x32xf32>
    %199 = arith.negf %198 : vector<2x32xf32>
    %200 = math.exp %199 : vector<2x32xf32>
    %cst_88 = arith.constant 1.000000e+00 : f32
    %201 = vector.broadcast %cst_88 : f32 to vector<2x32xf32>
    %202 = arith.addf %201, %200 : vector<2x32xf32>
    %203 = arith.divf %201, %202 : vector<2x32xf32>
    %204 = vector.extract_strided_slice %196 {offsets = [0, 32], sizes = [2, 32], strides = [1, 1]} : vector<2x128xf32> to vector<2x32xf32>
    %205 = arith.negf %204 : vector<2x32xf32>
    %206 = math.exp %205 : vector<2x32xf32>
    %cst_89 = arith.constant 1.000000e+00 : f32
    %207 = vector.broadcast %cst_89 : f32 to vector<2x32xf32>
    %208 = arith.addf %207, %206 : vector<2x32xf32>
    %209 = arith.divf %207, %208 : vector<2x32xf32>
    %210 = vector.extract_strided_slice %196 {offsets = [0, 64], sizes = [2, 32], strides = [1, 1]} : vector<2x128xf32> to vector<2x32xf32>
    %211 = math.tanh %210 : vector<2x32xf32>
    %212 = vector.extract_strided_slice %196 {offsets = [0, 96], sizes = [2, 32], strides = [1, 1]} : vector<2x128xf32> to vector<2x32xf32>
    %213 = arith.negf %212 : vector<2x32xf32>
    %214 = math.exp %213 : vector<2x32xf32>
    %cst_90 = arith.constant 1.000000e+00 : f32
    %215 = vector.broadcast %cst_90 : f32 to vector<2x32xf32>
    %216 = arith.addf %215, %214 : vector<2x32xf32>
    %217 = arith.divf %215, %216 : vector<2x32xf32>
    %218 = arith.mulf %209, %197 : vector<2x32xf32>
    %219 = arith.mulf %203, %211 : vector<2x32xf32>
    %220 = arith.addf %218, %219 : vector<2x32xf32>
    %221 = math.tanh %220 : vector<2x32xf32>
    %222 = arith.mulf %217, %221 : vector<2x32xf32>
    %c0_91 = arith.constant 0 : index
    %c0_92 = arith.constant 0 : index
    %223 = vector.load %arg10[%c0_91, %c0_92] : memref<2x32xf32, #tpu.memory_space<vmem>>, vector<2x32xf32>
    tpu.vector_store %arg10[%c0_91, %c0_92], %222 {strides = array<i32>} : memref<2x32xf32, #tpu.memory_space<vmem>>, vector<2x32xf32>,
    %c0_93 = arith.constant 0 : index
    %c0_94 = arith.constant 0 : index
    %224 = vector.load %arg11[%c0_93, %c0_94] : memref<2x32xf32, #tpu.memory_space<vmem>>, vector<2x32xf32>
    tpu.vector_store %arg11[%c0_93, %c0_94], %220 {strides = array<i32>} : memref<2x32xf32, #tpu.memory_space<vmem>>, vector<2x32xf32>,
    %225 = arith.truncf %222 : vector<2x32xf32> to vector<2x32xbf16>
    %c2_95 = arith.constant 2 : index
    %c0_96 = arith.constant 0 : index
    %c0_97 = arith.constant 0 : index
    %226 = vector.load %arg7[%c2_95, %c0_96, %c0_97] : memref<8x2x32xbf16, #tpu.memory_space<vmem>>, vector<1x2x32xbf16>
    %227 = vector.shape_cast %226 : vector<1x2x32xbf16> to vector<2x32xbf16>
    %228 = vector.shape_cast %225 : vector<2x32xbf16> to vector<1x2x32xbf16>
    tpu.vector_store %arg7[%c2_95, %c0_96, %c0_97], %228 {strides = array<i32>} : memref<8x2x32xbf16, #tpu.memory_space<vmem>>, vector<1x2x32xbf16>,
    %c3 = arith.constant 3 : index
    %c0_98 = arith.constant 0 : index
    %c0_99 = arith.constant 0 : index
    %229 = vector.load %arg2[%c3, %c0_98, %c0_99] : memref<8x2x128xf32, #tpu.memory_space<vmem>>, vector<1x2x128xf32>
    %230 = vector.shape_cast %229 : vector<1x2x128xf32> to vector<2x128xf32>
    %c0_100 = arith.constant 0 : index
    %c0_101 = arith.constant 0 : index
    %231 = vector.load %arg8[%c0_100, %c0_101] : memref<2x32xf32, #tpu.memory_space<vmem>>, vector<2x32xf32>
    %232 = arith.truncf %231 : vector<2x32xf32> to vector<2x32xbf16>
    %cst_102 = arith.constant dense<0.000000e+00> : vector<2x128xf32>
    %233 = tpu.matmul %232, %3, %cst_102 {dimension_numbers = #tpu.dot_dimension_numbers<[1], [0], [0], [1], [0, 0, 1, 1], [], []>} : vector<2x32xbf16>, vector<32x128xbf16>, vector<2x128xf32> -> vector<2x128xf32>
    %234 = arith.addf %230, %233 : vector<2x128xf32>
    %c0_103 = arith.constant 0 : index
    %c0_104 = arith.constant 0 : index
    %235 = vector.load %arg9[%c0_103, %c0_104] : memref<2x32xf32, #tpu.memory_space<vmem>>, vector<2x32xf32>
    %236 = vector.extract_strided_slice %234 {offsets = [0, 0], sizes = [2, 32], strides = [1, 1]} : vector<2x128xf32> to vector<2x32xf32>
    %237 = arith.negf %236 : vector<2x32xf32>
    %238 = math.exp %237 : vector<2x32xf32>
    %cst_105 = arith.constant 1.000000e+00 : f32
    %239 = vector.broadcast %cst_105 : f32 to vector<2x32xf32>
    %240 = arith.addf %239, %238 : vector<2x32xf32>
    %241 = arith.divf %239, %240 : vector<2x32xf32>
    %242 = vector.extract_strided_slice %234 {offsets = [0, 32], sizes = [2, 32], strides = [1, 1]} : vector<2x128xf32> to vector<2x32xf32>
    %243 = arith.negf %242 : vector<2x32xf32>
    %244 = math.exp %243 : vector<2x32xf32>
    %cst_106 = arith.constant 1.000000e+00 : f32
    %245 = vector.broadcast %cst_106 : f32 to vector<2x32xf32>
    %246 = arith.addf %245, %244 : vector<2x32xf32>
    %247 = arith.divf %245, %246 : vector<2x32xf32>
    %248 = vector.extract_strided_slice %234 {offsets = [0, 64], sizes = [2, 32], strides = [1, 1]} : vector<2x128xf32> to vector<2x32xf32>
    %249 = math.tanh %248 : vector<2x32xf32>
    %250 = vector.extract_strided_slice %234 {offsets = [0, 96], sizes = [2, 32], strides = [1, 1]} : vector<2x128xf32> to vector<2x32xf32>
    %251 = arith.negf %250 : vector<2x32xf32>
    %252 = math.exp %251 : vector<2x32xf32>
    %cst_107 = arith.constant 1.000000e+00 : f32
    %253 = vector.broadcast %cst_107 : f32 to vector<2x32xf32>
    %254 = arith.addf %253, %252 : vector<2x32xf32>
    %255 = arith.divf %253, %254 : vector<2x32xf32>
    %256 = arith.mulf %247, %235 : vector<2x32xf32>
    %257 = arith.mulf %241, %249 : vector<2x32xf32>
    %258 = arith.addf %256, %257 : vector<2x32xf32>
    %259 = math.tanh %258 : vector<2x32xf32>
    %260 = arith.mulf %255, %259 : vector<2x32xf32>
    %c0_108 = arith.constant 0 : index
    %c0_109 = arith.constant 0 : index
    %261 = vector.load %arg8[%c0_108, %c0_109] : memref<2x32xf32, #tpu.memory_space<vmem>>, vector<2x32xf32>
    tpu.vector_store %arg8[%c0_108, %c0_109], %260 {strides = array<i32>} : memref<2x32xf32, #tpu.memory_space<vmem>>, vector<2x32xf32>,
    %c0_110 = arith.constant 0 : index
    %c0_111 = arith.constant 0 : index
    %262 = vector.load %arg9[%c0_110, %c0_111] : memref<2x32xf32, #tpu.memory_space<vmem>>, vector<2x32xf32>
    tpu.vector_store %arg9[%c0_110, %c0_111], %258 {strides = array<i32>} : memref<2x32xf32, #tpu.memory_space<vmem>>, vector<2x32xf32>,
    %263 = arith.truncf %260 : vector<2x32xf32> to vector<2x32xbf16>
    %cst_112 = arith.constant dense<0.000000e+00> : vector<2x128xf32>
    %264 = tpu.matmul %263, %4, %cst_112 {dimension_numbers = #tpu.dot_dimension_numbers<[1], [0], [0], [1], [0, 0, 1, 1], [], []>} : vector<2x32xbf16>, vector<32x128xbf16>, vector<2x128xf32> -> vector<2x128xf32>
    %c0_113 = arith.constant 0 : index
    %c0_114 = arith.constant 0 : index
    %265 = vector.load %arg10[%c0_113, %c0_114] : memref<2x32xf32, #tpu.memory_space<vmem>>, vector<2x32xf32>
    %266 = arith.truncf %265 : vector<2x32xf32> to vector<2x32xbf16>
    %cst_115 = arith.constant dense<0.000000e+00> : vector<2x128xf32>
    %267 = tpu.matmul %266, %5, %cst_115 {dimension_numbers = #tpu.dot_dimension_numbers<[1], [0], [0], [1], [0, 0, 1, 1], [], []>} : vector<2x32xbf16>, vector<32x128xbf16>, vector<2x128xf32> -> vector<2x128xf32>
    %268 = arith.addf %264, %267 : vector<2x128xf32>
    %269 = vector.broadcast %6 : vector<1x128xf32> to vector<2x128xf32>
    %270 = arith.addf %268, %269 : vector<2x128xf32>
    %c0_116 = arith.constant 0 : index
    %c0_117 = arith.constant 0 : index
    %271 = vector.load %arg11[%c0_116, %c0_117] : memref<2x32xf32, #tpu.memory_space<vmem>>, vector<2x32xf32>
    %272 = vector.extract_strided_slice %270 {offsets = [0, 0], sizes = [2, 32], strides = [1, 1]} : vector<2x128xf32> to vector<2x32xf32>
    %273 = arith.negf %272 : vector<2x32xf32>
    %274 = math.exp %273 : vector<2x32xf32>
    %cst_118 = arith.constant 1.000000e+00 : f32
    %275 = vector.broadcast %cst_118 : f32 to vector<2x32xf32>
    %276 = arith.addf %275, %274 : vector<2x32xf32>
    %277 = arith.divf %275, %276 : vector<2x32xf32>
    %278 = vector.extract_strided_slice %270 {offsets = [0, 32], sizes = [2, 32], strides = [1, 1]} : vector<2x128xf32> to vector<2x32xf32>
    %279 = arith.negf %278 : vector<2x32xf32>
    %280 = math.exp %279 : vector<2x32xf32>
    %cst_119 = arith.constant 1.000000e+00 : f32
    %281 = vector.broadcast %cst_119 : f32 to vector<2x32xf32>
    %282 = arith.addf %281, %280 : vector<2x32xf32>
    %283 = arith.divf %281, %282 : vector<2x32xf32>
    %284 = vector.extract_strided_slice %270 {offsets = [0, 64], sizes = [2, 32], strides = [1, 1]} : vector<2x128xf32> to vector<2x32xf32>
    %285 = math.tanh %284 : vector<2x32xf32>
    %286 = vector.extract_strided_slice %270 {offsets = [0, 96], sizes = [2, 32], strides = [1, 1]} : vector<2x128xf32> to vector<2x32xf32>
    %287 = arith.negf %286 : vector<2x32xf32>
    %288 = math.exp %287 : vector<2x32xf32>
    %cst_120 = arith.constant 1.000000e+00 : f32
    %289 = vector.broadcast %cst_120 : f32 to vector<2x32xf32>
    %290 = arith.addf %289, %288 : vector<2x32xf32>
    %291 = arith.divf %289, %290 : vector<2x32xf32>
    %292 = arith.mulf %283, %271 : vector<2x32xf32>
    %293 = arith.mulf %277, %285 : vector<2x32xf32>
    %294 = arith.addf %292, %293 : vector<2x32xf32>
    %295 = math.tanh %294 : vector<2x32xf32>
    %296 = arith.mulf %291, %295 : vector<2x32xf32>
    %c0_121 = arith.constant 0 : index
    %c0_122 = arith.constant 0 : index
    %297 = vector.load %arg10[%c0_121, %c0_122] : memref<2x32xf32, #tpu.memory_space<vmem>>, vector<2x32xf32>
    tpu.vector_store %arg10[%c0_121, %c0_122], %296 {strides = array<i32>} : memref<2x32xf32, #tpu.memory_space<vmem>>, vector<2x32xf32>,
    %c0_123 = arith.constant 0 : index
    %c0_124 = arith.constant 0 : index
    %298 = vector.load %arg11[%c0_123, %c0_124] : memref<2x32xf32, #tpu.memory_space<vmem>>, vector<2x32xf32>
    tpu.vector_store %arg11[%c0_123, %c0_124], %294 {strides = array<i32>} : memref<2x32xf32, #tpu.memory_space<vmem>>, vector<2x32xf32>,
    %299 = arith.truncf %296 : vector<2x32xf32> to vector<2x32xbf16>
    %c3_125 = arith.constant 3 : index
    %c0_126 = arith.constant 0 : index
    %c0_127 = arith.constant 0 : index
    %300 = vector.load %arg7[%c3_125, %c0_126, %c0_127] : memref<8x2x32xbf16, #tpu.memory_space<vmem>>, vector<1x2x32xbf16>
    %301 = vector.shape_cast %300 : vector<1x2x32xbf16> to vector<2x32xbf16>
    %302 = vector.shape_cast %299 : vector<2x32xbf16> to vector<1x2x32xbf16>
    tpu.vector_store %arg7[%c3_125, %c0_126, %c0_127], %302 {strides = array<i32>} : memref<8x2x32xbf16, #tpu.memory_space<vmem>>, vector<1x2x32xbf16>,
    %c4 = arith.constant 4 : index
    %c0_128 = arith.constant 0 : index
    %c0_129 = arith.constant 0 : index
    %303 = vector.load %arg2[%c4, %c0_128, %c0_129] : memref<8x2x128xf32, #tpu.memory_space<vmem>>, vector<1x2x128xf32>
    %304 = vector.shape_cast %303 : vector<1x2x128xf32> to vector<2x128xf32>
    %c0_130 = arith.constant 0 : index
    %c0_131 = arith.constant 0 : index
    %305 = vector.load %arg8[%c0_130, %c0_131] : memref<2x32xf32, #tpu.memory_space<vmem>>, vector<2x32xf32>
    %306 = arith.truncf %305 : vector<2x32xf32> to vector<2x32xbf16>
    %cst_132 = arith.constant dense<0.000000e+00> : vector<2x128xf32>
    %307 = tpu.matmul %306, %3, %cst_132 {dimension_numbers = #tpu.dot_dimension_numbers<[1], [0], [0], [1], [0, 0, 1, 1], [], []>} : vector<2x32xbf16>, vector<32x128xbf16>, vector<2x128xf32> -> vector<2x128xf32>
    %308 = arith.addf %304, %307 : vector<2x128xf32>
    %c0_133 = arith.constant 0 : index
    %c0_134 = arith.constant 0 : index
    %309 = vector.load %arg9[%c0_133, %c0_134] : memref<2x32xf32, #tpu.memory_space<vmem>>, vector<2x32xf32>
    %310 = vector.extract_strided_slice %308 {offsets = [0, 0], sizes = [2, 32], strides = [1, 1]} : vector<2x128xf32> to vector<2x32xf32>
    %311 = arith.negf %310 : vector<2x32xf32>
    %312 = math.exp %311 : vector<2x32xf32>
    %cst_135 = arith.constant 1.000000e+00 : f32
    %313 = vector.broadcast %cst_135 : f32 to vector<2x32xf32>
    %314 = arith.addf %313, %312 : vector<2x32xf32>
    %315 = arith.divf %313, %314 : vector<2x32xf32>
    %316 = vector.extract_strided_slice %308 {offsets = [0, 32], sizes = [2, 32], strides = [1, 1]} : vector<2x128xf32> to vector<2x32xf32>
    %317 = arith.negf %316 : vector<2x32xf32>
    %318 = math.exp %317 : vector<2x32xf32>
    %cst_136 = arith.constant 1.000000e+00 : f32
    %319 = vector.broadcast %cst_136 : f32 to vector<2x32xf32>
    %320 = arith.addf %319, %318 : vector<2x32xf32>
    %321 = arith.divf %319, %320 : vector<2x32xf32>
    %322 = vector.extract_strided_slice %308 {offsets = [0, 64], sizes = [2, 32], strides = [1, 1]} : vector<2x128xf32> to vector<2x32xf32>
    %323 = math.tanh %322 : vector<2x32xf32>
    %324 = vector.extract_strided_slice %308 {offsets = [0, 96], sizes = [2, 32], strides = [1, 1]} : vector<2x128xf32> to vector<2x32xf32>
    %325 = arith.negf %324 : vector<2x32xf32>
    %326 = math.exp %325 : vector<2x32xf32>
    %cst_137 = arith.constant 1.000000e+00 : f32
    %327 = vector.broadcast %cst_137 : f32 to vector<2x32xf32>
    %328 = arith.addf %327, %326 : vector<2x32xf32>
    %329 = arith.divf %327, %328 : vector<2x32xf32>
    %330 = arith.mulf %321, %309 : vector<2x32xf32>
    %331 = arith.mulf %315, %323 : vector<2x32xf32>
    %332 = arith.addf %330, %331 : vector<2x32xf32>
    %333 = math.tanh %332 : vector<2x32xf32>
    %334 = arith.mulf %329, %333 : vector<2x32xf32>
    %c0_138 = arith.constant 0 : index
    %c0_139 = arith.constant 0 : index
    %335 = vector.load %arg8[%c0_138, %c0_139] : memref<2x32xf32, #tpu.memory_space<vmem>>, vector<2x32xf32>
    tpu.vector_store %arg8[%c0_138, %c0_139], %334 {strides = array<i32>} : memref<2x32xf32, #tpu.memory_space<vmem>>, vector<2x32xf32>,
    %c0_140 = arith.constant 0 : index
    %c0_141 = arith.constant 0 : index
    %336 = vector.load %arg9[%c0_140, %c0_141] : memref<2x32xf32, #tpu.memory_space<vmem>>, vector<2x32xf32>
    tpu.vector_store %arg9[%c0_140, %c0_141], %332 {strides = array<i32>} : memref<2x32xf32, #tpu.memory_space<vmem>>, vector<2x32xf32>,
    %337 = arith.truncf %334 : vector<2x32xf32> to vector<2x32xbf16>
    %cst_142 = arith.constant dense<0.000000e+00> : vector<2x128xf32>
    %338 = tpu.matmul %337, %4, %cst_142 {dimension_numbers = #tpu.dot_dimension_numbers<[1], [0], [0], [1], [0, 0, 1, 1], [], []>} : vector<2x32xbf16>, vector<32x128xbf16>, vector<2x128xf32> -> vector<2x128xf32>
    %c0_143 = arith.constant 0 : index
    %c0_144 = arith.constant 0 : index
    %339 = vector.load %arg10[%c0_143, %c0_144] : memref<2x32xf32, #tpu.memory_space<vmem>>, vector<2x32xf32>
    %340 = arith.truncf %339 : vector<2x32xf32> to vector<2x32xbf16>
    %cst_145 = arith.constant dense<0.000000e+00> : vector<2x128xf32>
    %341 = tpu.matmul %340, %5, %cst_145 {dimension_numbers = #tpu.dot_dimension_numbers<[1], [0], [0], [1], [0, 0, 1, 1], [], []>} : vector<2x32xbf16>, vector<32x128xbf16>, vector<2x128xf32> -> vector<2x128xf32>
    %342 = arith.addf %338, %341 : vector<2x128xf32>
    %343 = vector.broadcast %6 : vector<1x128xf32> to vector<2x128xf32>
    %344 = arith.addf %342, %343 : vector<2x128xf32>
    %c0_146 = arith.constant 0 : index
    %c0_147 = arith.constant 0 : index
    %345 = vector.load %arg11[%c0_146, %c0_147] : memref<2x32xf32, #tpu.memory_space<vmem>>, vector<2x32xf32>
    %346 = vector.extract_strided_slice %344 {offsets = [0, 0], sizes = [2, 32], strides = [1, 1]} : vector<2x128xf32> to vector<2x32xf32>
    %347 = arith.negf %346 : vector<2x32xf32>
    %348 = math.exp %347 : vector<2x32xf32>
    %cst_148 = arith.constant 1.000000e+00 : f32
    %349 = vector.broadcast %cst_148 : f32 to vector<2x32xf32>
    %350 = arith.addf %349, %348 : vector<2x32xf32>
    %351 = arith.divf %349, %350 : vector<2x32xf32>
    %352 = vector.extract_strided_slice %344 {offsets = [0, 32], sizes = [2, 32], strides = [1, 1]} : vector<2x128xf32> to vector<2x32xf32>
    %353 = arith.negf %352 : vector<2x32xf32>
    %354 = math.exp %353 : vector<2x32xf32>
    %cst_149 = arith.constant 1.000000e+00 : f32
    %355 = vector.broadcast %cst_149 : f32 to vector<2x32xf32>
    %356 = arith.addf %355, %354 : vector<2x32xf32>
    %357 = arith.divf %355, %356 : vector<2x32xf32>
    %358 = vector.extract_strided_slice %344 {offsets = [0, 64], sizes = [2, 32], strides = [1, 1]} : vector<2x128xf32> to vector<2x32xf32>
    %359 = math.tanh %358 : vector<2x32xf32>
    %360 = vector.extract_strided_slice %344 {offsets = [0, 96], sizes = [2, 32], strides = [1, 1]} : vector<2x128xf32> to vector<2x32xf32>
    %361 = arith.negf %360 : vector<2x32xf32>
    %362 = math.exp %361 : vector<2x32xf32>
    %cst_150 = arith.constant 1.000000e+00 : f32
    %363 = vector.broadcast %cst_150 : f32 to vector<2x32xf32>
    %364 = arith.addf %363, %362 : vector<2x32xf32>
    %365 = arith.divf %363, %364 : vector<2x32xf32>
    %366 = arith.mulf %357, %345 : vector<2x32xf32>
    %367 = arith.mulf %351, %359 : vector<2x32xf32>
    %368 = arith.addf %366, %367 : vector<2x32xf32>
    %369 = math.tanh %368 : vector<2x32xf32>
    %370 = arith.mulf %365, %369 : vector<2x32xf32>
    %c0_151 = arith.constant 0 : index
    %c0_152 = arith.constant 0 : index
    %371 = vector.load %arg10[%c0_151, %c0_152] : memref<2x32xf32, #tpu.memory_space<vmem>>, vector<2x32xf32>
    tpu.vector_store %arg10[%c0_151, %c0_152], %370 {strides = array<i32>} : memref<2x32xf32, #tpu.memory_space<vmem>>, vector<2x32xf32>,
    %c0_153 = arith.constant 0 : index
    %c0_154 = arith.constant 0 : index
    %372 = vector.load %arg11[%c0_153, %c0_154] : memref<2x32xf32, #tpu.memory_space<vmem>>, vector<2x32xf32>
    tpu.vector_store %arg11[%c0_153, %c0_154], %368 {strides = array<i32>} : memref<2x32xf32, #tpu.memory_space<vmem>>, vector<2x32xf32>,
    %373 = arith.truncf %370 : vector<2x32xf32> to vector<2x32xbf16>
    %c4_155 = arith.constant 4 : index
    %c0_156 = arith.constant 0 : index
    %c0_157 = arith.constant 0 : index
    %374 = vector.load %arg7[%c4_155, %c0_156, %c0_157] : memref<8x2x32xbf16, #tpu.memory_space<vmem>>, vector<1x2x32xbf16>
    %375 = vector.shape_cast %374 : vector<1x2x32xbf16> to vector<2x32xbf16>
    %376 = vector.shape_cast %373 : vector<2x32xbf16> to vector<1x2x32xbf16>
    tpu.vector_store %arg7[%c4_155, %c0_156, %c0_157], %376 {strides = array<i32>} : memref<8x2x32xbf16, #tpu.memory_space<vmem>>, vector<1x2x32xbf16>,
    %c5 = arith.constant 5 : index
    %c0_158 = arith.constant 0 : index
    %c0_159 = arith.constant 0 : index
    %377 = vector.load %arg2[%c5, %c0_158, %c0_159] : memref<8x2x128xf32, #tpu.memory_space<vmem>>, vector<1x2x128xf32>
    %378 = vector.shape_cast %377 : vector<1x2x128xf32> to vector<2x128xf32>
    %c0_160 = arith.constant 0 : index
    %c0_161 = arith.constant 0 : index
    %379 = vector.load %arg8[%c0_160, %c0_161] : memref<2x32xf32, #tpu.memory_space<vmem>>, vector<2x32xf32>
    %380 = arith.truncf %379 : vector<2x32xf32> to vector<2x32xbf16>
    %cst_162 = arith.constant dense<0.000000e+00> : vector<2x128xf32>
    %381 = tpu.matmul %380, %3, %cst_162 {dimension_numbers = #tpu.dot_dimension_numbers<[1], [0], [0], [1], [0, 0, 1, 1], [], []>} : vector<2x32xbf16>, vector<32x128xbf16>, vector<2x128xf32> -> vector<2x128xf32>
    %382 = arith.addf %378, %381 : vector<2x128xf32>
    %c0_163 = arith.constant 0 : index
    %c0_164 = arith.constant 0 : index
    %383 = vector.load %arg9[%c0_163, %c0_164] : memref<2x32xf32, #tpu.memory_space<vmem>>, vector<2x32xf32>
    %384 = vector.extract_strided_slice %382 {offsets = [0, 0], sizes = [2, 32], strides = [1, 1]} : vector<2x128xf32> to vector<2x32xf32>
    %385 = arith.negf %384 : vector<2x32xf32>
    %386 = math.exp %385 : vector<2x32xf32>
    %cst_165 = arith.constant 1.000000e+00 : f32
    %387 = vector.broadcast %cst_165 : f32 to vector<2x32xf32>
    %388 = arith.addf %387, %386 : vector<2x32xf32>
    %389 = arith.divf %387, %388 : vector<2x32xf32>
    %390 = vector.extract_strided_slice %382 {offsets = [0, 32], sizes = [2, 32], strides = [1, 1]} : vector<2x128xf32> to vector<2x32xf32>
    %391 = arith.negf %390 : vector<2x32xf32>
    %392 = math.exp %391 : vector<2x32xf32>
    %cst_166 = arith.constant 1.000000e+00 : f32
    %393 = vector.broadcast %cst_166 : f32 to vector<2x32xf32>
    %394 = arith.addf %393, %392 : vector<2x32xf32>
    %395 = arith.divf %393, %394 : vector<2x32xf32>
    %396 = vector.extract_strided_slice %382 {offsets = [0, 64], sizes = [2, 32], strides = [1, 1]} : vector<2x128xf32> to vector<2x32xf32>
    %397 = math.tanh %396 : vector<2x32xf32>
    %398 = vector.extract_strided_slice %382 {offsets = [0, 96], sizes = [2, 32], strides = [1, 1]} : vector<2x128xf32> to vector<2x32xf32>
    %399 = arith.negf %398 : vector<2x32xf32>
    %400 = math.exp %399 : vector<2x32xf32>
    %cst_167 = arith.constant 1.000000e+00 : f32
    %401 = vector.broadcast %cst_167 : f32 to vector<2x32xf32>
    %402 = arith.addf %401, %400 : vector<2x32xf32>
    %403 = arith.divf %401, %402 : vector<2x32xf32>
    %404 = arith.mulf %395, %383 : vector<2x32xf32>
    %405 = arith.mulf %389, %397 : vector<2x32xf32>
    %406 = arith.addf %404, %405 : vector<2x32xf32>
    %407 = math.tanh %406 : vector<2x32xf32>
    %408 = arith.mulf %403, %407 : vector<2x32xf32>
    %c0_168 = arith.constant 0 : index
    %c0_169 = arith.constant 0 : index
    %409 = vector.load %arg8[%c0_168, %c0_169] : memref<2x32xf32, #tpu.memory_space<vmem>>, vector<2x32xf32>
    tpu.vector_store %arg8[%c0_168, %c0_169], %408 {strides = array<i32>} : memref<2x32xf32, #tpu.memory_space<vmem>>, vector<2x32xf32>,
    %c0_170 = arith.constant 0 : index
    %c0_171 = arith.constant 0 : index
    %410 = vector.load %arg9[%c0_170, %c0_171] : memref<2x32xf32, #tpu.memory_space<vmem>>, vector<2x32xf32>
    tpu.vector_store %arg9[%c0_170, %c0_171], %406 {strides = array<i32>} : memref<2x32xf32, #tpu.memory_space<vmem>>, vector<2x32xf32>,
    %411 = arith.truncf %408 : vector<2x32xf32> to vector<2x32xbf16>
    %cst_172 = arith.constant dense<0.000000e+00> : vector<2x128xf32>
    %412 = tpu.matmul %411, %4, %cst_172 {dimension_numbers = #tpu.dot_dimension_numbers<[1], [0], [0], [1], [0, 0, 1, 1], [], []>} : vector<2x32xbf16>, vector<32x128xbf16>, vector<2x128xf32> -> vector<2x128xf32>
    %c0_173 = arith.constant 0 : index
    %c0_174 = arith.constant 0 : index
    %413 = vector.load %arg10[%c0_173, %c0_174] : memref<2x32xf32, #tpu.memory_space<vmem>>, vector<2x32xf32>
    %414 = arith.truncf %413 : vector<2x32xf32> to vector<2x32xbf16>
    %cst_175 = arith.constant dense<0.000000e+00> : vector<2x128xf32>
    %415 = tpu.matmul %414, %5, %cst_175 {dimension_numbers = #tpu.dot_dimension_numbers<[1], [0], [0], [1], [0, 0, 1, 1], [], []>} : vector<2x32xbf16>, vector<32x128xbf16>, vector<2x128xf32> -> vector<2x128xf32>
    %416 = arith.addf %412, %415 : vector<2x128xf32>
    %417 = vector.broadcast %6 : vector<1x128xf32> to vector<2x128xf32>
    %418 = arith.addf %416, %417 : vector<2x128xf32>
    %c0_176 = arith.constant 0 : index
    %c0_177 = arith.constant 0 : index
    %419 = vector.load %arg11[%c0_176, %c0_177] : memref<2x32xf32, #tpu.memory_space<vmem>>, vector<2x32xf32>
    %420 = vector.extract_strided_slice %418 {offsets = [0, 0], sizes = [2, 32], strides = [1, 1]} : vector<2x128xf32> to vector<2x32xf32>
    %421 = arith.negf %420 : vector<2x32xf32>
    %422 = math.exp %421 : vector<2x32xf32>
    %cst_178 = arith.constant 1.000000e+00 : f32
    %423 = vector.broadcast %cst_178 : f32 to vector<2x32xf32>
    %424 = arith.addf %423, %422 : vector<2x32xf32>
    %425 = arith.divf %423, %424 : vector<2x32xf32>
    %426 = vector.extract_strided_slice %418 {offsets = [0, 32], sizes = [2, 32], strides = [1, 1]} : vector<2x128xf32> to vector<2x32xf32>
    %427 = arith.negf %426 : vector<2x32xf32>
    %428 = math.exp %427 : vector<2x32xf32>
    %cst_179 = arith.constant 1.000000e+00 : f32
    %429 = vector.broadcast %cst_179 : f32 to vector<2x32xf32>
    %430 = arith.addf %429, %428 : vector<2x32xf32>
    %431 = arith.divf %429, %430 : vector<2x32xf32>
    %432 = vector.extract_strided_slice %418 {offsets = [0, 64], sizes = [2, 32], strides = [1, 1]} : vector<2x128xf32> to vector<2x32xf32>
    %433 = math.tanh %432 : vector<2x32xf32>
    %434 = vector.extract_strided_slice %418 {offsets = [0, 96], sizes = [2, 32], strides = [1, 1]} : vector<2x128xf32> to vector<2x32xf32>
    %435 = arith.negf %434 : vector<2x32xf32>
    %436 = math.exp %435 : vector<2x32xf32>
    %cst_180 = arith.constant 1.000000e+00 : f32
    %437 = vector.broadcast %cst_180 : f32 to vector<2x32xf32>
    %438 = arith.addf %437, %436 : vector<2x32xf32>
    %439 = arith.divf %437, %438 : vector<2x32xf32>
    %440 = arith.mulf %431, %419 : vector<2x32xf32>
    %441 = arith.mulf %425, %433 : vector<2x32xf32>
    %442 = arith.addf %440, %441 : vector<2x32xf32>
    %443 = math.tanh %442 : vector<2x32xf32>
    %444 = arith.mulf %439, %443 : vector<2x32xf32>
    %c0_181 = arith.constant 0 : index
    %c0_182 = arith.constant 0 : index
    %445 = vector.load %arg10[%c0_181, %c0_182] : memref<2x32xf32, #tpu.memory_space<vmem>>, vector<2x32xf32>
    tpu.vector_store %arg10[%c0_181, %c0_182], %444 {strides = array<i32>} : memref<2x32xf32, #tpu.memory_space<vmem>>, vector<2x32xf32>,
    %c0_183 = arith.constant 0 : index
    %c0_184 = arith.constant 0 : index
    %446 = vector.load %arg11[%c0_183, %c0_184] : memref<2x32xf32, #tpu.memory_space<vmem>>, vector<2x32xf32>
    tpu.vector_store %arg11[%c0_183, %c0_184], %442 {strides = array<i32>} : memref<2x32xf32, #tpu.memory_space<vmem>>, vector<2x32xf32>,
    %447 = arith.truncf %444 : vector<2x32xf32> to vector<2x32xbf16>
    %c5_185 = arith.constant 5 : index
    %c0_186 = arith.constant 0 : index
    %c0_187 = arith.constant 0 : index
    %448 = vector.load %arg7[%c5_185, %c0_186, %c0_187] : memref<8x2x32xbf16, #tpu.memory_space<vmem>>, vector<1x2x32xbf16>
    %449 = vector.shape_cast %448 : vector<1x2x32xbf16> to vector<2x32xbf16>
    %450 = vector.shape_cast %447 : vector<2x32xbf16> to vector<1x2x32xbf16>
    tpu.vector_store %arg7[%c5_185, %c0_186, %c0_187], %450 {strides = array<i32>} : memref<8x2x32xbf16, #tpu.memory_space<vmem>>, vector<1x2x32xbf16>,
    %c6 = arith.constant 6 : index
    %c0_188 = arith.constant 0 : index
    %c0_189 = arith.constant 0 : index
    %451 = vector.load %arg2[%c6, %c0_188, %c0_189] : memref<8x2x128xf32, #tpu.memory_space<vmem>>, vector<1x2x128xf32>
    %452 = vector.shape_cast %451 : vector<1x2x128xf32> to vector<2x128xf32>
    %c0_190 = arith.constant 0 : index
    %c0_191 = arith.constant 0 : index
    %453 = vector.load %arg8[%c0_190, %c0_191] : memref<2x32xf32, #tpu.memory_space<vmem>>, vector<2x32xf32>
    %454 = arith.truncf %453 : vector<2x32xf32> to vector<2x32xbf16>
    %cst_192 = arith.constant dense<0.000000e+00> : vector<2x128xf32>
    %455 = tpu.matmul %454, %3, %cst_192 {dimension_numbers = #tpu.dot_dimension_numbers<[1], [0], [0], [1], [0, 0, 1, 1], [], []>} : vector<2x32xbf16>, vector<32x128xbf16>, vector<2x128xf32> -> vector<2x128xf32>
    %456 = arith.addf %452, %455 : vector<2x128xf32>
    %c0_193 = arith.constant 0 : index
    %c0_194 = arith.constant 0 : index
    %457 = vector.load %arg9[%c0_193, %c0_194] : memref<2x32xf32, #tpu.memory_space<vmem>>, vector<2x32xf32>
    %458 = vector.extract_strided_slice %456 {offsets = [0, 0], sizes = [2, 32], strides = [1, 1]} : vector<2x128xf32> to vector<2x32xf32>
    %459 = arith.negf %458 : vector<2x32xf32>
    %460 = math.exp %459 : vector<2x32xf32>
    %cst_195 = arith.constant 1.000000e+00 : f32
    %461 = vector.broadcast %cst_195 : f32 to vector<2x32xf32>
    %462 = arith.addf %461, %460 : vector<2x32xf32>
    %463 = arith.divf %461, %462 : vector<2x32xf32>
    %464 = vector.extract_strided_slice %456 {offsets = [0, 32], sizes = [2, 32], strides = [1, 1]} : vector<2x128xf32> to vector<2x32xf32>
    %465 = arith.negf %464 : vector<2x32xf32>
    %466 = math.exp %465 : vector<2x32xf32>
    %cst_196 = arith.constant 1.000000e+00 : f32
    %467 = vector.broadcast %cst_196 : f32 to vector<2x32xf32>
    %468 = arith.addf %467, %466 : vector<2x32xf32>
    %469 = arith.divf %467, %468 : vector<2x32xf32>
    %470 = vector.extract_strided_slice %456 {offsets = [0, 64], sizes = [2, 32], strides = [1, 1]} : vector<2x128xf32> to vector<2x32xf32>
    %471 = math.tanh %470 : vector<2x32xf32>
    %472 = vector.extract_strided_slice %456 {offsets = [0, 96], sizes = [2, 32], strides = [1, 1]} : vector<2x128xf32> to vector<2x32xf32>
    %473 = arith.negf %472 : vector<2x32xf32>
    %474 = math.exp %473 : vector<2x32xf32>
    %cst_197 = arith.constant 1.000000e+00 : f32
    %475 = vector.broadcast %cst_197 : f32 to vector<2x32xf32>
    %476 = arith.addf %475, %474 : vector<2x32xf32>
    %477 = arith.divf %475, %476 : vector<2x32xf32>
    %478 = arith.mulf %469, %457 : vector<2x32xf32>
    %479 = arith.mulf %463, %471 : vector<2x32xf32>
    %480 = arith.addf %478, %479 : vector<2x32xf32>
    %481 = math.tanh %480 : vector<2x32xf32>
    %482 = arith.mulf %477, %481 : vector<2x32xf32>
    %c0_198 = arith.constant 0 : index
    %c0_199 = arith.constant 0 : index
    %483 = vector.load %arg8[%c0_198, %c0_199] : memref<2x32xf32, #tpu.memory_space<vmem>>, vector<2x32xf32>
    tpu.vector_store %arg8[%c0_198, %c0_199], %482 {strides = array<i32>} : memref<2x32xf32, #tpu.memory_space<vmem>>, vector<2x32xf32>,
    %c0_200 = arith.constant 0 : index
    %c0_201 = arith.constant 0 : index
    %484 = vector.load %arg9[%c0_200, %c0_201] : memref<2x32xf32, #tpu.memory_space<vmem>>, vector<2x32xf32>
    tpu.vector_store %arg9[%c0_200, %c0_201], %480 {strides = array<i32>} : memref<2x32xf32, #tpu.memory_space<vmem>>, vector<2x32xf32>,
    %485 = arith.truncf %482 : vector<2x32xf32> to vector<2x32xbf16>
    %cst_202 = arith.constant dense<0.000000e+00> : vector<2x128xf32>
    %486 = tpu.matmul %485, %4, %cst_202 {dimension_numbers = #tpu.dot_dimension_numbers<[1], [0], [0], [1], [0, 0, 1, 1], [], []>} : vector<2x32xbf16>, vector<32x128xbf16>, vector<2x128xf32> -> vector<2x128xf32>
    %c0_203 = arith.constant 0 : index
    %c0_204 = arith.constant 0 : index
    %487 = vector.load %arg10[%c0_203, %c0_204] : memref<2x32xf32, #tpu.memory_space<vmem>>, vector<2x32xf32>
    %488 = arith.truncf %487 : vector<2x32xf32> to vector<2x32xbf16>
    %cst_205 = arith.constant dense<0.000000e+00> : vector<2x128xf32>
    %489 = tpu.matmul %488, %5, %cst_205 {dimension_numbers = #tpu.dot_dimension_numbers<[1], [0], [0], [1], [0, 0, 1, 1], [], []>} : vector<2x32xbf16>, vector<32x128xbf16>, vector<2x128xf32> -> vector<2x128xf32>
    %490 = arith.addf %486, %489 : vector<2x128xf32>
    %491 = vector.broadcast %6 : vector<1x128xf32> to vector<2x128xf32>
    %492 = arith.addf %490, %491 : vector<2x128xf32>
    %c0_206 = arith.constant 0 : index
    %c0_207 = arith.constant 0 : index
    %493 = vector.load %arg11[%c0_206, %c0_207] : memref<2x32xf32, #tpu.memory_space<vmem>>, vector<2x32xf32>
    %494 = vector.extract_strided_slice %492 {offsets = [0, 0], sizes = [2, 32], strides = [1, 1]} : vector<2x128xf32> to vector<2x32xf32>
    %495 = arith.negf %494 : vector<2x32xf32>
    %496 = math.exp %495 : vector<2x32xf32>
    %cst_208 = arith.constant 1.000000e+00 : f32
    %497 = vector.broadcast %cst_208 : f32 to vector<2x32xf32>
    %498 = arith.addf %497, %496 : vector<2x32xf32>
    %499 = arith.divf %497, %498 : vector<2x32xf32>
    %500 = vector.extract_strided_slice %492 {offsets = [0, 32], sizes = [2, 32], strides = [1, 1]} : vector<2x128xf32> to vector<2x32xf32>
    %501 = arith.negf %500 : vector<2x32xf32>
    %502 = math.exp %501 : vector<2x32xf32>
    %cst_209 = arith.constant 1.000000e+00 : f32
    %503 = vector.broadcast %cst_209 : f32 to vector<2x32xf32>
    %504 = arith.addf %503, %502 : vector<2x32xf32>
    %505 = arith.divf %503, %504 : vector<2x32xf32>
    %506 = vector.extract_strided_slice %492 {offsets = [0, 64], sizes = [2, 32], strides = [1, 1]} : vector<2x128xf32> to vector<2x32xf32>
    %507 = math.tanh %506 : vector<2x32xf32>
    %508 = vector.extract_strided_slice %492 {offsets = [0, 96], sizes = [2, 32], strides = [1, 1]} : vector<2x128xf32> to vector<2x32xf32>
    %509 = arith.negf %508 : vector<2x32xf32>
    %510 = math.exp %509 : vector<2x32xf32>
    %cst_210 = arith.constant 1.000000e+00 : f32
    %511 = vector.broadcast %cst_210 : f32 to vector<2x32xf32>
    %512 = arith.addf %511, %510 : vector<2x32xf32>
    %513 = arith.divf %511, %512 : vector<2x32xf32>
    %514 = arith.mulf %505, %493 : vector<2x32xf32>
    %515 = arith.mulf %499, %507 : vector<2x32xf32>
    %516 = arith.addf %514, %515 : vector<2x32xf32>
    %517 = math.tanh %516 : vector<2x32xf32>
    %518 = arith.mulf %513, %517 : vector<2x32xf32>
    %c0_211 = arith.constant 0 : index
    %c0_212 = arith.constant 0 : index
    %519 = vector.load %arg10[%c0_211, %c0_212] : memref<2x32xf32, #tpu.memory_space<vmem>>, vector<2x32xf32>
    tpu.vector_store %arg10[%c0_211, %c0_212], %518 {strides = array<i32>} : memref<2x32xf32, #tpu.memory_space<vmem>>, vector<2x32xf32>,
    %c0_213 = arith.constant 0 : index
    %c0_214 = arith.constant 0 : index
    %520 = vector.load %arg11[%c0_213, %c0_214] : memref<2x32xf32, #tpu.memory_space<vmem>>, vector<2x32xf32>
    tpu.vector_store %arg11[%c0_213, %c0_214], %516 {strides = array<i32>} : memref<2x32xf32, #tpu.memory_space<vmem>>, vector<2x32xf32>,
    %521 = arith.truncf %518 : vector<2x32xf32> to vector<2x32xbf16>
    %c6_215 = arith.constant 6 : index
    %c0_216 = arith.constant 0 : index
    %c0_217 = arith.constant 0 : index
    %522 = vector.load %arg7[%c6_215, %c0_216, %c0_217] : memref<8x2x32xbf16, #tpu.memory_space<vmem>>, vector<1x2x32xbf16>
    %523 = vector.shape_cast %522 : vector<1x2x32xbf16> to vector<2x32xbf16>
    %524 = vector.shape_cast %521 : vector<2x32xbf16> to vector<1x2x32xbf16>
    tpu.vector_store %arg7[%c6_215, %c0_216, %c0_217], %524 {strides = array<i32>} : memref<8x2x32xbf16, #tpu.memory_space<vmem>>, vector<1x2x32xbf16>,
    %c7 = arith.constant 7 : index
    %c0_218 = arith.constant 0 : index
    %c0_219 = arith.constant 0 : index
    %525 = vector.load %arg2[%c7, %c0_218, %c0_219] : memref<8x2x128xf32, #tpu.memory_space<vmem>>, vector<1x2x128xf32>
    %526 = vector.shape_cast %525 : vector<1x2x128xf32> to vector<2x128xf32>
    %c0_220 = arith.constant 0 : index
    %c0_221 = arith.constant 0 : index
    %527 = vector.load %arg8[%c0_220, %c0_221] : memref<2x32xf32, #tpu.memory_space<vmem>>, vector<2x32xf32>
    %528 = arith.truncf %527 : vector<2x32xf32> to vector<2x32xbf16>
    %cst_222 = arith.constant dense<0.000000e+00> : vector<2x128xf32>
    %529 = tpu.matmul %528, %3, %cst_222 {dimension_numbers = #tpu.dot_dimension_numbers<[1], [0], [0], [1], [0, 0, 1, 1], [], []>} : vector<2x32xbf16>, vector<32x128xbf16>, vector<2x128xf32> -> vector<2x128xf32>
    %530 = arith.addf %526, %529 : vector<2x128xf32>
    %c0_223 = arith.constant 0 : index
    %c0_224 = arith.constant 0 : index
    %531 = vector.load %arg9[%c0_223, %c0_224] : memref<2x32xf32, #tpu.memory_space<vmem>>, vector<2x32xf32>
    %532 = vector.extract_strided_slice %530 {offsets = [0, 0], sizes = [2, 32], strides = [1, 1]} : vector<2x128xf32> to vector<2x32xf32>
    %533 = arith.negf %532 : vector<2x32xf32>
    %534 = math.exp %533 : vector<2x32xf32>
    %cst_225 = arith.constant 1.000000e+00 : f32
    %535 = vector.broadcast %cst_225 : f32 to vector<2x32xf32>
    %536 = arith.addf %535, %534 : vector<2x32xf32>
    %537 = arith.divf %535, %536 : vector<2x32xf32>
    %538 = vector.extract_strided_slice %530 {offsets = [0, 32], sizes = [2, 32], strides = [1, 1]} : vector<2x128xf32> to vector<2x32xf32>
    %539 = arith.negf %538 : vector<2x32xf32>
    %540 = math.exp %539 : vector<2x32xf32>
    %cst_226 = arith.constant 1.000000e+00 : f32
    %541 = vector.broadcast %cst_226 : f32 to vector<2x32xf32>
    %542 = arith.addf %541, %540 : vector<2x32xf32>
    %543 = arith.divf %541, %542 : vector<2x32xf32>
    %544 = vector.extract_strided_slice %530 {offsets = [0, 64], sizes = [2, 32], strides = [1, 1]} : vector<2x128xf32> to vector<2x32xf32>
    %545 = math.tanh %544 : vector<2x32xf32>
    %546 = vector.extract_strided_slice %530 {offsets = [0, 96], sizes = [2, 32], strides = [1, 1]} : vector<2x128xf32> to vector<2x32xf32>
    %547 = arith.negf %546 : vector<2x32xf32>
    %548 = math.exp %547 : vector<2x32xf32>
    %cst_227 = arith.constant 1.000000e+00 : f32
    %549 = vector.broadcast %cst_227 : f32 to vector<2x32xf32>
    %550 = arith.addf %549, %548 : vector<2x32xf32>
    %551 = arith.divf %549, %550 : vector<2x32xf32>
    %552 = arith.mulf %543, %531 : vector<2x32xf32>
    %553 = arith.mulf %537, %545 : vector<2x32xf32>
    %554 = arith.addf %552, %553 : vector<2x32xf32>
    %555 = math.tanh %554 : vector<2x32xf32>
    %556 = arith.mulf %551, %555 : vector<2x32xf32>
    %c0_228 = arith.constant 0 : index
    %c0_229 = arith.constant 0 : index
    %557 = vector.load %arg8[%c0_228, %c0_229] : memref<2x32xf32, #tpu.memory_space<vmem>>, vector<2x32xf32>
    tpu.vector_store %arg8[%c0_228, %c0_229], %556 {strides = array<i32>} : memref<2x32xf32, #tpu.memory_space<vmem>>, vector<2x32xf32>,
    %c0_230 = arith.constant 0 : index
    %c0_231 = arith.constant 0 : index
    %558 = vector.load %arg9[%c0_230, %c0_231] : memref<2x32xf32, #tpu.memory_space<vmem>>, vector<2x32xf32>
    tpu.vector_store %arg9[%c0_230, %c0_231], %554 {strides = array<i32>} : memref<2x32xf32, #tpu.memory_space<vmem>>, vector<2x32xf32>,
    %559 = arith.truncf %556 : vector<2x32xf32> to vector<2x32xbf16>
    %cst_232 = arith.constant dense<0.000000e+00> : vector<2x128xf32>
    %560 = tpu.matmul %559, %4, %cst_232 {dimension_numbers = #tpu.dot_dimension_numbers<[1], [0], [0], [1], [0, 0, 1, 1], [], []>} : vector<2x32xbf16>, vector<32x128xbf16>, vector<2x128xf32> -> vector<2x128xf32>
    %c0_233 = arith.constant 0 : index
    %c0_234 = arith.constant 0 : index
    %561 = vector.load %arg10[%c0_233, %c0_234] : memref<2x32xf32, #tpu.memory_space<vmem>>, vector<2x32xf32>
    %562 = arith.truncf %561 : vector<2x32xf32> to vector<2x32xbf16>
    %cst_235 = arith.constant dense<0.000000e+00> : vector<2x128xf32>
    %563 = tpu.matmul %562, %5, %cst_235 {dimension_numbers = #tpu.dot_dimension_numbers<[1], [0], [0], [1], [0, 0, 1, 1], [], []>} : vector<2x32xbf16>, vector<32x128xbf16>, vector<2x128xf32> -> vector<2x128xf32>
    %564 = arith.addf %560, %563 : vector<2x128xf32>
    %565 = vector.broadcast %6 : vector<1x128xf32> to vector<2x128xf32>
    %566 = arith.addf %564, %565 : vector<2x128xf32>
    %c0_236 = arith.constant 0 : index
    %c0_237 = arith.constant 0 : index
    %567 = vector.load %arg11[%c0_236, %c0_237] : memref<2x32xf32, #tpu.memory_space<vmem>>, vector<2x32xf32>
    %568 = vector.extract_strided_slice %566 {offsets = [0, 0], sizes = [2, 32], strides = [1, 1]} : vector<2x128xf32> to vector<2x32xf32>
    %569 = arith.negf %568 : vector<2x32xf32>
    %570 = math.exp %569 : vector<2x32xf32>
    %cst_238 = arith.constant 1.000000e+00 : f32
    %571 = vector.broadcast %cst_238 : f32 to vector<2x32xf32>
    %572 = arith.addf %571, %570 : vector<2x32xf32>
    %573 = arith.divf %571, %572 : vector<2x32xf32>
    %574 = vector.extract_strided_slice %566 {offsets = [0, 32], sizes = [2, 32], strides = [1, 1]} : vector<2x128xf32> to vector<2x32xf32>
    %575 = arith.negf %574 : vector<2x32xf32>
    %576 = math.exp %575 : vector<2x32xf32>
    %cst_239 = arith.constant 1.000000e+00 : f32
    %577 = vector.broadcast %cst_239 : f32 to vector<2x32xf32>
    %578 = arith.addf %577, %576 : vector<2x32xf32>
    %579 = arith.divf %577, %578 : vector<2x32xf32>
    %580 = vector.extract_strided_slice %566 {offsets = [0, 64], sizes = [2, 32], strides = [1, 1]} : vector<2x128xf32> to vector<2x32xf32>
    %581 = math.tanh %580 : vector<2x32xf32>
    %582 = vector.extract_strided_slice %566 {offsets = [0, 96], sizes = [2, 32], strides = [1, 1]} : vector<2x128xf32> to vector<2x32xf32>
    %583 = arith.negf %582 : vector<2x32xf32>
    %584 = math.exp %583 : vector<2x32xf32>
    %cst_240 = arith.constant 1.000000e+00 : f32
    %585 = vector.broadcast %cst_240 : f32 to vector<2x32xf32>
    %586 = arith.addf %585, %584 : vector<2x32xf32>
    %587 = arith.divf %585, %586 : vector<2x32xf32>
    %588 = arith.mulf %579, %567 : vector<2x32xf32>
    %589 = arith.mulf %573, %581 : vector<2x32xf32>
    %590 = arith.addf %588, %589 : vector<2x32xf32>
    %591 = math.tanh %590 : vector<2x32xf32>
    %592 = arith.mulf %587, %591 : vector<2x32xf32>
    %c0_241 = arith.constant 0 : index
    %c0_242 = arith.constant 0 : index
    %593 = vector.load %arg10[%c0_241, %c0_242] : memref<2x32xf32, #tpu.memory_space<vmem>>, vector<2x32xf32>
    tpu.vector_store %arg10[%c0_241, %c0_242], %592 {strides = array<i32>} : memref<2x32xf32, #tpu.memory_space<vmem>>, vector<2x32xf32>,
    %c0_243 = arith.constant 0 : index
    %c0_244 = arith.constant 0 : index
    %594 = vector.load %arg11[%c0_243, %c0_244] : memref<2x32xf32, #tpu.memory_space<vmem>>, vector<2x32xf32>
    tpu.vector_store %arg11[%c0_243, %c0_244], %590 {strides = array<i32>} : memref<2x32xf32, #tpu.memory_space<vmem>>, vector<2x32xf32>,
    %595 = arith.truncf %592 : vector<2x32xf32> to vector<2x32xbf16>
    %c7_245 = arith.constant 7 : index
    %c0_246 = arith.constant 0 : index
    %c0_247 = arith.constant 0 : index
    %596 = vector.load %arg7[%c7_245, %c0_246, %c0_247] : memref<8x2x32xbf16, #tpu.memory_space<vmem>>, vector<1x2x32xbf16>
    %597 = vector.shape_cast %596 : vector<1x2x32xbf16> to vector<2x32xbf16>
    %598 = vector.shape_cast %595 : vector<2x32xbf16> to vector<1x2x32xbf16>
    tpu.vector_store %arg7[%c7_245, %c0_246, %c0_247], %598 {strides = array<i32>} : memref<8x2x32xbf16, #tpu.memory_space<vmem>>, vector<1x2x32xbf16>,
    return
  }
  func.func @transform_0(%arg0: i32, %arg1: i32) -> (i32, i32, i32) {
    %c0_i32 = arith.constant 0 : i32
    %c0_i32_0 = arith.constant 0 : i32
    return %arg1, %arg0, %c0_i32 : i32, i32, i32
  }
  func.func @transform_1(%arg0: i32, %arg1: i32) -> (i32, i32) {
    %c0_i32 = arith.constant 0 : i32
    %c0_i32_0 = arith.constant 0 : i32
    %c0_i32_1 = arith.constant 0 : i32
    return %c0_i32, %c0_i32_0 : i32, i32
  }
  func.func @transform_2(%arg0: i32, %arg1: i32) -> (i32, i32) {
    %c0_i32 = arith.constant 0 : i32
    %c0_i32_0 = arith.constant 0 : i32
    %c0_i32_1 = arith.constant 0 : i32
    return %c0_i32, %c0_i32_0 : i32, i32
  }
  func.func @transform_3(%arg0: i32, %arg1: i32) -> (i32, i32) {
    %c0_i32 = arith.constant 0 : i32
    %c0_i32_0 = arith.constant 0 : i32
    %c0_i32_1 = arith.constant 0 : i32
    return %c0_i32, %c0_i32_0 : i32, i32
  }
  func.func @transform_4(%arg0: i32, %arg1: i32) -> (i32, i32) {
    %c0_i32 = arith.constant 0 : i32
    %c0_i32_0 = arith.constant 0 : i32
    %c0_i32_1 = arith.constant 0 : i32
    return %c0_i32, %c0_i32_0 : i32, i32
  }
  func.func @transform_5(%arg0: i32, %arg1: i32) -> (i32, i32, i32) {
    %c0_i32 = arith.constant 0 : i32
    %c0_i32_0 = arith.constant 0 : i32
    return %arg1, %arg0, %c0_i32 : i32, i32, i32
  }
}

</mosaic_0001>

<llo_original>
// kernel: text_generation_forward.5
$region0: #{text_generation_forward.5}
  #allocation0 [shape = 'u32[]', space=smem, size = 0x4, offset = 0x4, fixed_abs, tag = 'smem constant byte address 0x4 - core index']
  #allocation1 [shape = 'u32[72,128]{1,0:T(1,128)}', space=vmem, size = 0x9000, scoped, tag = 'internal scratch']
  #allocation2 [shape = 'f32[16,16]{1,0:T(8,128)}', space=vmem, size = 0x2000, scoped, tag = 'scratch operand']
  %s0 = inlined_call_operand.vmem [shape: bf16[16,32], index: 0, kind: input, shape index: {}]
  %s1 = inlined_call_operand.vmem [shape: bf16[32,16], index: 1, kind: input, shape index: {}]
  %s2 = inlined_call_operand.vmem [shape: f32[1,16], index: 2, kind: input, shape index: {}]
  %s3 = inlined_call_operand.hbm [shape: f32[16,16], index: 3, kind: output, shape index: {}]
  %s4 = sld [smem:[#allocation0]]
  $region30: #{text_generation_forward.5} parent=0
    _
  %s6 = ssub.s32 1, %s4
  %s7 = scalar_select 0, %s6, %s4
  $region1: #{text_generation_forward.5} parent=0
    #allocation3 [shape = 'u8[8192]{0}', space=vmem, size = 0x2000, scoped, tag = 'output window, operand 0, single buffered']
    #allocation4 [shape = 's32[1]{0}', space=sflag, size = 0x4, scoped, tag = 'scoped memory for text_generation_forward.5']
    %8 = vsyncpa [#allocation4], 0
    // Predicated region
    $region2: #{text_generation_forward.5} parent=1 // pred_check
      _
    $region3: #{text_generation_forward.5} parent=1 // pred_check_branch
      %10 = sbr.rel (0) target = $region5
    $region4: #{text_generation_forward.5} parent=1 // pred_region
      _
    $region5: #{text_generation_forward.5} parent=1 // pred_fallthru
      _
    // Predicated region
    $region6: #{text_generation_forward.5} parent=1 // pred_check
      _
    $region7: #{text_generation_forward.5} parent=1 // pred_check_branch
      %12 = sbr.rel (0) target = $region9
    $region8: #{text_generation_forward.5} parent=1 // pred_region
      _
    $region9: #{text_generation_forward.5} parent=1 // pred_fallthru
      _
    // Predicated region
    $region10: #{text_generation_forward.5} parent=1 // pred_check
      _
    $region11: #{text_generation_forward.5} parent=1 // pred_check_branch
      %14 = sbr.rel (0) target = $region13
    $region12: #{text_generation_forward.5} parent=1 // pred_region
      _
    $region13: #{text_generation_forward.5} parent=1 // pred_fallthru
      _
    %p16 = scmp.eq.s32.totalorder 0, 0
    // Predicated region
    $region14: #{text_generation_forward.5} parent=1 // pred_check
      %p17 = pneg %p16
    $region15: #{text_generation_forward.5} parent=1 // pred_check_branch
      %19 = sbr.rel (%p17) target = $region17
    $region16: #{text_generation_forward.5} parent=1 // pred_region
      %vm20 = vcmask 130048
      %21 = vst.msk [vmem:[#allocation2] sm:$0xff] %vm20, 0.0
      %22 = vst.msk [vmem:[#allocation2 + $0x8] sm:$0xff] %vm20, 0.0
    $region17: #{text_generation_forward.5} parent=1 // pred_fallthru
      _
    %v23 = vld [vmem:[#allocation2] sm:$0xff]
    %v24 = vld [vmem:[#allocation2 + $0x8] sm:$0xff]
    %v25 = vld [vmem:[%s0] sm:$0xf]
    %v26 = vld [vmem:[%s0 + $0x4] sm:$0xf]
    %v27 = vld [vmem:[%s1] sm:$0xf]
    %v28 = vld [vmem:[%s1 + $0x4] sm:$0xf]
    %v29 = vld [vmem:[%s1 + $0x8] sm:$0xf]
    %v30 = vld [vmem:[%s1 + $0xc] sm:$0xf]
    %v33 = vunpack.c.l.b16 %v25
    %v34 = vunpack.c.l.b16 %v26
    %v35 = vpack.c.b16 %v34, %v33
    %v40 = vunpack.c.l.b16 %v27
    %v41 = vunpack.c.l.b16 %v28
    %v42 = vunpack.c.l.b16 %v29
    %v43 = vunpack.c.l.b16 %v30
    %v44 = vpack.c.b16 %v41, %v40
    %v45 = vpack.c.b16 %v43, %v42
    %vm48 = vcmask 261120
    %v50 = vsel %vm48, %v35, 0
    %52 = vmatpush.bf16.msra.mxu0 0
    %53 = vmatpush.bf16.msra.mxu0 0
    %54 = vmatpush.bf16.msra.mxu0 0
    %55 = vmatpush.bf16.msra.mxu0 0
    %56 = vmatpush.bf16.msra.mxu0 0
    %57 = vmatpush.bf16.msra.mxu0 0
    %58 = vmatpush.bf16.msra.mxu0 %v45
    %59 = vmatpush.bf16.msra.mxu0 %v44
    %60 = vmatmul.bf16.gmra.mxu0 %v50
    %v61 = vpop.f32.mrf.mxu0
    %v62 = vadd.f32 0.0, %v61
    %v63 = vpop.f32.mrf.mxu0
    %v64 = vadd.f32 0.0, %v63
    %65 = vdwg.mxu0
    %v66 = vadd.f32 %v23, %v62
    %v67 = vadd.f32 %v24, %v64
    %vm68 = vcmask 130048
    %69 = vst.msk [vmem:[#allocation2] sm:$0xff] %vm68, %v66
    %70 = vst.msk [vmem:[#allocation2 + $0x8] sm:$0xff] %vm68, %v67
    // Predicated region
    $region18: #{text_generation_forward.5} parent=1 // pred_check
      %p71 = pneg %p16
    $region19: #{text_generation_forward.5} parent=1 // pred_check_branch
      %73 = sbr.rel (%p71) target = $region21
    $region20: #{text_generation_forward.5} parent=1 // pred_region
      %v74 = vld [vmem:[#allocation2] sm:$0xff]
      %v75 = vld [vmem:[#allocation2 + $0x8] sm:$0xff]
      %v76 = vld [vmem:[%s2] sm:$0x1]
      %v78 = vperm.slane %v76, 0
      %v80 = vadd.f32 %v74, %v78
      %v81 = vadd.f32 %v75, %v78
      %82 = vst.msk [vmem:[#allocation3] sm:$0xff] %vm68, %v80
      %83 = vst.msk [vmem:[#allocation3 + $0x8] sm:$0xff] %vm68, %v81
    $region21: #{text_generation_forward.5} parent=1 // pred_fallthru
      _
    // Predicated region
    $region22: #{text_generation_forward.5} parent=1 // pred_check
      _
    $region23: #{text_generation_forward.5} parent=1 // pred_check_branch
      %85 = sbr.rel (0) target = $region25
    $region24: #{text_generation_forward.5} parent=1 // pred_region
      %87 = vsyncadd [#allocation4], 0
      %s88 = sshll.u32 [#allocation3], 4
      %s89 = int_to_ptr.vmem [resolvable:$true] %s88
      %s90 = sshll.u32 %s3, 4
      %s91 = int_to_ptr.hbm [resolvable:$true] %s90
      %96 = dma.vmem_to_hbm [thread:$0]  %s89, 256, %s91, [#allocation4], 128, 128, 8
    $region25: #{text_generation_forward.5} parent=1 // pred_fallthru
      _
    // Predicated region
    $region26: #{text_generation_forward.5} parent=1 // pred_check
      _
    $region27: #{text_generation_forward.5} parent=1 // pred_check_branch
      %98 = sbr.rel (0) target = $region29
    $region28: #{text_generation_forward.5} parent=1 // pred_region
      %100 = dma.done [#allocation4], 256
    $region29: #{text_generation_forward.5} parent=1 // pred_fallthru
      _
    %101 = vsyncpa [#allocation4], 1

// kernel: text_generation_forward.3
$region0: #{text_generation_forward.3}
  #allocation0 [shape = 'u32[]', space=smem, size = 0x4, offset = 0x4, fixed_abs, tag = 'smem constant byte address 0x4 - core index']
  #allocation1 [shape = 'u32[72,128]{1,0:T(1,128)}', space=vmem, size = 0x9000, scoped, tag = 'internal scratch']
  #allocation2 [shape = 'f32[16,128]{1,0:T(8,128)}', space=vmem, size = 0x2000, scoped, tag = 'scratch operand']
  %s0 = inlined_call_operand.hbm [shape: f32[16,16], index: 0, kind: input, shape index: {}]
  %s1 = inlined_call_operand.hbm [shape: bf16[16,128], index: 1, kind: input, shape index: {}]
  %s2 = inlined_call_operand.hbm [shape: f32[1,128], index: 2, kind: input, shape index: {}]
  %s3 = inlined_call_operand.vmem [shape: f32[16,128], index: 3, kind: output, shape index: {}]
  %s4 = sld [smem:[#allocation0]]
  $region42: #{text_generation_forward.3} parent=0
    _
  %s6 = ssub.s32 1, %s4
  %s7 = scalar_select 0, %s6, %s4
  $region1: #{text_generation_forward.3} parent=0
    #allocation3 [shape = 'u8[8192]{0}', space=vmem, size = 0x2000, scoped, tag = 'input window, operand 0, single buffered']
    #allocation4 [shape = 's32[1]{0}', space=sflag, size = 0x4, scoped, tag = 'scoped memory for text_generation_forward.3']
    #allocation5 [shape = 'u8[4096]{0}', space=vmem, size = 0x1000, scoped, tag = 'input window, operand 1, single buffered']
    #allocation6 [shape = 's32[1]{0}', space=sflag, size = 0x4, scoped, tag = 'scoped memory for text_generation_forward.3']
    #allocation7 [shape = 'u8[512]{0}', space=vmem, size = 0x400, scoped, tag = 'input window, operand 2, single buffered']
    %8 = vsyncpa [#allocation4], 0
    %9 = vsyncpa [#allocation6], 0
    // Predicated region
    $region2: #{text_generation_forward.3} parent=1 // pred_check
      _
    $region3: #{text_generation_forward.3} parent=1 // pred_check_branch
      %11 = sbr.rel (0) target = $region5
    $region4: #{text_generation_forward.3} parent=1 // pred_region
      %13 = vsyncadd [#allocation4], 0
      %s14 = sshll.u32 %s0, 4
      %s15 = int_to_ptr.hbm [resolvable:$true] %s14
      %s16 = sshll.u32 [#allocation3], 4
      %s17 = int_to_ptr.vmem [resolvable:$true] %s16
      %22 = dma.hbm_to_vmem [thread:$0]  %s15, 256, %s17, [#allocation4], 128, 128, 8
    $region5: #{text_generation_forward.3} parent=1 // pred_fallthru
      _
    // Predicated region
    $region6: #{text_generation_forward.3} parent=1 // pred_check
      _
    $region7: #{text_generation_forward.3} parent=1 // pred_check_branch
      %24 = sbr.rel (0) target = $region9
    $region8: #{text_generation_forward.3} parent=1 // pred_region
      %26 = vsyncadd [#allocation6], 0
      %s27 = sshll.u32 %s1, 4
      %s28 = int_to_ptr.hbm [resolvable:$true] %s27
      %s29 = sshll.u32 [#allocation5], 4
      %s30 = int_to_ptr.vmem [resolvable:$true] %s29
      %35 = dma.hbm_to_vmem [thread:$0]  %s28, 128, %s30, [#allocation6], 64, 64, 4
    $region9: #{text_generation_forward.3} parent=1 // pred_fallthru
      _
    // Predicated region
    $region10: #{text_generation_forward.3} parent=1 // pred_check
      _
    $region11: #{text_generation_forward.3} parent=1 // pred_check_branch
      %37 = sbr.rel (0) target = $region13
    $region12: #{text_generation_forward.3} parent=1 // pred_region
      %39 = vsyncadd [#allocation6], 0
      %s41 = sshll.u32 %s2, 4
      %s42 = int_to_ptr.hbm [resolvable:$true] %s41
      %s43 = sshll.u32 [#allocation7], 4
      %s44 = int_to_ptr.vmem [resolvable:$true] %s43
      %46 = dma.hbm_to_vmem [thread:$0]  %s42, 16, %s44, [#allocation6]
    $region13: #{text_generation_forward.3} parent=1 // pred_fallthru
      _
    // Predicated region
    $region14: #{text_generation_forward.3} parent=1 // pred_check
      _
    $region15: #{text_generation_forward.3} parent=1 // pred_check_branch
      %48 = sbr.rel (0) target = $region17
    $region16: #{text_generation_forward.3} parent=1 // pred_region
      %50 = dma.done [#allocation4], 256
    $region17: #{text_generation_forward.3} parent=1 // pred_fallthru
      _
    // Predicated region
    $region18: #{text_generation_forward.3} parent=1 // pred_check
      _
    $region19: #{text_generation_forward.3} parent=1 // pred_check_branch
      %52 = sbr.rel (0) target = $region21
    $region20: #{text_generation_forward.3} parent=1 // pred_region
      %54 = dma.done [#allocation6], 128
    $region21: #{text_generation_forward.3} parent=1 // pred_fallthru
      _
    // Predicated region
    $region22: #{text_generation_forward.3} parent=1 // pred_check
      _
    $region23: #{text_generation_forward.3} parent=1 // pred_check_branch
      %56 = sbr.rel (0) target = $region25
    $region24: #{text_generation_forward.3} parent=1 // pred_region
      %58 = dma.done [#allocation6], 16
    $region25: #{text_generation_forward.3} parent=1 // pred_fallthru
      _
    %p60 = scmp.eq.s32.totalorder 0, 0
    // Predicated region
    $region26: #{text_generation_forward.3} parent=1 // pred_check
      %p61 = pneg %p60
    $region27: #{text_generation_forward.3} parent=1 // pred_check_branch
      %63 = sbr.rel (%p61) target = $region29
    $region28: #{text_generation_forward.3} parent=1 // pred_region
      %64 = vst [vmem:[#allocation2] sm:$0xff] 0.0
      %65 = vst [vmem:[#allocation2 + $0x8] sm:$0xff] 0.0
    $region29: #{text_generation_forward.3} parent=1 // pred_fallthru
      _
    %v66 = vld [vmem:[#allocation2] sm:$0xff]
    %v67 = vld [vmem:[#allocation2 + $0x8] sm:$0xff]
    %v68 = vld [vmem:[#allocation3] sm:$0xff]
    %v69 = vld [vmem:[#allocation3 + $0x8] sm:$0xff]
    %v70 = vpack.c.bf16 %v69, %v68
    %v71 = vld [vmem:[#allocation5] sm:$0xf]
    %v72 = vld [vmem:[#allocation5 + $0x4] sm:$0xf]
    %v75 = vunpack.c.l.b16 %v71
    %v76 = vunpack.c.l.b16 %v72
    %v77 = vpack.c.b16 %v76, %v75
    %vm79 = vcmask 130048
    %v81 = vsel %vm79, %v70, 0
    %83 = vmatpush.bf16.msra.mxu0 0
    %84 = vmatpush.bf16.msra.mxu0 0
    %85 = vmatpush.bf16.msra.mxu0 0
    %86 = vmatpush.bf16.msra.mxu0 0
    %87 = vmatpush.bf16.msra.mxu0 0
    %88 = vmatpush.bf16.msra.mxu0 0
    %89 = vmatpush.bf16.msra.mxu0 0
    %90 = vmatpush.bf16.msra.mxu0 %v77
    %91 = vmatmul.bf16.gmra.mxu0 %v81
    %v92 = vpop.f32.mrf.mxu0
    %v93 = vadd.f32 0.0, %v92
    %v94 = vpop.f32.mrf.mxu0
    %v95 = vadd.f32 0.0, %v94
    %96 = vdwg.mxu0
    %v97 = vadd.f32 %v66, %v93
    %v98 = vadd.f32 %v67, %v95
    %99 = vst [vmem:[#allocation2] sm:$0xff] %v97
    %100 = vst [vmem:[#allocation2 + $0x8] sm:$0xff] %v98
    // Predicated region
    $region30: #{text_generation_forward.3} parent=1 // pred_check
      %p101 = pneg %p60
    $region31: #{text_generation_forward.3} parent=1 // pred_check_branch
      %103 = sbr.rel (%p101) target = $region33
    $region32: #{text_generation_forward.3} parent=1 // pred_region
      %v104 = vld [vmem:[#allocation2] sm:$0xff]
      %v105 = vld [vmem:[#allocation2 + $0x8] sm:$0xff]
      %v106 = vld [vmem:[#allocation7] sm:$0x1]
      %v108 = vperm.slane %v106, 0
      %v110 = vadd.f32 %v104, %v108
      %v111 = vadd.f32 %v105, %v108
      %112 = vst [vmem:[%s3] sm:$0xff] %v110
      %113 = vst [vmem:[%s3 + $0x8] sm:$0xff] %v111
    $region33: #{text_generation_forward.3} parent=1 // pred_fallthru
      _
    // Predicated region
    $region34: #{text_generation_forward.3} parent=1 // pred_check
      _
    $region35: #{text_generation_forward.3} parent=1 // pred_check_branch
      %115 = sbr.rel (0) target = $region37
    $region36: #{text_generation_forward.3} parent=1 // pred_region
      _
    $region37: #{text_generation_forward.3} parent=1 // pred_fallthru
      _
    // Predicated region
    $region38: #{text_generation_forward.3} parent=1 // pred_check
      _
    $region39: #{text_generation_forward.3} parent=1 // pred_check_branch
      %117 = sbr.rel (0) target = $region41
    $region40: #{text_generation_forward.3} parent=1 // pred_region
      _
    $region41: #{text_generation_forward.3} parent=1 // pred_fallthru
      _
    %118 = vsyncpa [#allocation4], 1
    %119 = vsyncpa [#allocation6], 1

// kernel: text_generation_forward.4
$region0: #{text_generation_forward.4}
  #allocation0 [shape = 'u32[]', space=smem, size = 0x4, offset = 0x4, fixed_abs, tag = 'smem constant byte address 0x4 - core index']
  #allocation1 [shape = 'u32[72,128]{1,0:T(1,128)}', space=vmem, size = 0x9000, scoped, tag = 'internal scratch']
  #allocation2 [shape = 'f32[2,32]{1,0:T(2,128)}', space=vmem, size = 0x400, scoped, tag = 'scratch operand']
  #allocation3 [shape = 'f32[2,32]{1,0:T(2,128)}', space=vmem, size = 0x400, scoped, tag = 'scratch operand']
  #allocation4 [shape = 'f32[2,32]{1,0:T(2,128)}', space=vmem, size = 0x400, scoped, tag = 'scratch operand']
  #allocation5 [shape = 'f32[2,32]{1,0:T(2,128)}', space=vmem, size = 0x400, scoped, tag = 'scratch operand']
  %s0 = inlined_call_operand.vmem [shape: f32[8,2,128], index: 0, kind: input, shape index: {}]
  %s1 = inlined_call_operand.hbm [shape: bf16[32,128], index: 1, kind: input, shape index: {}]
  %s2 = inlined_call_operand.hbm [shape: bf16[32,128], index: 2, kind: input, shape index: {}]
  %s3 = inlined_call_operand.hbm [shape: bf16[32,128], index: 3, kind: input, shape index: {}]
  %s4 = inlined_call_operand.vmem [shape: f32[1,128], index: 4, kind: input, shape index: {}]
  %s5 = inlined_call_operand.vmem [shape: bf16[8,2,32], index: 5, kind: output, shape index: {}]
  %s6 = sld [smem:[#allocation0]]
  $region46: #{text_generation_forward.4} parent=0
    _
  %s8 = ssub.s32 1, %s6
  %s9 = scalar_select 0, %s8, %s6
  $region1: #{text_generation_forward.4} parent=0
    #allocation6 [shape = 'u8[8192]{0}', space=vmem, size = 0x2000, scoped, tag = 'input window, operand 1, single buffered']
    #allocation7 [shape = 's32[1]{0}', space=sflag, size = 0x4, scoped, tag = 'scoped memory for text_generation_forward.4']
    #allocation8 [shape = 'u8[8192]{0}', space=vmem, size = 0x2000, scoped, tag = 'input window, operand 2, single buffered']
    #allocation9 [shape = 's32[1]{0}', space=sflag, size = 0x4, scoped, tag = 'scoped memory for text_generation_forward.4']
    #allocation10 [shape = 'u8[8192]{0}', space=vmem, size = 0x2000, scoped, tag = 'input window, operand 3, single buffered']
    %10 = vsyncpa [#allocation7], 0
    %11 = vsyncpa [#allocation9], 0
    // Predicated region
    $region2: #{text_generation_forward.4} parent=1 // pred_check
      _
    $region3: #{text_generation_forward.4} parent=1 // pred_check_branch
      %13 = sbr.rel (0) target = $region5
    $region4: #{text_generation_forward.4} parent=1 // pred_region
      _
    $region5: #{text_generation_forward.4} parent=1 // pred_fallthru
      _
    // Predicated region
    $region6: #{text_generation_forward.4} parent=1 // pred_check
      _
    $region7: #{text_generation_forward.4} parent=1 // pred_check_branch
      %15 = sbr.rel (0) target = $region9
    $region8: #{text_generation_forward.4} parent=1 // pred_region
      %17 = vsyncadd [#allocation7], 0
      %s18 = sshll.u32 %s1, 4
      %s19 = int_to_ptr.hbm [resolvable:$true] %s18
      %s20 = sshll.u32 [#allocation6], 4
      %s21 = int_to_ptr.vmem [resolvable:$true] %s20
      %26 = dma.hbm_to_vmem [thread:$0]  %s19, 256, %s21, [#allocation7], 64, 64, 4
    $region9: #{text_generation_forward.4} parent=1 // pred_fallthru
      _
    // Predicated region
    $region10: #{text_generation_forward.4} parent=1 // pred_check
      _
    $region11: #{text_generation_forward.4} parent=1 // pred_check_branch
      %28 = sbr.rel (0) target = $region13
    $region12: #{text_generation_forward.4} parent=1 // pred_region
      %30 = vsyncadd [#allocation9], 0
      %s31 = sshll.u32 %s2, 4
      %s32 = int_to_ptr.hbm [resolvable:$true] %s31
      %s33 = sshll.u32 [#allocation8], 4
      %s34 = int_to_ptr.vmem [resolvable:$true] %s33
      %39 = dma.hbm_to_vmem [thread:$0]  %s32, 256, %s34, [#allocation9], 64, 64, 4
    $region13: #{text_generation_forward.4} parent=1 // pred_fallthru
      _
    // Predicated region
    $region14: #{text_generation_forward.4} parent=1 // pred_check
      _
    $region15: #{text_generation_forward.4} parent=1 // pred_check_branch
      %41 = sbr.rel (0) target = $region17
    $region16: #{text_generation_forward.4} parent=1 // pred_region
      %43 = vsyncadd [#allocation9], 0
      %s44 = sshll.u32 %s3, 4
      %s45 = int_to_ptr.hbm [resolvable:$true] %s44
      %s46 = sshll.u32 [#allocation10], 4
      %s47 = int_to_ptr.vmem [resolvable:$true] %s46
      %52 = dma.hbm_to_vmem [thread:$0]  %s45, 256, %s47, [#allocation9], 64, 64, 4
    $region17: #{text_generation_forward.4} parent=1 // pred_fallthru
      _
    // Predicated region
    $region18: #{text_generation_forward.4} parent=1 // pred_check
      _
    $region19: #{text_generation_forward.4} parent=1 // pred_check_branch
      %54 = sbr.rel (0) target = $region21
    $region20: #{text_generation_forward.4} parent=1 // pred_region
      _
    $region21: #{text_generation_forward.4} parent=1 // pred_fallthru
      _
    // Predicated region
    $region22: #{text_generation_forward.4} parent=1 // pred_check
      _
    $region23: #{text_generation_forward.4} parent=1 // pred_check_branch
      %56 = sbr.rel (0) target = $region25
    $region24: #{text_generation_forward.4} parent=1 // pred_region
      %58 = dma.done [#allocation7], 256
    $region25: #{text_generation_forward.4} parent=1 // pred_fallthru
      _
    // Predicated region
    $region26: #{text_generation_forward.4} parent=1 // pred_check
      _
    $region27: #{text_generation_forward.4} parent=1 // pred_check_branch
      %60 = sbr.rel (0) target = $region29
    $region28: #{text_generation_forward.4} parent=1 // pred_region
      %62 = dma.done [#allocation9], 256
    $region29: #{text_generation_forward.4} parent=1 // pred_fallthru
      _
    // Predicated region
    $region30: #{text_generation_forward.4} parent=1 // pred_check
      _
    $region31: #{text_generation_forward.4} parent=1 // pred_check_branch
      %64 = sbr.rel (0) target = $region33
    $region32: #{text_generation_forward.4} parent=1 // pred_region
      %66 = dma.done [#allocation9], 256
    $region33: #{text_generation_forward.4} parent=1 // pred_fallthru
      _
    %p68 = scmp.eq.s32.totalorder 0, 0
    // Predicated region
    $region34: #{text_generation_forward.4} parent=1 // pred_check
      %p69 = pneg %p68
    $region35: #{text_generation_forward.4} parent=1 // pred_check_branch
      %71 = sbr.rel (%p69) target = $region37
    $region36: #{text_generation_forward.4} parent=1 // pred_region
      %vm72 = vcmask 254976
      %73 = vst.msk [vmem:[#allocation2] sm:$0x3] %vm72, 0.0
      %74 = vst.msk [vmem:[#allocation3] sm:$0x3] %vm72, 0.0
      %75 = vst.msk [vmem:[#allocation4] sm:$0x3] %vm72, 0.0
      %76 = vst.msk [vmem:[#allocation5] sm:$0x3] %vm72, 0.0
    $region37: #{text_generation_forward.4} parent=1 // pred_fallthru
      _
    %v77 = vld [vmem:[#allocation6] sm:$0xf]
    %v78 = vld [vmem:[#allocation6 + $0x4] sm:$0xf]
    %v79 = vld [vmem:[#allocation6 + $0x8] sm:$0xf]
    %v80 = vld [vmem:[#allocation6 + $0xc] sm:$0xf]
    %v81 = vld [vmem:[#allocation8] sm:$0xf]
    %v82 = vld [vmem:[#allocation8 + $0x4] sm:$0xf]
    %v83 = vld [vmem:[#allocation8 + $0x8] sm:$0xf]
    %v84 = vld [vmem:[#allocation8 + $0xc] sm:$0xf]
    %v85 = vld [vmem:[#allocation10] sm:$0xf]
    %v86 = vld [vmem:[#allocation10 + $0x4] sm:$0xf]
    %v87 = vld [vmem:[#allocation10 + $0x8] sm:$0xf]
    %v88 = vld [vmem:[#allocation10 + $0xc] sm:$0xf]
    %v89 = vld [vmem:[%s4] sm:$0x1]
    %v90 = vld [vmem:[%s0] sm:$0x3]
    %v91 = vld [vmem:[#allocation2] sm:$0x3]
    %v92 = vpack.c.bf16 %v91, %v91
    %v97 = vunpack.c.l.b16 %v77
    %v98 = vunpack.c.l.b16 %v78
    %v99 = vunpack.c.l.b16 %v79
    %v100 = vunpack.c.l.b16 %v80
    %v101 = vpack.c.b16 %v98, %v97
    %v102 = vpack.c.b16 %v100, %v99
    %vm105 = vcmask 261120
    %v107 = vsel %vm105, %v92, 0
    %109 = vmatpush.bf16.msra.mxu0 0
    %110 = vmatpush.bf16.msra.mxu0 0
    %111 = vmatpush.bf16.msra.mxu0 0
    %112 = vmatpush.bf16.msra.mxu0 0
    %113 = vmatpush.bf16.msra.mxu0 0
    %114 = vmatpush.bf16.msra.mxu0 0
    %115 = vmatpush.bf16.msra.mxu0 %v102
    %116 = vmatpush.bf16.msra.mxu0 %v101
    %117 = vmatmul.bf16.gmra.mxu0 %v107
    %v118 = vpop.f32.mrf.mxu0
    %v119 = vadd.f32 0.0, %v118
    %v120 = vpop.f32.mrf.mxu0
    %121 = vdwg.mxu0
    %v122 = vadd.f32 %v90, %v119
    %v123 = vld [vmem:[#allocation3] sm:$0x3]
    %v124 = vxor.u32 %v122, 2147483648
    %v125 = vmul.f32 %v124, 1.442695
    %v126 = vpow.pop %v125
    %v127 = vadd.f32 %v126, 1.0
    %v128 = vrcp.pop %v127
    %v129 = vmul.f32 %v127, %v128
    %v130 = vsub.f32 1.0, %v129
    %v131 = vmul.f32 %v128, %v130
    %v132 = vadd.f32 %v128, %v131
    %vm133 = vweird.f32 %v127
    %vm134 = vweird.f32 %v128
    %vm135 = vmor %vm133, %vm134
    %v136 = vsel %vm135, %v128, %v132
    %v137 = vand.u32 2147483647, %v127
    %vm138 = vcmp.eq.f32.partialorder %v137, 8.507059e+37
    %v139 = vand.u32 %v127, 2147483648
    %v140 = vor.u32 1.1754944e-38, %v139
    %v141 = vsel %vm138, %v140, %v136
    %v142 = vmul.f32 1.0, %v141
    %v143 = vtanh.pop %v122
    %145 = vrot.lane.b32.xlu0 %v123, 32
    %v146 = vpop.permute.xlu0 %145
    %v148 = vmul.f32 %v142, %v146
    %150 = vrot.lane.b32.xlu0 %v143, 64
    %v151 = vpop.permute.xlu0 %150
    %v153 = vmul.f32 %v142, %v151
    %155 = vrot.lane.b32.xlu0 %v153, 32
    %v156 = vpop.permute.xlu0 %155
    %v158 = vadd.f32 %v148, %v156
    %v159 = vtanh.pop %v158
    %161 = vrot.lane.b32.xlu0 %v159, 64
    %v162 = vpop.permute.xlu0 %161
    %v164 = vmul.f32 %v142, %v162
    %166 = vrot.lane.b32.xlu0 %v164, 32
    %v167 = vpop.permute.xlu0 %166
    %vm169 = vcmask 254976
    %170 = vst.msk [vmem:[#allocation2] sm:$0x3] %vm169, %v167
    %172 = vrot.lane.b32.xlu0 %v158, 96
    %v173 = vpop.permute.xlu0 %172
    %175 = vst.msk [vmem:[#allocation3] sm:$0x3] %vm169, %v173
    %v176 = vpack.c.bf16 %v164, %v164
    %v177 = vld [vmem:[#allocation4] sm:$0x3]
    %v178 = vpack.c.bf16 %v177, %v177
    %v183 = vunpack.c.l.b16 %v85
    %v184 = vunpack.c.l.b16 %v86
    %v185 = vunpack.c.l.b16 %v87
    %v186 = vunpack.c.l.b16 %v88
    %v187 = vpack.c.b16 %v184, %v183
    %v188 = vpack.c.b16 %v186, %v185
    %v192 = vsel %vm105, %v178, 0
    %194 = vmatpush.bf16.msra.mxu0 0
    %195 = vmatpush.bf16.msra.mxu0 0
    %196 = vmatpush.bf16.msra.mxu0 0
    %197 = vmatpush.bf16.msra.mxu0 0
    %198 = vmatpush.bf16.msra.mxu0 0
    %199 = vmatpush.bf16.msra.mxu0 0
    %200 = vmatpush.bf16.msra.mxu0 %v188
    %201 = vmatpush.bf16.msra.mxu0 %v187
    %202 = vmatmul.bf16.gmra.mxu0 %v192
    %v203 = vpop.f32.mrf.mxu0
    %v204 = vadd.f32 0.0, %v203
    %v205 = vpop.f32.mrf.mxu0
    %206 = vdwg.mxu0
    %208 = vrot.lane.b32.xlu0 %v176, 32
    %v209 = vpop.permute.xlu0 %208
    %v214 = vunpack.c.l.b16 %v81
    %v215 = vunpack.c.l.b16 %v82
    %v216 = vunpack.c.l.b16 %v83
    %v217 = vunpack.c.l.b16 %v84
    %v218 = vpack.c.b16 %v215, %v214
    %v219 = vpack.c.b16 %v217, %v216
    %v223 = vsel %vm105, %v209, 0
    %225 = vmatpush.bf16.msra.mxu0 0
    %226 = vmatpush.bf16.msra.mxu0 0
    %227 = vmatpush.bf16.msra.mxu0 0
    %228 = vmatpush.bf16.msra.mxu0 0
    %229 = vmatpush.bf16.msra.mxu0 0
    %230 = vmatpush.bf16.msra.mxu0 0
    %231 = vmatpush.bf16.msra.mxu0 %v219
    %232 = vmatpush.bf16.msra.mxu0 %v218
    %233 = vmatmul.bf16.gmra.mxu0 %v223
    %v234 = vpop.f32.mrf.mxu0
    %v235 = vadd.f32 %v204, %v234
    %v236 = vpop.f32.mrf.mxu0
    %237 = vdwg.mxu0
    %v239 = vperm.slane %v89, 0
    %v241 = vadd.f32 %v235, %v239
    %v242 = vld [vmem:[#allocation5] sm:$0x3]
    %v243 = vxor.u32 %v241, 2147483648
    %v244 = vmul.f32 %v243, 1.442695
    %v245 = vpow.pop %v244
    %v246 = vadd.f32 %v245, 1.0
    %v247 = vrcp.pop %v246
    %v248 = vmul.f32 %v246, %v247
    %v249 = vsub.f32 1.0, %v248
    %v250 = vmul.f32 %v247, %v249
    %v251 = vadd.f32 %v247, %v250
    %vm252 = vweird.f32 %v246
    %vm253 = vweird.f32 %v247
    %vm254 = vmor %vm252, %vm253
    %v255 = vsel %vm254, %v247, %v251
    %v256 = vand.u32 2147483647, %v246
    %vm257 = vcmp.eq.f32.partialorder %v256, 8.507059e+37
    %v258 = vand.u32 %v246, 2147483648
    %v259 = vor.u32 1.1754944e-38, %v258
    %v260 = vsel %vm257, %v259, %v255
    %v261 = vmul.f32 1.0, %v260
    %v262 = vtanh.pop %v241
    %264 = vrot.lane.b32.xlu0 %v242, 32
    %v265 = vpop.permute.xlu0 %264
    %v267 = vmul.f32 %v261, %v265
    %269 = vrot.lane.b32.xlu0 %v262, 64
    %v270 = vpop.permute.xlu0 %269
    %v272 = vmul.f32 %v261, %v270
    %274 = vrot.lane.b32.xlu0 %v272, 32
    %v275 = vpop.permute.xlu0 %274
    %v277 = vadd.f32 %v267, %v275
    %v278 = vtanh.pop %v277
    %280 = vrot.lane.b32.xlu0 %v278, 64
    %v281 = vpop.permute.xlu0 %280
    %v283 = vmul.f32 %v261, %v281
    %285 = vrot.lane.b32.xlu0 %v283, 32
    %v286 = vpop.permute.xlu0 %285
    %288 = vst.msk [vmem:[#allocation4] sm:$0x3] %vm169, %v286
    %290 = vrot.lane.b32.xlu0 %v277, 96
    %v291 = vpop.permute.xlu0 %290
    %293 = vst.msk [vmem:[#allocation5] sm:$0x3] %vm169, %v291
    %v294 = vpack.c.bf16 %v283, %v283
    %v296 = vrot.slane %v294, 3
    %vm297 = vcmask 1040384
    %v300 = vsel %vm297, %v294, %v296
    %302 = vrot.lane.b32.xlu0 %v300, 32
    %v303 = vpop.permute.xlu0 %302
    %vm305 = vcmask 253952
    %306 = vst.msk [vmem:[%s5] sm:$0x1] %vm305, %v303
    %s307 = scalar_lea.vmem %s0, 2
    %v308 = vld [vmem:[%s307] sm:$0x3]
    %v309 = vld [vmem:[#allocation2] sm:$0x3]
    %v310 = vpack.c.bf16 %v309, %v309
    %v312 = vsel %vm105, %v310, 0
    %314 = vmatpush.bf16.msra.mxu0 0
    %315 = vmatpush.bf16.msra.mxu0 0
    %316 = vmatpush.bf16.msra.mxu0 0
    %317 = vmatpush.bf16.msra.mxu0 0
    %318 = vmatpush.bf16.msra.mxu0 0
    %319 = vmatpush.bf16.msra.mxu0 0
    %320 = vmatpush.bf16.msra.mxu0 %v102
    %321 = vmatpush.bf16.msra.mxu0 %v101
    %322 = vmatmul.bf16.gmra.mxu0 %v312
    %v323 = vpop.f32.mrf.mxu0
    %v324 = vadd.f32 0.0, %v323
    %v325 = vpop.f32.mrf.mxu0
    %326 = vdwg.mxu0
    %v327 = vadd.f32 %v308, %v324
    %v328 = vld [vmem:[#allocation3] sm:$0x3]
    %v329 = vxor.u32 %v327, 2147483648
    %v330 = vmul.f32 %v329, 1.442695
    %v331 = vpow.pop %v330
    %v332 = vadd.f32 %v331, 1.0
    %v333 = vrcp.pop %v332
    %v334 = vmul.f32 %v332, %v333
    %v335 = vsub.f32 1.0, %v334
    %v336 = vmul.f32 %v333, %v335
    %v337 = vadd.f32 %v333, %v336
    %vm338 = vweird.f32 %v332
    %vm339 = vweird.f32 %v333
    %vm340 = vmor %vm338, %vm339
    %v341 = vsel %vm340, %v333, %v337
    %v342 = vand.u32 2147483647, %v332
    %vm343 = vcmp.eq.f32.partialorder %v342, 8.507059e+37
    %v344 = vand.u32 %v332, 2147483648
    %v345 = vor.u32 1.1754944e-38, %v344
    %v346 = vsel %vm343, %v345, %v341
    %v347 = vmul.f32 1.0, %v346
    %v348 = vtanh.pop %v327
    %350 = vrot.lane.b32.xlu0 %v328, 32
    %v351 = vpop.permute.xlu0 %350
    %v353 = vmul.f32 %v347, %v351
    %355 = vrot.lane.b32.xlu0 %v348, 64
    %v356 = vpop.permute.xlu0 %355
    %v358 = vmul.f32 %v347, %v356
    %360 = vrot.lane.b32.xlu0 %v358, 32
    %v361 = vpop.permute.xlu0 %360
    %v363 = vadd.f32 %v353, %v361
    %v364 = vtanh.pop %v363
    %366 = vrot.lane.b32.xlu0 %v364, 64
    %v367 = vpop.permute.xlu0 %366
    %v369 = vmul.f32 %v347, %v367
    %371 = vrot.lane.b32.xlu0 %v369, 32
    %v372 = vpop.permute.xlu0 %371
    %374 = vst.msk [vmem:[#allocation2] sm:$0x3] %vm169, %v372
    %376 = vrot.lane.b32.xlu0 %v363, 96
    %v377 = vpop.permute.xlu0 %376
    %379 = vst.msk [vmem:[#allocation3] sm:$0x3] %vm169, %v377
    %v380 = vpack.c.bf16 %v369, %v369
    %v381 = vld [vmem:[#allocation4] sm:$0x3]
    %v382 = vpack.c.bf16 %v381, %v381
    %v384 = vsel %vm105, %v382, 0
    %386 = vmatpush.bf16.msra.mxu0 0
    %387 = vmatpush.bf16.msra.mxu0 0
    %388 = vmatpush.bf16.msra.mxu0 0
    %389 = vmatpush.bf16.msra.mxu0 0
    %390 = vmatpush.bf16.msra.mxu0 0
    %391 = vmatpush.bf16.msra.mxu0 0
    %392 = vmatpush.bf16.msra.mxu0 %v188
    %393 = vmatpush.bf16.msra.mxu0 %v187
    %394 = vmatmul.bf16.gmra.mxu0 %v384
    %v395 = vpop.f32.mrf.mxu0
    %v396 = vadd.f32 0.0, %v395
    %v397 = vpop.f32.mrf.mxu0
    %398 = vdwg.mxu0
    %400 = vrot.lane.b32.xlu0 %v380, 32
    %v401 = vpop.permute.xlu0 %400
    %v403 = vsel %vm105, %v401, 0
    %405 = vmatpush.bf16.msra.mxu0 0
    %406 = vmatpush.bf16.msra.mxu0 0
    %407 = vmatpush.bf16.msra.mxu0 0
    %408 = vmatpush.bf16.msra.mxu0 0
    %409 = vmatpush.bf16.msra.mxu0 0
    %410 = vmatpush.bf16.msra.mxu0 0
    %411 = vmatpush.bf16.msra.mxu0 %v219
    %412 = vmatpush.bf16.msra.mxu0 %v218
    %413 = vmatmul.bf16.gmra.mxu0 %v403
    %v414 = vpop.f32.mrf.mxu0
    %v415 = vadd.f32 %v396, %v414
    %v416 = vpop.f32.mrf.mxu0
    %417 = vdwg.mxu0
    %v418 = vadd.f32 %v415, %v239
    %v419 = vld [vmem:[#allocation5] sm:$0x3]
    %v420 = vxor.u32 %v418, 2147483648
    %v421 = vmul.f32 %v420, 1.442695
    %v422 = vpow.pop %v421
    %v423 = vadd.f32 %v422, 1.0
    %v424 = vrcp.pop %v423
    %v425 = vmul.f32 %v423, %v424
    %v426 = vsub.f32 1.0, %v425
    %v427 = vmul.f32 %v424, %v426
    %v428 = vadd.f32 %v424, %v427
    %vm429 = vweird.f32 %v423
    %vm430 = vweird.f32 %v424
    %vm431 = vmor %vm429, %vm430
    %v432 = vsel %vm431, %v424, %v428
    %v433 = vand.u32 2147483647, %v423
    %vm434 = vcmp.eq.f32.partialorder %v433, 8.507059e+37
    %v435 = vand.u32 %v423, 2147483648
    %v436 = vor.u32 1.1754944e-38, %v435
    %v437 = vsel %vm434, %v436, %v432
    %v438 = vmul.f32 1.0, %v437
    %v439 = vtanh.pop %v418
    %441 = vrot.lane.b32.xlu0 %v419, 32
    %v442 = vpop.permute.xlu0 %441
    %v444 = vmul.f32 %v438, %v442
    %446 = vrot.lane.b32.xlu0 %v439, 64
    %v447 = vpop.permute.xlu0 %446
    %v449 = vmul.f32 %v438, %v447
    %451 = vrot.lane.b32.xlu0 %v449, 32
    %v452 = vpop.permute.xlu0 %451
    %v454 = vadd.f32 %v444, %v452
    %v455 = vtanh.pop %v454
    %457 = vrot.lane.b32.xlu0 %v455, 64
    %v458 = vpop.permute.xlu0 %457
    %v460 = vmul.f32 %v438, %v458
    %462 = vrot.lane.b32.xlu0 %v460, 32
    %v463 = vpop.permute.xlu0 %462
    %465 = vst.msk [vmem:[#allocation4] sm:$0x3] %vm169, %v463
    %467 = vrot.lane.b32.xlu0 %v454, 96
    %v468 = vpop.permute.xlu0 %467
    %470 = vst.msk [vmem:[#allocation5] sm:$0x3] %vm169, %v468
    %v471 = vpack.c.bf16 %v460, %v460
    %v473 = vrot.slane %v471, 3
    %v476 = vsel %vm297, %v471, %v473
    %478 = vrot.lane.b32.xlu0 %v476, 32
    %v479 = vpop.permute.xlu0 %478
    %s481 = scalar_lea.vmem %s5, 1
    %482 = vst.msk [vmem:[%s481] sm:$0x1] %vm305, %v479
    %s483 = scalar_lea.vmem %s0, 4
    %v484 = vld [vmem:[%s483] sm:$0x3]
    %v485 = vld [vmem:[#allocation2] sm:$0x3]
    %v486 = vpack.c.bf16 %v485, %v485
    %v488 = vsel %vm105, %v486, 0
    %490 = vmatpush.bf16.msra.mxu0 0
    %491 = vmatpush.bf16.msra.mxu0 0
    %492 = vmatpush.bf16.msra.mxu0 0
    %493 = vmatpush.bf16.msra.mxu0 0
    %494 = vmatpush.bf16.msra.mxu0 0
    %495 = vmatpush.bf16.msra.mxu0 0
    %496 = vmatpush.bf16.msra.mxu0 %v102
    %497 = vmatpush.bf16.msra.mxu0 %v101
    %498 = vmatmul.bf16.gmra.mxu0 %v488
    %v499 = vpop.f32.mrf.mxu0
    %v500 = vadd.f32 0.0, %v499
    %v501 = vpop.f32.mrf.mxu0
    %502 = vdwg.mxu0
    %v503 = vadd.f32 %v484, %v500
    %v504 = vld [vmem:[#allocation3] sm:$0x3]
    %v505 = vxor.u32 %v503, 2147483648
    %v506 = vmul.f32 %v505, 1.442695
    %v507 = vpow.pop %v506
    %v508 = vadd.f32 %v507, 1.0
    %v509 = vrcp.pop %v508
    %v510 = vmul.f32 %v508, %v509
    %v511 = vsub.f32 1.0, %v510
    %v512 = vmul.f32 %v509, %v511
    %v513 = vadd.f32 %v509, %v512
    %vm514 = vweird.f32 %v508
    %vm515 = vweird.f32 %v509
    %vm516 = vmor %vm514, %vm515
    %v517 = vsel %vm516, %v509, %v513
    %v518 = vand.u32 2147483647, %v508
    %vm519 = vcmp.eq.f32.partialorder %v518, 8.507059e+37
    %v520 = vand.u32 %v508, 2147483648
    %v521 = vor.u32 1.1754944e-38, %v520
    %v522 = vsel %vm519, %v521, %v517
    %v523 = vmul.f32 1.0, %v522
    %v524 = vtanh.pop %v503
    %526 = vrot.lane.b32.xlu0 %v504, 32
    %v527 = vpop.permute.xlu0 %526
    %v529 = vmul.f32 %v523, %v527
    %531 = vrot.lane.b32.xlu0 %v524, 64
    %v532 = vpop.permute.xlu0 %531
    %v534 = vmul.f32 %v523, %v532
    %536 = vrot.lane.b32.xlu0 %v534, 32
    %v537 = vpop.permute.xlu0 %536
    %v539 = vadd.f32 %v529, %v537
    %v540 = vtanh.pop %v539
    %542 = vrot.lane.b32.xlu0 %v540, 64
    %v543 = vpop.permute.xlu0 %542
    %v545 = vmul.f32 %v523, %v543
    %547 = vrot.lane.b32.xlu0 %v545, 32
    %v548 = vpop.permute.xlu0 %547
    %550 = vst.msk [vmem:[#allocation2] sm:$0x3] %vm169, %v548
    %552 = vrot.lane.b32.xlu0 %v539, 96
    %v553 = vpop.permute.xlu0 %552
    %555 = vst.msk [vmem:[#allocation3] sm:$0x3] %vm169, %v553
    %v556 = vpack.c.bf16 %v545, %v545
    %v557 = vld [vmem:[#allocation4] sm:$0x3]
    %v558 = vpack.c.bf16 %v557, %v557
    %v560 = vsel %vm105, %v558, 0
    %562 = vmatpush.bf16.msra.mxu0 0
    %563 = vmatpush.bf16.msra.mxu0 0
    %564 = vmatpush.bf16.msra.mxu0 0
    %565 = vmatpush.bf16.msra.mxu0 0
    %566 = vmatpush.bf16.msra.mxu0 0
    %567 = vmatpush.bf16.msra.mxu0 0
    %568 = vmatpush.bf16.msra.mxu0 %v188
    %569 = vmatpush.bf16.msra.mxu0 %v187
    %570 = vmatmul.bf16.gmra.mxu0 %v560
    %v571 = vpop.f32.mrf.mxu0
    %v572 = vadd.f32 0.0, %v571
    %v573 = vpop.f32.mrf.mxu0
    %574 = vdwg.mxu0
    %576 = vrot.lane.b32.xlu0 %v556, 32
    %v577 = vpop.permute.xlu0 %576
    %v579 = vsel %vm105, %v577, 0
    %581 = vmatpush.bf16.msra.mxu0 0
    %582 = vmatpush.bf16.msra.mxu0 0
    %583 = vmatpush.bf16.msra.mxu0 0
    %584 = vmatpush.bf16.msra.mxu0 0
    %585 = vmatpush.bf16.msra.mxu0 0
    %586 = vmatpush.bf16.msra.mxu0 0
    %587 = vmatpush.bf16.msra.mxu0 %v219
    %588 = vmatpush.bf16.msra.mxu0 %v218
    %589 = vmatmul.bf16.gmra.mxu0 %v579
    %v590 = vpop.f32.mrf.mxu0
    %v591 = vadd.f32 %v572, %v590
    %v592 = vpop.f32.mrf.mxu0
    %593 = vdwg.mxu0
    %v594 = vadd.f32 %v591, %v239
    %v595 = vld [vmem:[#allocation5] sm:$0x3]
    %v596 = vxor.u32 %v594, 2147483648
    %v597 = vmul.f32 %v596, 1.442695
    %v598 = vpow.pop %v597
    %v599 = vadd.f32 %v598, 1.0
    %v600 = vrcp.pop %v599
    %v601 = vmul.f32 %v599, %v600
    %v602 = vsub.f32 1.0, %v601
    %v603 = vmul.f32 %v600, %v602
    %v604 = vadd.f32 %v600, %v603
    %vm605 = vweird.f32 %v599
    %vm606 = vweird.f32 %v600
    %vm607 = vmor %vm605, %vm606
    %v608 = vsel %vm607, %v600, %v604
    %v609 = vand.u32 2147483647, %v599
    %vm610 = vcmp.eq.f32.partialorder %v609, 8.507059e+37
    %v611 = vand.u32 %v599, 2147483648
    %v612 = vor.u32 1.1754944e-38, %v611
    %v613 = vsel %vm610, %v612, %v608
    %v614 = vmul.f32 1.0, %v613
    %v615 = vtanh.pop %v594
    %617 = vrot.lane.b32.xlu0 %v595, 32
    %v618 = vpop.permute.xlu0 %617
    %v620 = vmul.f32 %v614, %v618
    %622 = vrot.lane.b32.xlu0 %v615, 64
    %v623 = vpop.permute.xlu0 %622
    %v625 = vmul.f32 %v614, %v623
    %627 = vrot.lane.b32.xlu0 %v625, 32
    %v628 = vpop.permute.xlu0 %627
    %v630 = vadd.f32 %v620, %v628
    %v631 = vtanh.pop %v630
    %633 = vrot.lane.b32.xlu0 %v631, 64
    %v634 = vpop.permute.xlu0 %633
    %v636 = vmul.f32 %v614, %v634
    %638 = vrot.lane.b32.xlu0 %v636, 32
    %v639 = vpop.permute.xlu0 %638
    %641 = vst.msk [vmem:[#allocation4] sm:$0x3] %vm169, %v639
    %643 = vrot.lane.b32.xlu0 %v630, 96
    %v644 = vpop.permute.xlu0 %643
    %646 = vst.msk [vmem:[#allocation5] sm:$0x3] %vm169, %v644
    %v647 = vpack.c.bf16 %v636, %v636
    %v649 = vrot.slane %v647, 3
    %v652 = vsel %vm297, %v647, %v649
    %654 = vrot.lane.b32.xlu0 %v652, 32
    %v655 = vpop.permute.xlu0 %654
    %s657 = scalar_lea.vmem %s5, 2
    %658 = vst.msk [vmem:[%s657] sm:$0x1] %vm305, %v655
    %s659 = scalar_lea.vmem %s0, 6
    %v660 = vld [vmem:[%s659] sm:$0x3]
    %v661 = vld [vmem:[#allocation2] sm:$0x3]
    %v662 = vpack.c.bf16 %v661, %v661
    %v664 = vsel %vm105, %v662, 0
    %666 = vmatpush.bf16.msra.mxu0 0
    %667 = vmatpush.bf16.msra.mxu0 0
    %668 = vmatpush.bf16.msra.mxu0 0
    %669 = vmatpush.bf16.msra.mxu0 0
    %670 = vmatpush.bf16.msra.mxu0 0
    %671 = vmatpush.bf16.msra.mxu0 0
    %672 = vmatpush.bf16.msra.mxu0 %v102
    %673 = vmatpush.bf16.msra.mxu0 %v101
    %674 = vmatmul.bf16.gmra.mxu0 %v664
    %v675 = vpop.f32.mrf.mxu0
    %v676 = vadd.f32 0.0, %v675
    %v677 = vpop.f32.mrf.mxu0
    %678 = vdwg.mxu0
    %v679 = vadd.f32 %v660, %v676
    %v680 = vld [vmem:[#allocation3] sm:$0x3]
    %v681 = vxor.u32 %v679, 2147483648
    %v682 = vmul.f32 %v681, 1.442695
    %v683 = vpow.pop %v682
    %v684 = vadd.f32 %v683, 1.0
    %v685 = vrcp.pop %v684
    %v686 = vmul.f32 %v684, %v685
    %v687 = vsub.f32 1.0, %v686
    %v688 = vmul.f32 %v685, %v687
    %v689 = vadd.f32 %v685, %v688
    %vm690 = vweird.f32 %v684
    %vm691 = vweird.f32 %v685
    %vm692 = vmor %vm690, %vm691
    %v693 = vsel %vm692, %v685, %v689
    %v694 = vand.u32 2147483647, %v684
    %vm695 = vcmp.eq.f32.partialorder %v694, 8.507059e+37
    %v696 = vand.u32 %v684, 2147483648
    %v697 = vor.u32 1.1754944e-38, %v696
    %v698 = vsel %vm695, %v697, %v693
    %v699 = vmul.f32 1.0, %v698
    %v700 = vtanh.pop %v679
    %702 = vrot.lane.b32.xlu0 %v680, 32
    %v703 = vpop.permute.xlu0 %702
    %v705 = vmul.f32 %v699, %v703
    %707 = vrot.lane.b32.xlu0 %v700, 64
    %v708 = vpop.permute.xlu0 %707
    %v710 = vmul.f32 %v699, %v708
    %712 = vrot.lane.b32.xlu0 %v710, 32
    %v713 = vpop.permute.xlu0 %712
    %v715 = vadd.f32 %v705, %v713
    %v716 = vtanh.pop %v715
    %718 = vrot.lane.b32.xlu0 %v716, 64
    %v719 = vpop.permute.xlu0 %718
    %v721 = vmul.f32 %v699, %v719
    %723 = vrot.lane.b32.xlu0 %v721, 32
    %v724 = vpop.permute.xlu0 %723
    %726 = vst.msk [vmem:[#allocation2] sm:$0x3] %vm169, %v724
    %728 = vrot.lane.b32.xlu0 %v715, 96
    %v729 = vpop.permute.xlu0 %728
    %731 = vst.msk [vmem:[#allocation3] sm:$0x3] %vm169, %v729
    %v732 = vpack.c.bf16 %v721, %v721
    %v733 = vld [vmem:[#allocation4] sm:$0x3]
    %v734 = vpack.c.bf16 %v733, %v733
    %v736 = vsel %vm105, %v734, 0
    %738 = vmatpush.bf16.msra.mxu0 0
    %739 = vmatpush.bf16.msra.mxu0 0
    %740 = vmatpush.bf16.msra.mxu0 0
    %741 = vmatpush.bf16.msra.mxu0 0
    %742 = vmatpush.bf16.msra.mxu0 0
    %743 = vmatpush.bf16.msra.mxu0 0
    %744 = vmatpush.bf16.msra.mxu0 %v188
    %745 = vmatpush.bf16.msra.mxu0 %v187
    %746 = vmatmul.bf16.gmra.mxu0 %v736
    %v747 = vpop.f32.mrf.mxu0
    %v748 = vadd.f32 0.0, %v747
    %v749 = vpop.f32.mrf.mxu0
    %750 = vdwg.mxu0
    %752 = vrot.lane.b32.xlu0 %v732, 32
    %v753 = vpop.permute.xlu0 %752
    %v755 = vsel %vm105, %v753, 0
    %757 = vmatpush.bf16.msra.mxu0 0
    %758 = vmatpush.bf16.msra.mxu0 0
    %759 = vmatpush.bf16.msra.mxu0 0
    %760 = vmatpush.bf16.msra.mxu0 0
    %761 = vmatpush.bf16.msra.mxu0 0
    %762 = vmatpush.bf16.msra.mxu0 0
    %763 = vmatpush.bf16.msra.mxu0 %v219
    %764 = vmatpush.bf16.msra.mxu0 %v218
    %765 = vmatmul.bf16.gmra.mxu0 %v755
    %v766 = vpop.f32.mrf.mxu0
    %v767 = vadd.f32 %v748, %v766
    %v768 = vpop.f32.mrf.mxu0
    %769 = vdwg.mxu0
    %v770 = vadd.f32 %v767, %v239
    %v771 = vld [vmem:[#allocation5] sm:$0x3]
    %v772 = vxor.u32 %v770, 2147483648
    %v773 = vmul.f32 %v772, 1.442695
    %v774 = vpow.pop %v773
    %v775 = vadd.f32 %v774, 1.0
    %v776 = vrcp.pop %v775
    %v777 = vmul.f32 %v775, %v776
    %v778 = vsub.f32 1.0, %v777
    %v779 = vmul.f32 %v776, %v778
    %v780 = vadd.f32 %v776, %v779
    %vm781 = vweird.f32 %v775
    %vm782 = vweird.f32 %v776
    %vm783 = vmor %vm781, %vm782
    %v784 = vsel %vm783, %v776, %v780
    %v785 = vand.u32 2147483647, %v775
    %vm786 = vcmp.eq.f32.partialorder %v785, 8.507059e+37
    %v787 = vand.u32 %v775, 2147483648
    %v788 = vor.u32 1.1754944e-38, %v787
    %v789 = vsel %vm786, %v788, %v784
    %v790 = vmul.f32 1.0, %v789
    %v791 = vtanh.pop %v770
    %793 = vrot.lane.b32.xlu0 %v771, 32
    %v794 = vpop.permute.xlu0 %793
    %v796 = vmul.f32 %v790, %v794
    %798 = vrot.lane.b32.xlu0 %v791, 64
    %v799 = vpop.permute.xlu0 %798
    %v801 = vmul.f32 %v790, %v799
    %803 = vrot.lane.b32.xlu0 %v801, 32
    %v804 = vpop.permute.xlu0 %803
    %v806 = vadd.f32 %v796, %v804
    %v807 = vtanh.pop %v806
    %809 = vrot.lane.b32.xlu0 %v807, 64
    %v810 = vpop.permute.xlu0 %809
    %v812 = vmul.f32 %v790, %v810
    %814 = vrot.lane.b32.xlu0 %v812, 32
    %v815 = vpop.permute.xlu0 %814
    %817 = vst.msk [vmem:[#allocation4] sm:$0x3] %vm169, %v815
    %819 = vrot.lane.b32.xlu0 %v806, 96
    %v820 = vpop.permute.xlu0 %819
    %822 = vst.msk [vmem:[#allocation5] sm:$0x3] %vm169, %v820
    %v823 = vpack.c.bf16 %v812, %v812
    %v825 = vrot.slane %v823, 3
    %v828 = vsel %vm297, %v823, %v825
    %830 = vrot.lane.b32.xlu0 %v828, 32
    %v831 = vpop.permute.xlu0 %830
    %s833 = scalar_lea.vmem %s5, 3
    %834 = vst.msk [vmem:[%s833] sm:$0x1] %vm305, %v831
    %s835 = scalar_lea.vmem %s0, 8
    %v836 = vld [vmem:[%s835] sm:$0x3]
    %v837 = vld [vmem:[#allocation2] sm:$0x3]
    %v838 = vpack.c.bf16 %v837, %v837
    %v840 = vsel %vm105, %v838, 0
    %842 = vmatpush.bf16.msra.mxu0 0
    %843 = vmatpush.bf16.msra.mxu0 0
    %844 = vmatpush.bf16.msra.mxu0 0
    %845 = vmatpush.bf16.msra.mxu0 0
    %846 = vmatpush.bf16.msra.mxu0 0
    %847 = vmatpush.bf16.msra.mxu0 0
    %848 = vmatpush.bf16.msra.mxu0 %v102
    %849 = vmatpush.bf16.msra.mxu0 %v101
    %850 = vmatmul.bf16.gmra.mxu0 %v840
    %v851 = vpop.f32.mrf.mxu0
    %v852 = vadd.f32 0.0, %v851
    %v853 = vpop.f32.mrf.mxu0
    %854 = vdwg.mxu0
    %v855 = vadd.f32 %v836, %v852
    %v856 = vld [vmem:[#allocation3] sm:$0x3]
    %v857 = vxor.u32 %v855, 2147483648
    %v858 = vmul.f32 %v857, 1.442695
    %v859 = vpow.pop %v858
    %v860 = vadd.f32 %v859, 1.0
    %v861 = vrcp.pop %v860
    %v862 = vmul.f32 %v860, %v861
    %v863 = vsub.f32 1.0, %v862
    %v864 = vmul.f32 %v861, %v863
    %v865 = vadd.f32 %v861, %v864
    %vm866 = vweird.f32 %v860
    %vm867 = vweird.f32 %v861
    %vm868 = vmor %vm866, %vm867
    %v869 = vsel %vm868, %v861, %v865
    %v870 = vand.u32 2147483647, %v860
    %vm871 = vcmp.eq.f32.partialorder %v870, 8.507059e+37
    %v872 = vand.u32 %v860, 2147483648
    %v873 = vor.u32 1.1754944e-38, %v872
    %v874 = vsel %vm871, %v873, %v869
    %v875 = vmul.f32 1.0, %v874
    %v876 = vtanh.pop %v855
    %878 = vrot.lane.b32.xlu0 %v856, 32
    %v879 = vpop.permute.xlu0 %878
    %v881 = vmul.f32 %v875, %v879
    %883 = vrot.lane.b32.xlu0 %v876, 64
    %v884 = vpop.permute.xlu0 %883
    %v886 = vmul.f32 %v875, %v884
    %888 = vrot.lane.b32.xlu0 %v886, 32
    %v889 = vpop.permute.xlu0 %888
    %v891 = vadd.f32 %v881, %v889
    %v892 = vtanh.pop %v891
    %894 = vrot.lane.b32.xlu0 %v892, 64
    %v895 = vpop.permute.xlu0 %894
    %v897 = vmul.f32 %v875, %v895
    %899 = vrot.lane.b32.xlu0 %v897, 32
    %v900 = vpop.permute.xlu0 %899
    %902 = vst.msk [vmem:[#allocation2] sm:$0x3] %vm169, %v900
    %904 = vrot.lane.b32.xlu0 %v891, 96
    %v905 = vpop.permute.xlu0 %904
    %907 = vst.msk [vmem:[#allocation3] sm:$0x3] %vm169, %v905
    %v908 = vpack.c.bf16 %v897, %v897
    %v909 = vld [vmem:[#allocation4] sm:$0x3]
    %v910 = vpack.c.bf16 %v909, %v909
    %v912 = vsel %vm105, %v910, 0
    %914 = vmatpush.bf16.msra.mxu0 0
    %915 = vmatpush.bf16.msra.mxu0 0
    %916 = vmatpush.bf16.msra.mxu0 0
    %917 = vmatpush.bf16.msra.mxu0 0
    %918 = vmatpush.bf16.msra.mxu0 0
    %919 = vmatpush.bf16.msra.mxu0 0
    %920 = vmatpush.bf16.msra.mxu0 %v188
    %921 = vmatpush.bf16.msra.mxu0 %v187
    %922 = vmatmul.bf16.gmra.mxu0 %v912
    %v923 = vpop.f32.mrf.mxu0
    %v924 = vadd.f32 0.0, %v923
    %v925 = vpop.f32.mrf.mxu0
    %926 = vdwg.mxu0
    %928 = vrot.lane.b32.xlu0 %v908, 32
    %v929 = vpop.permute.xlu0 %928
    %v931 = vsel %vm105, %v929, 0
    %933 = vmatpush.bf16.msra.mxu0 0
    %934 = vmatpush.bf16.msra.mxu0 0
    %935 = vmatpush.bf16.msra.mxu0 0
    %936 = vmatpush.bf16.msra.mxu0 0
    %937 = vmatpush.bf16.msra.mxu0 0
    %938 = vmatpush.bf16.msra.mxu0 0
    %939 = vmatpush.bf16.msra.mxu0 %v219
    %940 = vmatpush.bf16.msra.mxu0 %v218
    %941 = vmatmul.bf16.gmra.mxu0 %v931
    %v942 = vpop.f32.mrf.mxu0
    %v943 = vadd.f32 %v924, %v942
    %v944 = vpop.f32.mrf.mxu0
    %945 = vdwg.mxu0
    %v946 = vadd.f32 %v943, %v239
    %v947 = vld [vmem:[#allocation5] sm:$0x3]
    %v948 = vxor.u32 %v946, 2147483648
    %v949 = vmul.f32 %v948, 1.442695
    %v950 = vpow.pop %v949
    %v951 = vadd.f32 %v950, 1.0
    %v952 = vrcp.pop %v951
    %v953 = vmul.f32 %v951, %v952
    %v954 = vsub.f32 1.0, %v953
    %v955 = vmul.f32 %v952, %v954
    %v956 = vadd.f32 %v952, %v955
    %vm957 = vweird.f32 %v951
    %vm958 = vweird.f32 %v952
    %vm959 = vmor %vm957, %vm958
    %v960 = vsel %vm959, %v952, %v956
    %v961 = vand.u32 2147483647, %v951
    %vm962 = vcmp.eq.f32.partialorder %v961, 8.507059e+37
    %v963 = vand.u32 %v951, 2147483648
    %v964 = vor.u32 1.1754944e-38, %v963
    %v965 = vsel %vm962, %v964, %v960
    %v966 = vmul.f32 1.0, %v965
    %v967 = vtanh.pop %v946
    %969 = vrot.lane.b32.xlu0 %v947, 32
    %v970 = vpop.permute.xlu0 %969
    %v972 = vmul.f32 %v966, %v970
    %974 = vrot.lane.b32.xlu0 %v967, 64
    %v975 = vpop.permute.xlu0 %974
    %v977 = vmul.f32 %v966, %v975
    %979 = vrot.lane.b32.xlu0 %v977, 32
    %v980 = vpop.permute.xlu0 %979
    %v982 = vadd.f32 %v972, %v980
    %v983 = vtanh.pop %v982
    %985 = vrot.lane.b32.xlu0 %v983, 64
    %v986 = vpop.permute.xlu0 %985
    %v988 = vmul.f32 %v966, %v986
    %990 = vrot.lane.b32.xlu0 %v988, 32
    %v991 = vpop.permute.xlu0 %990
    %993 = vst.msk [vmem:[#allocation4] sm:$0x3] %vm169, %v991
    %995 = vrot.lane.b32.xlu0 %v982, 96
    %v996 = vpop.permute.xlu0 %995
    %998 = vst.msk [vmem:[#allocation5] sm:$0x3] %vm169, %v996
    %v999 = vpack.c.bf16 %v988, %v988
    %v1001 = vrot.slane %v999, 3
    %v1004 = vsel %vm297, %v999, %v1001
    %1006 = vrot.lane.b32.xlu0 %v1004, 32
    %v1007 = vpop.permute.xlu0 %1006
    %s1009 = scalar_lea.vmem %s5, 4
    %1010 = vst.msk [vmem:[%s1009] sm:$0x1] %vm305, %v1007
    %s1011 = scalar_lea.vmem %s0, 10
    %v1012 = vld [vmem:[%s1011] sm:$0x3]
    %v1013 = vld [vmem:[#allocation2] sm:$0x3]
    %v1014 = vpack.c.bf16 %v1013, %v1013
    %v1016 = vsel %vm105, %v1014, 0
    %1018 = vmatpush.bf16.msra.mxu0 0
    %1019 = vmatpush.bf16.msra.mxu0 0
    %1020 = vmatpush.bf16.msra.mxu0 0
    %1021 = vmatpush.bf16.msra.mxu0 0
    %1022 = vmatpush.bf16.msra.mxu0 0
    %1023 = vmatpush.bf16.msra.mxu0 0
    %1024 = vmatpush.bf16.msra.mxu0 %v102
    %1025 = vmatpush.bf16.msra.mxu0 %v101
    %1026 = vmatmul.bf16.gmra.mxu0 %v1016
    %v1027 = vpop.f32.mrf.mxu0
    %v1028 = vadd.f32 0.0, %v1027
    %v1029 = vpop.f32.mrf.mxu0
    %1030 = vdwg.mxu0
    %v1031 = vadd.f32 %v1012, %v1028
    %v1032 = vld [vmem:[#allocation3] sm:$0x3]
    %v1033 = vxor.u32 %v1031, 2147483648
    %v1034 = vmul.f32 %v1033, 1.442695
    %v1035 = vpow.pop %v1034
    %v1036 = vadd.f32 %v1035, 1.0
    %v1037 = vrcp.pop %v1036
    %v1038 = vmul.f32 %v1036, %v1037
    %v1039 = vsub.f32 1.0, %v1038
    %v1040 = vmul.f32 %v1037, %v1039
    %v1041 = vadd.f32 %v1037, %v1040
    %vm1042 = vweird.f32 %v1036
    %vm1043 = vweird.f32 %v1037
    %vm1044 = vmor %vm1042, %vm1043
    %v1045 = vsel %vm1044, %v1037, %v1041
    %v1046 = vand.u32 2147483647, %v1036
    %vm1047 = vcmp.eq.f32.partialorder %v1046, 8.507059e+37
    %v1048 = vand.u32 %v1036, 2147483648
    %v1049 = vor.u32 1.1754944e-38, %v1048
    %v1050 = vsel %vm1047, %v1049, %v1045
    %v1051 = vmul.f32 1.0, %v1050
    %v1052 = vtanh.pop %v1031
    %1054 = vrot.lane.b32.xlu0 %v1032, 32
    %v1055 = vpop.permute.xlu0 %1054
    %v1057 = vmul.f32 %v1051, %v1055
    %1059 = vrot.lane.b32.xlu0 %v1052, 64
    %v1060 = vpop.permute.xlu0 %1059
    %v1062 = vmul.f32 %v1051, %v1060
    %1064 = vrot.lane.b32.xlu0 %v1062, 32
    %v1065 = vpop.permute.xlu0 %1064
    %v1067 = vadd.f32 %v1057, %v1065
    %v1068 = vtanh.pop %v1067
    %1070 = vrot.lane.b32.xlu0 %v1068, 64
    %v1071 = vpop.permute.xlu0 %1070
    %v1073 = vmul.f32 %v1051, %v1071
    %1075 = vrot.lane.b32.xlu0 %v1073, 32
    %v1076 = vpop.permute.xlu0 %1075
    %1078 = vst.msk [vmem:[#allocation2] sm:$0x3] %vm169, %v1076
    %1080 = vrot.lane.b32.xlu0 %v1067, 96
    %v1081 = vpop.permute.xlu0 %1080
    %1083 = vst.msk [vmem:[#allocation3] sm:$0x3] %vm169, %v1081
    %v1084 = vpack.c.bf16 %v1073, %v1073
    %v1085 = vld [vmem:[#allocation4] sm:$0x3]
    %v1086 = vpack.c.bf16 %v1085, %v1085
    %v1088 = vsel %vm105, %v1086, 0
    %1090 = vmatpush.bf16.msra.mxu0 0
    %1091 = vmatpush.bf16.msra.mxu0 0
    %1092 = vmatpush.bf16.msra.mxu0 0
    %1093 = vmatpush.bf16.msra.mxu0 0
    %1094 = vmatpush.bf16.msra.mxu0 0
    %1095 = vmatpush.bf16.msra.mxu0 0
    %1096 = vmatpush.bf16.msra.mxu0 %v188
    %1097 = vmatpush.bf16.msra.mxu0 %v187
    %1098 = vmatmul.bf16.gmra.mxu0 %v1088
    %v1099 = vpop.f32.mrf.mxu0
    %v1100 = vadd.f32 0.0, %v1099
    %v1101 = vpop.f32.mrf.mxu0
    %1102 = vdwg.mxu0
    %1104 = vrot.lane.b32.xlu0 %v1084, 32
    %v1105 = vpop.permute.xlu0 %1104
    %v1107 = vsel %vm105, %v1105, 0
    %1109 = vmatpush.bf16.msra.mxu0 0
    %1110 = vmatpush.bf16.msra.mxu0 0
    %1111 = vmatpush.bf16.msra.mxu0 0
    %1112 = vmatpush.bf16.msra.mxu0 0
    %1113 = vmatpush.bf16.msra.mxu0 0
    %1114 = vmatpush.bf16.msra.mxu0 0
    %1115 = vmatpush.bf16.msra.mxu0 %v219
    %1116 = vmatpush.bf16.msra.mxu0 %v218
    %1117 = vmatmul.bf16.gmra.mxu0 %v1107
    %v1118 = vpop.f32.mrf.mxu0
    %v1119 = vadd.f32 %v1100, %v1118
    %v1120 = vpop.f32.mrf.mxu0
    %1121 = vdwg.mxu0
    %v1122 = vadd.f32 %v1119, %v239
    %v1123 = vld [vmem:[#allocation5] sm:$0x3]
    %v1124 = vxor.u32 %v1122, 2147483648
    %v1125 = vmul.f32 %v1124, 1.442695
    %v1126 = vpow.pop %v1125
    %v1127 = vadd.f32 %v1126, 1.0
    %v1128 = vrcp.pop %v1127
    %v1129 = vmul.f32 %v1127, %v1128
    %v1130 = vsub.f32 1.0, %v1129
    %v1131 = vmul.f32 %v1128, %v1130
    %v1132 = vadd.f32 %v1128, %v1131
    %vm1133 = vweird.f32 %v1127
    %vm1134 = vweird.f32 %v1128
    %vm1135 = vmor %vm1133, %vm1134
    %v1136 = vsel %vm1135, %v1128, %v1132
    %v1137 = vand.u32 2147483647, %v1127
    %vm1138 = vcmp.eq.f32.partialorder %v1137, 8.507059e+37
    %v1139 = vand.u32 %v1127, 2147483648
    %v1140 = vor.u32 1.1754944e-38, %v1139
    %v1141 = vsel %vm1138, %v1140, %v1136
    %v1142 = vmul.f32 1.0, %v1141
    %v1143 = vtanh.pop %v1122
    %1145 = vrot.lane.b32.xlu0 %v1123, 32
    %v1146 = vpop.permute.xlu0 %1145
    %v1148 = vmul.f32 %v1142, %v1146
    %1150 = vrot.lane.b32.xlu0 %v1143, 64
    %v1151 = vpop.permute.xlu0 %1150
    %v1153 = vmul.f32 %v1142, %v1151
    %1155 = vrot.lane.b32.xlu0 %v1153, 32
    %v1156 = vpop.permute.xlu0 %1155
    %v1158 = vadd.f32 %v1148, %v1156
    %v1159 = vtanh.pop %v1158
    %1161 = vrot.lane.b32.xlu0 %v1159, 64
    %v1162 = vpop.permute.xlu0 %1161
    %v1164 = vmul.f32 %v1142, %v1162
    %1166 = vrot.lane.b32.xlu0 %v1164, 32
    %v1167 = vpop.permute.xlu0 %1166
    %1169 = vst.msk [vmem:[#allocation4] sm:$0x3] %vm169, %v1167
    %1171 = vrot.lane.b32.xlu0 %v1158, 96
    %v1172 = vpop.permute.xlu0 %1171
    %1174 = vst.msk [vmem:[#allocation5] sm:$0x3] %vm169, %v1172
    %v1175 = vpack.c.bf16 %v1164, %v1164
    %v1177 = vrot.slane %v1175, 3
    %v1180 = vsel %vm297, %v1175, %v1177
    %1182 = vrot.lane.b32.xlu0 %v1180, 32
    %v1183 = vpop.permute.xlu0 %1182
    %s1185 = scalar_lea.vmem %s5, 5
    %1186 = vst.msk [vmem:[%s1185] sm:$0x1] %vm305, %v1183
    %s1187 = scalar_lea.vmem %s0, 12
    %v1188 = vld [vmem:[%s1187] sm:$0x3]
    %v1189 = vld [vmem:[#allocation2] sm:$0x3]
    %v1190 = vpack.c.bf16 %v1189, %v1189
    %v1192 = vsel %vm105, %v1190, 0
    %1194 = vmatpush.bf16.msra.mxu0 0
    %1195 = vmatpush.bf16.msra.mxu0 0
    %1196 = vmatpush.bf16.msra.mxu0 0
    %1197 = vmatpush.bf16.msra.mxu0 0
    %1198 = vmatpush.bf16.msra.mxu0 0
    %1199 = vmatpush.bf16.msra.mxu0 0
    %1200 = vmatpush.bf16.msra.mxu0 %v102
    %1201 = vmatpush.bf16.msra.mxu0 %v101
    %1202 = vmatmul.bf16.gmra.mxu0 %v1192
    %v1203 = vpop.f32.mrf.mxu0
    %v1204 = vadd.f32 0.0, %v1203
    %v1205 = vpop.f32.mrf.mxu0
    %1206 = vdwg.mxu0
    %v1207 = vadd.f32 %v1188, %v1204
    %v1208 = vld [vmem:[#allocation3] sm:$0x3]
    %v1209 = vxor.u32 %v1207, 2147483648
    %v1210 = vmul.f32 %v1209, 1.442695
    %v1211 = vpow.pop %v1210
    %v1212 = vadd.f32 %v1211, 1.0
    %v1213 = vrcp.pop %v1212
    %v1214 = vmul.f32 %v1212, %v1213
    %v1215 = vsub.f32 1.0, %v1214
    %v1216 = vmul.f32 %v1213, %v1215
    %v1217 = vadd.f32 %v1213, %v1216
    %vm1218 = vweird.f32 %v1212
    %vm1219 = vweird.f32 %v1213
    %vm1220 = vmor %vm1218, %vm1219
    %v1221 = vsel %vm1220, %v1213, %v1217
    %v1222 = vand.u32 2147483647, %v1212
    %vm1223 = vcmp.eq.f32.partialorder %v1222, 8.507059e+37
    %v1224 = vand.u32 %v1212, 2147483648
    %v1225 = vor.u32 1.1754944e-38, %v1224
    %v1226 = vsel %vm1223, %v1225, %v1221
    %v1227 = vmul.f32 1.0, %v1226
    %v1228 = vtanh.pop %v1207
    %1230 = vrot.lane.b32.xlu0 %v1208, 32
    %v1231 = vpop.permute.xlu0 %1230
    %v1233 = vmul.f32 %v1227, %v1231
    %1235 = vrot.lane.b32.xlu0 %v1228, 64
    %v1236 = vpop.permute.xlu0 %1235
    %v1238 = vmul.f32 %v1227, %v1236
    %1240 = vrot.lane.b32.xlu0 %v1238, 32
    %v1241 = vpop.permute.xlu0 %1240
    %v1243 = vadd.f32 %v1233, %v1241
    %v1244 = vtanh.pop %v1243
    %1246 = vrot.lane.b32.xlu0 %v1244, 64
    %v1247 = vpop.permute.xlu0 %1246
    %v1249 = vmul.f32 %v1227, %v1247
    %1251 = vrot.lane.b32.xlu0 %v1249, 32
    %v1252 = vpop.permute.xlu0 %1251
    %1254 = vst.msk [vmem:[#allocation2] sm:$0x3] %vm169, %v1252
    %1256 = vrot.lane.b32.xlu0 %v1243, 96
    %v1257 = vpop.permute.xlu0 %1256
    %1259 = vst.msk [vmem:[#allocation3] sm:$0x3] %vm169, %v1257
    %v1260 = vpack.c.bf16 %v1249, %v1249
    %v1261 = vld [vmem:[#allocation4] sm:$0x3]
    %v1262 = vpack.c.bf16 %v1261, %v1261
    %v1264 = vsel %vm105, %v1262, 0
    %1266 = vmatpush.bf16.msra.mxu0 0
    %1267 = vmatpush.bf16.msra.mxu0 0
    %1268 = vmatpush.bf16.msra.mxu0 0
    %1269 = vmatpush.bf16.msra.mxu0 0
    %1270 = vmatpush.bf16.msra.mxu0 0
    %1271 = vmatpush.bf16.msra.mxu0 0
    %1272 = vmatpush.bf16.msra.mxu0 %v188
    %1273 = vmatpush.bf16.msra.mxu0 %v187
    %1274 = vmatmul.bf16.gmra.mxu0 %v1264
    %v1275 = vpop.f32.mrf.mxu0
    %v1276 = vadd.f32 0.0, %v1275
    %v1277 = vpop.f32.mrf.mxu0
    %1278 = vdwg.mxu0
    %1280 = vrot.lane.b32.xlu0 %v1260, 32
    %v1281 = vpop.permute.xlu0 %1280
    %v1283 = vsel %vm105, %v1281, 0
    %1285 = vmatpush.bf16.msra.mxu0 0
    %1286 = vmatpush.bf16.msra.mxu0 0
    %1287 = vmatpush.bf16.msra.mxu0 0
    %1288 = vmatpush.bf16.msra.mxu0 0
    %1289 = vmatpush.bf16.msra.mxu0 0
    %1290 = vmatpush.bf16.msra.mxu0 0
    %1291 = vmatpush.bf16.msra.mxu0 %v219
    %1292 = vmatpush.bf16.msra.mxu0 %v218
    %1293 = vmatmul.bf16.gmra.mxu0 %v1283
    %v1294 = vpop.f32.mrf.mxu0
    %v1295 = vadd.f32 %v1276, %v1294
    %v1296 = vpop.f32.mrf.mxu0
    %1297 = vdwg.mxu0
    %v1298 = vadd.f32 %v1295, %v239
    %v1299 = vld [vmem:[#allocation5] sm:$0x3]
    %v1300 = vxor.u32 %v1298, 2147483648
    %v1301 = vmul.f32 %v1300, 1.442695
    %v1302 = vpow.pop %v1301
    %v1303 = vadd.f32 %v1302, 1.0
    %v1304 = vrcp.pop %v1303
    %v1305 = vmul.f32 %v1303, %v1304
    %v1306 = vsub.f32 1.0, %v1305
    %v1307 = vmul.f32 %v1304, %v1306
    %v1308 = vadd.f32 %v1304, %v1307
    %vm1309 = vweird.f32 %v1303
    %vm1310 = vweird.f32 %v1304
    %vm1311 = vmor %vm1309, %vm1310
    %v1312 = vsel %vm1311, %v1304, %v1308
    %v1313 = vand.u32 2147483647, %v1303
    %vm1314 = vcmp.eq.f32.partialorder %v1313, 8.507059e+37
    %v1315 = vand.u32 %v1303, 2147483648
    %v1316 = vor.u32 1.1754944e-38, %v1315
    %v1317 = vsel %vm1314, %v1316, %v1312
    %v1318 = vmul.f32 1.0, %v1317
    %v1319 = vtanh.pop %v1298
    %1321 = vrot.lane.b32.xlu0 %v1299, 32
    %v1322 = vpop.permute.xlu0 %1321
    %v1324 = vmul.f32 %v1318, %v1322
    %1326 = vrot.lane.b32.xlu0 %v1319, 64
    %v1327 = vpop.permute.xlu0 %1326
    %v1329 = vmul.f32 %v1318, %v1327
    %1331 = vrot.lane.b32.xlu0 %v1329, 32
    %v1332 = vpop.permute.xlu0 %1331
    %v1334 = vadd.f32 %v1324, %v1332
    %v1335 = vtanh.pop %v1334
    %1337 = vrot.lane.b32.xlu0 %v1335, 64
    %v1338 = vpop.permute.xlu0 %1337
    %v1340 = vmul.f32 %v1318, %v1338
    %1342 = vrot.lane.b32.xlu0 %v1340, 32
    %v1343 = vpop.permute.xlu0 %1342
    %1345 = vst.msk [vmem:[#allocation4] sm:$0x3] %vm169, %v1343
    %1347 = vrot.lane.b32.xlu0 %v1334, 96
    %v1348 = vpop.permute.xlu0 %1347
    %1350 = vst.msk [vmem:[#allocation5] sm:$0x3] %vm169, %v1348
    %v1351 = vpack.c.bf16 %v1340, %v1340
    %v1353 = vrot.slane %v1351, 3
    %v1356 = vsel %vm297, %v1351, %v1353
    %1358 = vrot.lane.b32.xlu0 %v1356, 32
    %v1359 = vpop.permute.xlu0 %1358
    %s1361 = scalar_lea.vmem %s5, 6
    %1362 = vst.msk [vmem:[%s1361] sm:$0x1] %vm305, %v1359
    %s1363 = scalar_lea.vmem %s0, 14
    %v1364 = vld [vmem:[%s1363] sm:$0x3]
    %v1365 = vld [vmem:[#allocation2] sm:$0x3]
    %v1366 = vpack.c.bf16 %v1365, %v1365
    %v1368 = vsel %vm105, %v1366, 0
    %1370 = vmatpush.bf16.msra.mxu0 0
    %1371 = vmatpush.bf16.msra.mxu0 0
    %1372 = vmatpush.bf16.msra.mxu0 0
    %1373 = vmatpush.bf16.msra.mxu0 0
    %1374 = vmatpush.bf16.msra.mxu0 0
    %1375 = vmatpush.bf16.msra.mxu0 0
    %1376 = vmatpush.bf16.msra.mxu0 %v102
    %1377 = vmatpush.bf16.msra.mxu0 %v101
    %1378 = vmatmul.bf16.gmra.mxu0 %v1368
    %v1379 = vpop.f32.mrf.mxu0
    %v1380 = vadd.f32 0.0, %v1379
    %v1381 = vpop.f32.mrf.mxu0
    %1382 = vdwg.mxu0
    %v1383 = vadd.f32 %v1364, %v1380
    %v1384 = vld [vmem:[#allocation3] sm:$0x3]
    %v1385 = vxor.u32 %v1383, 2147483648
    %v1386 = vmul.f32 %v1385, 1.442695
    %v1387 = vpow.pop %v1386
    %v1388 = vadd.f32 %v1387, 1.0
    %v1389 = vrcp.pop %v1388
    %v1390 = vmul.f32 %v1388, %v1389
    %v1391 = vsub.f32 1.0, %v1390
    %v1392 = vmul.f32 %v1389, %v1391
    %v1393 = vadd.f32 %v1389, %v1392
    %vm1394 = vweird.f32 %v1388
    %vm1395 = vweird.f32 %v1389
    %vm1396 = vmor %vm1394, %vm1395
    %v1397 = vsel %vm1396, %v1389, %v1393
    %v1398 = vand.u32 2147483647, %v1388
    %vm1399 = vcmp.eq.f32.partialorder %v1398, 8.507059e+37
    %v1400 = vand.u32 %v1388, 2147483648
    %v1401 = vor.u32 1.1754944e-38, %v1400
    %v1402 = vsel %vm1399, %v1401, %v1397
    %v1403 = vmul.f32 1.0, %v1402
    %v1404 = vtanh.pop %v1383
    %1406 = vrot.lane.b32.xlu0 %v1384, 32
    %v1407 = vpop.permute.xlu0 %1406
    %v1409 = vmul.f32 %v1403, %v1407
    %1411 = vrot.lane.b32.xlu0 %v1404, 64
    %v1412 = vpop.permute.xlu0 %1411
    %v1414 = vmul.f32 %v1403, %v1412
    %1416 = vrot.lane.b32.xlu0 %v1414, 32
    %v1417 = vpop.permute.xlu0 %1416
    %v1419 = vadd.f32 %v1409, %v1417
    %v1420 = vtanh.pop %v1419
    %1422 = vrot.lane.b32.xlu0 %v1420, 64
    %v1423 = vpop.permute.xlu0 %1422
    %v1425 = vmul.f32 %v1403, %v1423
    %1427 = vrot.lane.b32.xlu0 %v1425, 32
    %v1428 = vpop.permute.xlu0 %1427
    %1430 = vst.msk [vmem:[#allocation2] sm:$0x3] %vm169, %v1428
    %1432 = vrot.lane.b32.xlu0 %v1419, 96
    %v1433 = vpop.permute.xlu0 %1432
    %1435 = vst.msk [vmem:[#allocation3] sm:$0x3] %vm169, %v1433
    %v1436 = vpack.c.bf16 %v1425, %v1425
    %v1437 = vld [vmem:[#allocation4] sm:$0x3]
    %v1438 = vpack.c.bf16 %v1437, %v1437
    %v1440 = vsel %vm105, %v1438, 0
    %1442 = vmatpush.bf16.msra.mxu0 0
    %1443 = vmatpush.bf16.msra.mxu0 0
    %1444 = vmatpush.bf16.msra.mxu0 0
    %1445 = vmatpush.bf16.msra.mxu0 0
    %1446 = vmatpush.bf16.msra.mxu0 0
    %1447 = vmatpush.bf16.msra.mxu0 0
    %1448 = vmatpush.bf16.msra.mxu0 %v188
    %1449 = vmatpush.bf16.msra.mxu0 %v187
    %1450 = vmatmul.bf16.gmra.mxu0 %v1440
    %v1451 = vpop.f32.mrf.mxu0
    %v1452 = vadd.f32 0.0, %v1451
    %v1453 = vpop.f32.mrf.mxu0
    %1454 = vdwg.mxu0
    %1456 = vrot.lane.b32.xlu0 %v1436, 32
    %v1457 = vpop.permute.xlu0 %1456
    %v1459 = vsel %vm105, %v1457, 0
    %1461 = vmatpush.bf16.msra.mxu0 0
    %1462 = vmatpush.bf16.msra.mxu0 0
    %1463 = vmatpush.bf16.msra.mxu0 0
    %1464 = vmatpush.bf16.msra.mxu0 0
    %1465 = vmatpush.bf16.msra.mxu0 0
    %1466 = vmatpush.bf16.msra.mxu0 0
    %1467 = vmatpush.bf16.msra.mxu0 %v219
    %1468 = vmatpush.bf16.msra.mxu0 %v218
    %1469 = vmatmul.bf16.gmra.mxu0 %v1459
    %v1470 = vpop.f32.mrf.mxu0
    %v1471 = vadd.f32 %v1452, %v1470
    %v1472 = vpop.f32.mrf.mxu0
    %1473 = vdwg.mxu0
    %v1474 = vadd.f32 %v1471, %v239
    %v1475 = vld [vmem:[#allocation5] sm:$0x3]
    %v1476 = vxor.u32 %v1474, 2147483648
    %v1477 = vmul.f32 %v1476, 1.442695
    %v1478 = vpow.pop %v1477
    %v1479 = vadd.f32 %v1478, 1.0
    %v1480 = vrcp.pop %v1479
    %v1481 = vmul.f32 %v1479, %v1480
    %v1482 = vsub.f32 1.0, %v1481
    %v1483 = vmul.f32 %v1480, %v1482
    %v1484 = vadd.f32 %v1480, %v1483
    %vm1485 = vweird.f32 %v1479
    %vm1486 = vweird.f32 %v1480
    %vm1487 = vmor %vm1485, %vm1486
    %v1488 = vsel %vm1487, %v1480, %v1484
    %v1489 = vand.u32 2147483647, %v1479
    %vm1490 = vcmp.eq.f32.partialorder %v1489, 8.507059e+37
    %v1491 = vand.u32 %v1479, 2147483648
    %v1492 = vor.u32 1.1754944e-38, %v1491
    %v1493 = vsel %vm1490, %v1492, %v1488
    %v1494 = vmul.f32 1.0, %v1493
    %v1495 = vtanh.pop %v1474
    %1497 = vrot.lane.b32.xlu0 %v1475, 32
    %v1498 = vpop.permute.xlu0 %1497
    %v1500 = vmul.f32 %v1494, %v1498
    %1502 = vrot.lane.b32.xlu0 %v1495, 64
    %v1503 = vpop.permute.xlu0 %1502
    %v1505 = vmul.f32 %v1494, %v1503
    %1507 = vrot.lane.b32.xlu0 %v1505, 32
    %v1508 = vpop.permute.xlu0 %1507
    %v1510 = vadd.f32 %v1500, %v1508
    %v1511 = vtanh.pop %v1510
    %1513 = vrot.lane.b32.xlu0 %v1511, 64
    %v1514 = vpop.permute.xlu0 %1513
    %v1516 = vmul.f32 %v1494, %v1514
    %1518 = vrot.lane.b32.xlu0 %v1516, 32
    %v1519 = vpop.permute.xlu0 %1518
    %1521 = vst.msk [vmem:[#allocation4] sm:$0x3] %vm169, %v1519
    %1523 = vrot.lane.b32.xlu0 %v1510, 96
    %v1524 = vpop.permute.xlu0 %1523
    %1526 = vst.msk [vmem:[#allocation5] sm:$0x3] %vm169, %v1524
    %v1527 = vpack.c.bf16 %v1516, %v1516
    %v1529 = vrot.slane %v1527, 3
    %v1532 = vsel %vm297, %v1527, %v1529
    %1534 = vrot.lane.b32.xlu0 %v1532, 32
    %v1535 = vpop.permute.xlu0 %1534
    %s1537 = scalar_lea.vmem %s5, 7
    %1538 = vst.msk [vmem:[%s1537] sm:$0x1] %vm305, %v1535
    // Predicated region
    $region38: #{text_generation_forward.4} parent=1 // pred_check
      _
    $region39: #{text_generation_forward.4} parent=1 // pred_check_branch
      %1540 = sbr.rel (0) target = $region41
    $region40: #{text_generation_forward.4} parent=1 // pred_region
      _
    $region41: #{text_generation_forward.4} parent=1 // pred_fallthru
      _
    // Predicated region
    $region42: #{text_generation_forward.4} parent=1 // pred_check
      _
    $region43: #{text_generation_forward.4} parent=1 // pred_check_branch
      %1542 = sbr.rel (0) target = $region45
    $region44: #{text_generation_forward.4} parent=1 // pred_region
      _
    $region45: #{text_generation_forward.4} parent=1 // pred_fallthru
      _
    %1543 = vsyncpa [#allocation7], 1
    %1544 = vsyncpa [#allocation9], 1

</llo_original>
